<compile_context>
chip_gen: v7x
topology: tpu7x:2x2x1
jax: 0.10.0
libtpu: 0.0.40
codegen_flags: <defaults>
</compile_context>

<pallas_src>
import functools

import jax
import jax.numpy as jnp
from jax import lax
from jax.experimental import pallas as pl
from jax.experimental.pallas import tpu as pltpu


def _round_up(x, m):
    return ((x + m - 1) // m) * m


def _metacl_kernel(cfq_ref, cfk_ref, labq_ref, labk_ref, pcq_ref, out_ref,
                   m_sc, d_sc, ps_sc, *, n_valid, tq, tk, has_pad):
    # cfq_ref:  [tq, Dp]  pre-normalized, sqrt(1/temp)-scaled features (matmul dtype)
    # cfk_ref:  [tk, Dp]  same array, k tile
    # labq_ref: [tq, 1]   int32 labels of the q rows (padded rows = -1)
    # labk_ref: [1, tk]   int32 labels of the k rows
    # pcq_ref:  [tq, 1]   f32 positive count per q row (precomputed, >=1)
    # out_ref:  [tq, 1]   per-anchor loss (written at the last k step)
    # scratch:  m (running max), d (running exp-sum), ps (sum of positive logits)
    qi = pl.program_id(0)
    ki = pl.program_id(1)
    nk = pl.num_programs(1)

    @pl.when(ki == 0)
    def _init():
        m_sc[...] = jnp.full_like(m_sc, -jnp.inf)
        d_sc[...] = jnp.zeros_like(d_sc)
        ps_sc[...] = jnp.zeros_like(ps_sc)

    # Normalization and temperature were hoisted to the wrapper, so the per-tile
    # work is only the MXU pass (bf16-in / f32-accumulate by default).
    s = lax.dot_general(cfq_ref[...], cfk_ref[...],
                        dimension_numbers=(((1,), (1,)), ((), ())),
                        preferred_element_type=jnp.float32)
    lab_eq = labq_ref[...] == labk_ref[...]          # [tq, tk] broadcast compare

    def _accumulate(s_den, s_pos):
        # Online (flash-style) log-sum-exp and positive-logit accumulation.
        blk_max = jnp.max(s_den, axis=1, keepdims=True)
        new_m = jnp.maximum(m_sc[...], blk_max)
        d_sc[...] = d_sc[...] * jnp.exp(m_sc[...] - new_m) + jnp.sum(
            jnp.exp(s_den - new_m), axis=1, keepdims=True)
        m_sc[...] = new_m
        ps_sc[...] += jnp.sum(s_pos, axis=1, keepdims=True)

    is_diag = qi == ki
    if has_pad:
        needs_mask = jnp.logical_or(is_diag, ki == nk - 1)
    else:
        needs_mask = is_diag

    @pl.when(jnp.logical_not(needs_mask))
    def _fast_block():
        # Interior block: no diagonal and no padded columns -> the logits mask is
        # all-true and positives are plain label equality (no iota mask building).
        _accumulate(s, jnp.where(lab_eq, s, 0.0))

    @pl.when(needs_mask)
    def _masked_block():
        # Diagonal block and/or last (padded) column block: rebuild the exact masks
        # from iotas and use selects (no bool->f32 casts, no mask multiplies).
        row_ids = qi * tq + lax.broadcasted_iota(jnp.int32, (tq, tk), 0)
        col_ids = ki * tk + lax.broadcasted_iota(jnp.int32, (tq, tk), 1)
        lm = jnp.logical_and(row_ids != col_ids, col_ids < n_valid)
        pos = jnp.logical_and(lm, lab_eq)
        _accumulate(jnp.where(lm, s, -jnp.inf), jnp.where(pos, s, 0.0))

    @pl.when(ki == nk - 1)
    def _finalize():
        lse = m_sc[...] + jnp.log(d_sc[...])
        # mean_log_prob_pos = (sum_pos adc - pc * lse) / pc = ps/pc - lse
        mlpp = ps_sc[...] / pcq_ref[...] - lse
        rid = qi * tq + lax.broadcasted_iota(jnp.int32, (tq, 1), 0)
        row_valid = (rid < n_valid).astype(jnp.float32)
        out_ref[...] = -(row_valid * mlpp)


def metacl_loss(projection1, projection2, meta_labels=None, temperature=0.06,
                block=512, matmul_dtype=jnp.bfloat16, core_parallel=False):
    """Pallas TPU implementation of MetaCL.forward (returns the scalar loss).

    matmul_dtype: MXU input dtype. bf16 (default) is fast on all generations; the
      accumulation and all softmax/elementwise math stay f32 (v5e-safe). Pass
      jnp.float32 for bit-closer logits.
    core_parallel: set True on v7x to shard the q grid axis across the two
      TensorCores; leave False on single-core chips (v5e/v6e).
    """
    B, D = projection1.shape
    N = 2 * B

    # contrast_feature = cat(unbind(features, dim=1), dim=0) == [proj1; proj2].
    cf = jnp.concatenate([projection1.astype(jnp.float32),
                          projection2.astype(jnp.float32)], axis=0)
    # F.normalize(p=2, dim=1, eps=1e-12), hoisted out of the kernel (one pass over
    # [N, D]). The eps clamp keeps padded / zero rows at exactly 0.
    cf = cf * lax.rsqrt(jnp.maximum(jnp.sum(cf * cf, axis=1, keepdims=True), 1e-24))
    # Fold sqrt(1/temperature) into the features once: since the same array is used
    # for both sides of the matmul, q.k then carries the full 1/temperature factor
    # (O(N*D) wrapper work instead of O(N^2) in-kernel scaling).
    cf = cf * jnp.float32(float(1.0 / temperature) ** 0.5)

    # Per-anchor labels: the eye(B).repeat(2, 2) positive mask is exactly label
    # equality of (i % B), so only O(N) int32 labels are shipped to the kernel.
    if meta_labels is None:
        lab = jnp.arange(B, dtype=jnp.int32)
    else:
        lab = meta_labels.reshape(-1).astype(jnp.int32)
    row_lab = jnp.concatenate([lab, lab], axis=0)
    # The positive count per anchor is data-independent of the features:
    #   pc(i) = 2 * |{j in batch : label_j == label_i}| - 1  (excludes self).
    cnt = jnp.sum((lab[:, None] == lab[None, :]).astype(jnp.float32), axis=1)
    pc_half = 2.0 * cnt - 1.0
    row_pc = jnp.concatenate([pc_half, pc_half], axis=0)

    # Tile size: large tiles cut the k-tile HBM re-stream (proportional to 1/tq),
    # fill the 256x256 MXU on v6e/v7x and amortize the ~0.35us/step grid overhead;
    # clamp to the padded problem size so tiny inputs stay a single small tile.
    T = int(min(block, max(256, _round_up(N, 256))))
    assert T % 128 == 0
    n_pad = _round_up(N, T)
    d_pad = _round_up(D, 128)
    has_pad = bool(n_pad != N)

    cf_p = jnp.zeros((n_pad, d_pad), matmul_dtype).at[:N, :D].set(
        cf.astype(matmul_dtype))
    lab_p = jnp.full((n_pad,), -1, jnp.int32).at[:N].set(row_lab)  # sentinel pad label
    pc_p = jnp.ones((n_pad,), jnp.float32).at[:N].set(row_pc)      # pad pc=1 (no div0)
    lab_col = lab_p.reshape(n_pad, 1)
    lab_row = lab_p.reshape(1, n_pad)
    pc_col = pc_p.reshape(n_pad, 1)

    nq = n_pad // T
    nk = n_pad // T

    kernel = functools.partial(_metacl_kernel, n_valid=N, tq=T, tk=T,
                               has_pad=has_pad)

    # Explicit VMEM budget: double-buffered q/k tiles + a few [T,T] f32 temporaries.
    # Stays within v7x's 64 MiB physical VMEM while lifting v5e's 16 MiB scoped default.
    itemsize = jnp.dtype(matmul_dtype).itemsize
    vmem_limit = int(min(64 * 1024 * 1024,
                         max(32 * 1024 * 1024,
                             4 * T * d_pad * itemsize + 16 * T * T * 4)))
    if core_parallel:
        # TODO(synk): auto-detect v7x (2 TensorCores) and enable this by default there.
        dim_sem = (pltpu.CORE_PARALLEL, pltpu.ARBITRARY)
    else:
        dim_sem = ("parallel", "arbitrary")

    per_row = pl.pallas_call(
        kernel,
        out_shape=jax.ShapeDtypeStruct((n_pad, 1), jnp.float32),
        grid=(nq, nk),
        in_specs=[
            pl.BlockSpec((T, d_pad), lambda qi, ki: (qi, 0)),  # q feature tile
            pl.BlockSpec((T, d_pad), lambda qi, ki: (ki, 0)),  # k feature tile
            pl.BlockSpec((T, 1), lambda qi, ki: (qi, 0)),      # q labels (column)
            pl.BlockSpec((1, T), lambda qi, ki: (0, ki)),      # k labels (row)
            pl.BlockSpec((T, 1), lambda qi, ki: (qi, 0)),      # positive counts
        ],
        out_specs=pl.BlockSpec((T, 1), lambda qi, ki: (qi, 0)),
        scratch_shapes=[pltpu.VMEM((T, 1), jnp.float32)] * 3,  # m, d, ps
        compiler_params=pltpu.CompilerParams(
            dimension_semantics=dim_sem,
            vmem_limit_bytes=vmem_limit),
    )(cf_p, cf_p, lab_col, lab_row, pc_col)

    # loss.view(2, B).mean() == mean over all 2B anchors; padded rows contribute 0.
    return jnp.sum(per_row) / N


def _metacl_ref(projection1, projection2, meta_labels=None, temperature=0.06):
    """Pure-JAX reference mirroring the PyTorch forward."""
    def l2n(x):
        n = jnp.sqrt(jnp.sum(x * x, axis=1, keepdims=True))
        return x / jnp.maximum(n, 1e-12)

    p1, p2 = l2n(projection1), l2n(projection2)
    B = p1.shape[0]
    cf = jnp.concatenate([p1, p2], axis=0)
    N = 2 * B
    if meta_labels is None:
        base_mask = jnp.eye(B, dtype=jnp.float32)
    else:
        ml = meta_labels.reshape(-1, 1)
        base_mask = (ml == ml.T).astype(jnp.float32)
    adc = (cf @ cf.T) / temperature
    logits = adc - jnp.max(adc, axis=1, keepdims=True)
    mask = jnp.tile(base_mask, (2, 2))
    logits_mask = jnp.ones((N, N)) - jnp.eye(N)
    mask = mask * logits_mask
    exp_logits = jnp.exp(logits) * logits_mask
    log_prob = logits - jnp.log(jnp.sum(exp_logits, axis=1, keepdims=True))
    mlpp = jnp.sum(mask * log_prob, axis=1) / jnp.sum(mask, axis=1)
    return jnp.mean(-mlpp)


if __name__ == "__main__":
    key = jax.random.PRNGKey(0)
    k1, k2, k3, k4, k5, k6 = jax.random.split(key, 6)

    # Case 1: small single-tile config (exercises the masked diag + padded-column path),
    # with and without meta_labels.
    B, D = 8, 32
    projection1 = jax.random.normal(k1, (B, D), dtype=jnp.float32)
    projection2 = jax.random.normal(k2, (B, D), dtype=jnp.float32)
    meta_labels = jax.random.randint(k3, (B,), 0, 3)

    for labels in (None, meta_labels):
        out = metacl_loss(projection1, projection2, labels, temperature=0.06,
                          matmul_dtype=jnp.float32)          # strict f32 check
        jax.block_until_ready(out)
        ref = _metacl_ref(projection1, projection2, labels, temperature=0.06)
        assert jnp.allclose(out, ref, rtol=1e-3, atol=1e-3), (out, ref)

    out_bf16 = metacl_loss(projection1, projection2, meta_labels, temperature=0.06)
    jax.block_until_ready(out_bf16)
    ref_lbl = _metacl_ref(projection1, projection2, meta_labels, temperature=0.06)
    assert jnp.allclose(out_bf16, ref_lbl, rtol=5e-2, atol=5e-2), (out_bf16, ref_lbl)

    # Case 2: non-aligned size with a 2x2 grid (block=256): exercises the fast interior
    # path, the diagonal path and the padded-column path together, plus the online LSE.
    B2, D2 = 130, 48   # N = 260 -> padded to 512 rows, D padded to 128 lanes
    p1b = jax.random.normal(k4, (B2, D2), dtype=jnp.float32)
    p2b = jax.random.normal(k5, (B2, D2), dtype=jnp.float32)
    lbl2 = jax.random.randint(k6, (B2,), 0, 5)

    out_b = metacl_loss(p1b, p2b, lbl2, temperature=0.06, block=256,
                        matmul_dtype=jnp.float32)
    jax.block_until_ready(out_b)
    ref_b = _metacl_ref(p1b, p2b, lbl2, temperature=0.06)
    assert jnp.allclose(out_b, ref_b, rtol=1e-3, atol=1e-3), (out_b, ref_b)

    out_b16 = metacl_loss(p1b, p2b, lbl2, temperature=0.06, block=256)
    jax.block_until_ready(out_b16)
    assert jnp.allclose(out_b16, ref_b, rtol=5e-2, atol=5e-2), (out_b16, ref_b)

    print("KERNEL_OK")
</pallas_src>

<mosaic_0001>
module attributes {stable_mosaic.version = 11 : i64} {
  func.func @_metacl_kernel(%arg0: i32, %arg1: i32, %arg2: memref<256x128xf32, #tpu.memory_space<vmem>>, %arg3: memref<256x128xf32, #tpu.memory_space<vmem>>, %arg4: memref<256x1xi32, #tpu.memory_space<vmem>>, %arg5: memref<1x256xi32, #tpu.memory_space<vmem>>, %arg6: memref<256x1xf32, #tpu.memory_space<vmem>>, %arg7: memref<256x1xf32, #tpu.memory_space<vmem>>, %arg8: memref<256x1xf32, #tpu.memory_space<vmem>>, %arg9: memref<256x1xf32, #tpu.memory_space<vmem>>, %arg10: memref<256x1xf32, #tpu.memory_space<vmem>>) attributes {dimension_semantics = [#tpu.dimension_semantics<parallel>, #tpu.dimension_semantics<arbitrary>], iteration_bounds = array<i64: 1, 1>, scalar_prefetch = 0 : i64, scratch_operands = 3 : i64, tpu.core_type = #tpu.core_type<tc>, window_params = [{transform_indices = @transform_0, window_bounds = array<i64: 256, 128>}, {transform_indices = @transform_1, window_bounds = array<i64: 256, 128>}, {transform_indices = @transform_2, window_bounds = array<i64: 256, 1>}, {transform_indices = @transform_3, window_bounds = array<i64: 1, 256>}, {transform_indices = @transform_4, window_bounds = array<i64: 256, 1>}, {transform_indices = @transform_5, window_bounds = array<i64: 256, 1>}]} {
    %c0_i32 = arith.constant 0 : i32
    %0 = arith.cmpi eq, %arg1, %c0_i32 : i32
    %1 = arith.extui %0 : i1 to i32
    %c0_i32_0 = arith.constant 0 : i32
    %2 = arith.cmpi ne, %1, %c0_i32_0 : i32
    scf.if %2 {
      %cst_13 = arith.constant 0xFF800000 : f32
      %22 = vector.broadcast %cst_13 : f32 to vector<256x1xf32>
      %c0_14 = arith.constant 0 : index
      %c0_15 = arith.constant 0 : index
      %23 = vector.load %arg8[%c0_14, %c0_15] : memref<256x1xf32, #tpu.memory_space<vmem>>, vector<256x1xf32>
      tpu.vector_store %arg8[%c0_14, %c0_15], %22 {strides = array<i32>} : memref<256x1xf32, #tpu.memory_space<vmem>>, vector<256x1xf32>,
      %cst_16 = arith.constant 0.000000e+00 : f32
      %24 = vector.broadcast %cst_16 : f32 to vector<256x1xf32>
      %c0_17 = arith.constant 0 : index
      %c0_18 = arith.constant 0 : index
      %25 = vector.load %arg9[%c0_17, %c0_18] : memref<256x1xf32, #tpu.memory_space<vmem>>, vector<256x1xf32>
      tpu.vector_store %arg9[%c0_17, %c0_18], %24 {strides = array<i32>} : memref<256x1xf32, #tpu.memory_space<vmem>>, vector<256x1xf32>,
      %cst_19 = arith.constant 0.000000e+00 : f32
      %26 = vector.broadcast %cst_19 : f32 to vector<256x1xf32>
      %c0_20 = arith.constant 0 : index
      %c0_21 = arith.constant 0 : index
      %27 = vector.load %arg10[%c0_20, %c0_21] : memref<256x1xf32, #tpu.memory_space<vmem>>, vector<256x1xf32>
      tpu.vector_store %arg10[%c0_20, %c0_21], %26 {strides = array<i32>} : memref<256x1xf32, #tpu.memory_space<vmem>>, vector<256x1xf32>,
    } else {
    }
    %c0 = arith.constant 0 : index
    %c0_1 = arith.constant 0 : index
    %3 = vector.load %arg2[%c0, %c0_1] : memref<256x128xf32, #tpu.memory_space<vmem>>, vector<256x128xf32>
    %c0_2 = arith.constant 0 : index
    %c0_3 = arith.constant 0 : index
    %4 = vector.load %arg3[%c0_2, %c0_3] : memref<256x128xf32, #tpu.memory_space<vmem>>, vector<256x128xf32>
    %cst = arith.constant dense<0.000000e+00> : vector<256x256xf32>
    %5 = tpu.matmul %3, %4, %cst {dimension_numbers = #tpu.dot_dimension_numbers<[1], [1], [0], [0], [0, 0, 1, 0], [], []>} : vector<256x128xf32>, vector<256x128xf32>, vector<256x256xf32> -> vector<256x256xf32>
    %c0_4 = arith.constant 0 : index
    %c0_5 = arith.constant 0 : index
    %6 = vector.load %arg4[%c0_4, %c0_5] : memref<256x1xi32, #tpu.memory_space<vmem>>, vector<256x1xi32>
    %c0_6 = arith.constant 0 : index
    %c0_7 = arith.constant 0 : index
    %7 = vector.load %arg5[%c0_6, %c0_7] : memref<1x256xi32, #tpu.memory_space<vmem>>, vector<1x256xi32>
    %8 = vector.broadcast %6 : vector<256x1xi32> to vector<256x256xi32>
    %9 = vector.broadcast %7 : vector<1x256xi32> to vector<256x256xi32>
    %10 = arith.cmpi eq, %8, %9 : vector<256x256xi32>
    %11 = arith.cmpi eq, %arg0, %arg1 : i32
    %c0_i32_8 = arith.constant 0 : i32
    %12 = arith.cmpi eq, %arg1, %c0_i32_8 : i32
    %13 = arith.ori %11, %12 : i1
    %true = arith.constant true
    %14 = arith.xori %13, %true : i1
    %15 = arith.extui %14 : i1 to i32
    %c0_i32_9 = arith.constant 0 : i32
    %16 = arith.cmpi ne, %15, %c0_i32_9 : i32
    scf.if %16 {
      %cst_13 = arith.constant 0.000000e+00 : f32
      %22 = vector.broadcast %cst_13 : f32 to vector<256x256xf32>
      %23 = arith.select %10, %5, %22 : vector<256x256xi1>, vector<256x256xf32>
      %cst_14 = arith.constant dense<0xFF800000> : vector<256xf32>
      %24 = vector.multi_reduction <maximumf>, %5, %cst_14 [1] : vector<256x256xf32> to vector<256xf32>
      %25 = vector.shape_cast %24 : vector<256xf32> to vector<256x1xf32>
      %c0_15 = arith.constant 0 : index
      %c0_16 = arith.constant 0 : index
      %26 = vector.load %arg8[%c0_15, %c0_16] : memref<256x1xf32, #tpu.memory_space<vmem>>, vector<256x1xf32>
      %27 = arith.maximumf %26, %25 : vector<256x1xf32>
      %c0_17 = arith.constant 0 : index
      %c0_18 = arith.constant 0 : index
      %28 = vector.load %arg9[%c0_17, %c0_18] : memref<256x1xf32, #tpu.memory_space<vmem>>, vector<256x1xf32>
      %c0_19 = arith.constant 0 : index
      %c0_20 = arith.constant 0 : index
      %29 = vector.load %arg8[%c0_19, %c0_20] : memref<256x1xf32, #tpu.memory_space<vmem>>, vector<256x1xf32>
      %30 = arith.subf %29, %27 : vector<256x1xf32>
      %31 = math.exp %30 : vector<256x1xf32>
      %32 = arith.mulf %28, %31 : vector<256x1xf32>
      %33 = vector.broadcast %27 : vector<256x1xf32> to vector<256x256xf32>
      %34 = arith.subf %5, %33 : vector<256x256xf32>
      %35 = math.exp %34 : vector<256x256xf32>
      %cst_21 = arith.constant dense<0.000000e+00> : vector<256xf32>
      %36 = vector.multi_reduction <add>, %35, %cst_21 [1] : vector<256x256xf32> to vector<256xf32>
      %37 = vector.shape_cast %36 : vector<256xf32> to vector<256x1xf32>
      %38 = arith.addf %32, %37 : vector<256x1xf32>
      %c0_22 = arith.constant 0 : index
      %c0_23 = arith.constant 0 : index
      %39 = vector.load %arg9[%c0_22, %c0_23] : memref<256x1xf32, #tpu.memory_space<vmem>>, vector<256x1xf32>
      tpu.vector_store %arg9[%c0_22, %c0_23], %38 {strides = array<i32>} : memref<256x1xf32, #tpu.memory_space<vmem>>, vector<256x1xf32>,
      %c0_24 = arith.constant 0 : index
      %c0_25 = arith.constant 0 : index
      %40 = vector.load %arg8[%c0_24, %c0_25] : memref<256x1xf32, #tpu.memory_space<vmem>>, vector<256x1xf32>
      tpu.vector_store %arg8[%c0_24, %c0_25], %27 {strides = array<i32>} : memref<256x1xf32, #tpu.memory_space<vmem>>, vector<256x1xf32>,
      %c0_26 = arith.constant 0 : index
      %c0_27 = arith.constant 0 : index
      %41 = vector.load %arg10[%c0_26, %c0_27] : memref<256x1xf32, #tpu.memory_space<vmem>>, vector<256x1xf32>
      %cst_28 = arith.constant dense<0.000000e+00> : vector<256xf32>
      %42 = vector.multi_reduction <add>, %23, %cst_28 [1] : vector<256x256xf32> to vector<256xf32>
      %43 = vector.shape_cast %42 : vector<256xf32> to vector<256x1xf32>
      %44 = arith.addf %41, %43 : vector<256x1xf32>
      %c0_29 = arith.constant 0 : index
      %c0_30 = arith.constant 0 : index
      %45 = vector.load %arg10[%c0_29, %c0_30] : memref<256x1xf32, #tpu.memory_space<vmem>>, vector<256x1xf32>
      tpu.vector_store %arg10[%c0_29, %c0_30], %44 {strides = array<i32>} : memref<256x1xf32, #tpu.memory_space<vmem>>, vector<256x1xf32>,
    } else {
    }
    %17 = arith.extui %13 : i1 to i32
    %c0_i32_10 = arith.constant 0 : i32
    %18 = arith.cmpi ne, %17, %c0_i32_10 : i32
    scf.if %18 {
      %c256_i32 = arith.constant 256 : i32
      %22 = arith.muli %arg0, %c256_i32 : i32
      %23 = tpu.iota {dimensions = array<i32: 0>} : vector<256x256xi32>
      %24 = vector.broadcast %22 : i32 to vector<256x256xi32>
      %25 = arith.addi %24, %23 : vector<256x256xi32>
      %c256_i32_13 = arith.constant 256 : i32
      %26 = arith.muli %arg1, %c256_i32_13 : i32
      %27 = tpu.iota {dimensions = array<i32: 1>} : vector<256x256xi32>
      %28 = vector.broadcast %26 : i32 to vector<256x256xi32>
      %29 = arith.addi %28, %27 : vector<256x256xi32>
      %30 = arith.cmpi ne, %25, %29 : vector<256x256xi32>
      %c16_i32 = arith.constant 16 : i32
      %31 = vector.broadcast %c16_i32 : i32 to vector<256x256xi32>
      %32 = arith.cmpi slt, %29, %31 : vector<256x256xi32>
      %33 = arith.andi %30, %32 : vector<256x256xi1>
      %34 = arith.andi %33, %10 : vector<256x256xi1>
      %cst_14 = arith.constant 0xFF800000 : f32
      %35 = vector.broadcast %cst_14 : f32 to vector<256x256xf32>
      %36 = arith.select %33, %5, %35 : vector<256x256xi1>, vector<256x256xf32>
      %cst_15 = arith.constant 0.000000e+00 : f32
      %37 = vector.broadcast %cst_15 : f32 to vector<256x256xf32>
      %38 = arith.select %34, %5, %37 : vector<256x256xi1>, vector<256x256xf32>
      %cst_16 = arith.constant dense<0xFF800000> : vector<256xf32>
      %39 = vector.multi_reduction <maximumf>, %36, %cst_16 [1] : vector<256x256xf32> to vector<256xf32>
      %40 = vector.shape_cast %39 : vector<256xf32> to vector<256x1xf32>
      %c0_17 = arith.constant 0 : index
      %c0_18 = arith.constant 0 : index
      %41 = vector.load %arg8[%c0_17, %c0_18] : memref<256x1xf32, #tpu.memory_space<vmem>>, vector<256x1xf32>
      %42 = arith.maximumf %41, %40 : vector<256x1xf32>
      %c0_19 = arith.constant 0 : index
      %c0_20 = arith.constant 0 : index
      %43 = vector.load %arg9[%c0_19, %c0_20] : memref<256x1xf32, #tpu.memory_space<vmem>>, vector<256x1xf32>
      %c0_21 = arith.constant 0 : index
      %c0_22 = arith.constant 0 : index
      %44 = vector.load %arg8[%c0_21, %c0_22] : memref<256x1xf32, #tpu.memory_space<vmem>>, vector<256x1xf32>
      %45 = arith.subf %44, %42 : vector<256x1xf32>
      %46 = math.exp %45 : vector<256x1xf32>
      %47 = arith.mulf %43, %46 : vector<256x1xf32>
      %48 = vector.broadcast %42 : vector<256x1xf32> to vector<256x256xf32>
      %49 = arith.subf %36, %48 : vector<256x256xf32>
      %50 = math.exp %49 : vector<256x256xf32>
      %cst_23 = arith.constant dense<0.000000e+00> : vector<256xf32>
      %51 = vector.multi_reduction <add>, %50, %cst_23 [1] : vector<256x256xf32> to vector<256xf32>
      %52 = vector.shape_cast %51 : vector<256xf32> to vector<256x1xf32>
      %53 = arith.addf %47, %52 : vector<256x1xf32>
      %c0_24 = arith.constant 0 : index
      %c0_25 = arith.constant 0 : index
      %54 = vector.load %arg9[%c0_24, %c0_25] : memref<256x1xf32, #tpu.memory_space<vmem>>, vector<256x1xf32>
      tpu.vector_store %arg9[%c0_24, %c0_25], %53 {strides = array<i32>} : memref<256x1xf32, #tpu.memory_space<vmem>>, vector<256x1xf32>,
      %c0_26 = arith.constant 0 : index
      %c0_27 = arith.constant 0 : index
      %55 = vector.load %arg8[%c0_26, %c0_27] : memref<256x1xf32, #tpu.memory_space<vmem>>, vector<256x1xf32>
      tpu.vector_store %arg8[%c0_26, %c0_27], %42 {strides = array<i32>} : memref<256x1xf32, #tpu.memory_space<vmem>>, vector<256x1xf32>,
      %c0_28 = arith.constant 0 : index
      %c0_29 = arith.constant 0 : index
      %56 = vector.load %arg10[%c0_28, %c0_29] : memref<256x1xf32, #tpu.memory_space<vmem>>, vector<256x1xf32>
      %cst_30 = arith.constant dense<0.000000e+00> : vector<256xf32>
      %57 = vector.multi_reduction <add>, %38, %cst_30 [1] : vector<256x256xf32> to vector<256xf32>
      %58 = vector.shape_cast %57 : vector<256xf32> to vector<256x1xf32>
      %59 = arith.addf %56, %58 : vector<256x1xf32>
      %c0_31 = arith.constant 0 : index
      %c0_32 = arith.constant 0 : index
      %60 = vector.load %arg10[%c0_31, %c0_32] : memref<256x1xf32, #tpu.memory_space<vmem>>, vector<256x1xf32>
      tpu.vector_store %arg10[%c0_31, %c0_32], %59 {strides = array<i32>} : memref<256x1xf32, #tpu.memory_space<vmem>>, vector<256x1xf32>,
    } else {
    }
    %c0_i32_11 = arith.constant 0 : i32
    %19 = arith.cmpi eq, %arg1, %c0_i32_11 : i32
    %20 = arith.extui %19 : i1 to i32
    %c0_i32_12 = arith.constant 0 : i32
    %21 = arith.cmpi ne, %20, %c0_i32_12 : i32
    scf.if %21 {
      %c0_13 = arith.constant 0 : index
      %c0_14 = arith.constant 0 : index
      %22 = vector.load %arg8[%c0_13, %c0_14] : memref<256x1xf32, #tpu.memory_space<vmem>>, vector<256x1xf32>
      %c0_15 = arith.constant 0 : index
      %c0_16 = arith.constant 0 : index
      %23 = vector.load %arg9[%c0_15, %c0_16] : memref<256x1xf32, #tpu.memory_space<vmem>>, vector<256x1xf32>
      %24 = math.log %23 : vector<256x1xf32>
      %25 = arith.addf %22, %24 : vector<256x1xf32>
      %c0_17 = arith.constant 0 : index
      %c0_18 = arith.constant 0 : index
      %26 = vector.load %arg10[%c0_17, %c0_18] : memref<256x1xf32, #tpu.memory_space<vmem>>, vector<256x1xf32>
      %c0_19 = arith.constant 0 : index
      %c0_20 = arith.constant 0 : index
      %27 = vector.load %arg6[%c0_19, %c0_20] : memref<256x1xf32, #tpu.memory_space<vmem>>, vector<256x1xf32>
      %28 = arith.divf %26, %27 : vector<256x1xf32>
      %29 = arith.subf %28, %25 : vector<256x1xf32>
      %c256_i32 = arith.constant 256 : i32
      %30 = arith.muli %arg0, %c256_i32 : i32
      %31 = tpu.iota {dimensions = array<i32: 0>} : vector<256x1xi32>
      %32 = vector.broadcast %30 : i32 to vector<256x1xi32>
      %33 = arith.addi %32, %31 : vector<256x1xi32>
      %c16_i32 = arith.constant 16 : i32
      %34 = vector.broadcast %c16_i32 : i32 to vector<256x1xi32>
      %35 = arith.cmpi slt, %33, %34 : vector<256x1xi32>
      %36 = arith.extui %35 : vector<256x1xi1> to vector<256x1xi32>
      %37 = arith.sitofp %36 : vector<256x1xi32> to vector<256x1xf32>
      %38 = arith.mulf %37, %29 : vector<256x1xf32>
      %cst_21 = arith.constant 0.000000e+00 : f32
      %39 = vector.broadcast %cst_21 : f32 to vector<256x1xf32>
      %40 = arith.subf %39, %38 : vector<256x1xf32>
      %c0_22 = arith.constant 0 : index
      %c0_23 = arith.constant 0 : index
      %41 = vector.load %arg7[%c0_22, %c0_23] : memref<256x1xf32, #tpu.memory_space<vmem>>, vector<256x1xf32>
      tpu.vector_store %arg7[%c0_22, %c0_23], %40 {strides = array<i32>} : memref<256x1xf32, #tpu.memory_space<vmem>>, vector<256x1xf32>,
    } else {
    }
    return
  }
  func.func @transform_0(%arg0: i32, %arg1: i32) -> (i32, i32) {
    %c0_i32 = arith.constant 0 : i32
    %c0_i32_0 = arith.constant 0 : i32
    return %arg0, %c0_i32 : i32, i32
  }
  func.func @transform_1(%arg0: i32, %arg1: i32) -> (i32, i32) {
    %c0_i32 = arith.constant 0 : i32
    %c0_i32_0 = arith.constant 0 : i32
    return %arg1, %c0_i32 : i32, i32
  }
  func.func @transform_2(%arg0: i32, %arg1: i32) -> (i32, i32) {
    %c0_i32 = arith.constant 0 : i32
    %c0_i32_0 = arith.constant 0 : i32
    return %arg0, %c0_i32 : i32, i32
  }
  func.func @transform_3(%arg0: i32, %arg1: i32) -> (i32, i32) {
    %c0_i32 = arith.constant 0 : i32
    %c0_i32_0 = arith.constant 0 : i32
    return %c0_i32, %arg1 : i32, i32
  }
  func.func @transform_4(%arg0: i32, %arg1: i32) -> (i32, i32) {
    %c0_i32 = arith.constant 0 : i32
    %c0_i32_0 = arith.constant 0 : i32
    return %arg0, %c0_i32 : i32, i32
  }
  func.func @transform_5(%arg0: i32, %arg1: i32) -> (i32, i32) {
    %c0_i32 = arith.constant 0 : i32
    %c0_i32_0 = arith.constant 0 : i32
    return %arg0, %c0_i32 : i32, i32
  }
}

</mosaic_0001>

<llo_original>
// kernel: tpu_custom_call.1
$region0: #{tpu_custom_call.1}
  #allocation0 [shape = 'u32[]', space=smem, size = 0x4, offset = 0x4, fixed_abs, tag = 'smem constant byte address 0x4 - core index']
  #allocation1 [shape = 'u32[144,128]{1,0:T(1,128)}', space=vmem, size = 0x12000, scoped, tag = 'internal scratch']
  #allocation2 [shape = 'f32[256,1]{1,0:T(8,128)}', space=vmem, size = 0x20000, scoped, tag = 'scratch operand']
  #allocation3 [shape = 'f32[256,1]{1,0:T(8,128)}', space=vmem, size = 0x20000, scoped, tag = 'scratch operand']
  #allocation4 [shape = 'f32[256,1]{1,0:T(8,128)}', space=vmem, size = 0x20000, scoped, tag = 'scratch operand']
  %s0 = inlined_call_operand.vmem [shape: f32[256,128], index: 0, kind: input, shape index: {}]
  %s1 = inlined_call_operand.vmem [shape: f32[256,128], index: 1, kind: input, shape index: {}]
  %s2 = inlined_call_operand.vmem [shape: s32[256,1], index: 2, kind: input, shape index: {}]
  %s3 = inlined_call_operand.vmem [shape: s32[1,256], index: 3, kind: input, shape index: {}]
  %s4 = inlined_call_operand.vmem [shape: f32[256,1], index: 4, kind: input, shape index: {}]
  %s5 = inlined_call_operand.vmem [shape: f32[256,1], index: 5, kind: output, shape index: {}]
  %s6 = sld [smem:[#allocation0]]
  $region46: #{tpu_custom_call.1} parent=0
    _
  %s8 = ssub.s32 1, %s6
  %s9 = scalar_select 0, %s8, %s6
  // Predicated region
  $region2: #{tpu_custom_call.1} parent=0 // pred_check
    _
  $region3: #{tpu_custom_call.1} parent=0 // pred_check_branch
    %11 = sbr.rel (0) target = $region5
  $region4: #{tpu_custom_call.1} parent=0 // pred_region
    _
  $region5: #{tpu_custom_call.1} parent=0 // pred_fallthru
    _
  // Predicated region
  $region6: #{tpu_custom_call.1} parent=0 // pred_check
    _
  $region7: #{tpu_custom_call.1} parent=0 // pred_check_branch
    %13 = sbr.rel (0) target = $region9
  $region8: #{tpu_custom_call.1} parent=0 // pred_region
    _
  $region9: #{tpu_custom_call.1} parent=0 // pred_fallthru
    _
  // Predicated region
  $region10: #{tpu_custom_call.1} parent=0 // pred_check
    _
  $region11: #{tpu_custom_call.1} parent=0 // pred_check_branch
    %15 = sbr.rel (0) target = $region13
  $region12: #{tpu_custom_call.1} parent=0 // pred_region
    _
  $region13: #{tpu_custom_call.1} parent=0 // pred_fallthru
    _
  // Predicated region
  $region14: #{tpu_custom_call.1} parent=0 // pred_check
    _
  $region15: #{tpu_custom_call.1} parent=0 // pred_check_branch
    %17 = sbr.rel (0) target = $region17
  $region16: #{tpu_custom_call.1} parent=0 // pred_region
    _
  $region17: #{tpu_custom_call.1} parent=0 // pred_fallthru
    _
  // Predicated region
  $region18: #{tpu_custom_call.1} parent=0 // pred_check
    _
  $region19: #{tpu_custom_call.1} parent=0 // pred_check_branch
    %19 = sbr.rel (0) target = $region21
  $region20: #{tpu_custom_call.1} parent=0 // pred_region
    _
  $region21: #{tpu_custom_call.1} parent=0 // pred_fallthru
    _
  %p20 = scmp.eq.s32.totalorder 0, 0
  // Predicated region
  $region22: #{tpu_custom_call.1} parent=0 // pred_check
    %p21 = pneg %p20
  $region23: #{tpu_custom_call.1} parent=0 // pred_check_branch
    %23 = sbr.rel (%p21) target = $region25
  $region24: #{tpu_custom_call.1} parent=0 // pred_region
    %vm24 = vcmask 7168
    %25 = vst.msk [vmem:[#allocation2] sm:$0xff] %vm24, -inf
    %26 = vst.msk [vmem:[#allocation2 + $0x8] sm:$0xff] %vm24, -inf
    %27 = vst.msk [vmem:[#allocation2 + $0x10] sm:$0xff] %vm24, -inf
    %28 = vst.msk [vmem:[#allocation2 + $0x18] sm:$0xff] %vm24, -inf
    %29 = vst.msk [vmem:[#allocation2 + $0x20] sm:$0xff] %vm24, -inf
    %30 = vst.msk [vmem:[#allocation2 + $0x28] sm:$0xff] %vm24, -inf
    %31 = vst.msk [vmem:[#allocation2 + $0x30] sm:$0xff] %vm24, -inf
    %32 = vst.msk [vmem:[#allocation2 + $0x38] sm:$0xff] %vm24, -inf
    %33 = vst.msk [vmem:[#allocation2 + $0x40] sm:$0xff] %vm24, -inf
    %34 = vst.msk [vmem:[#allocation2 + $0x48] sm:$0xff] %vm24, -inf
    %35 = vst.msk [vmem:[#allocation2 + $0x50] sm:$0xff] %vm24, -inf
    %36 = vst.msk [vmem:[#allocation2 + $0x58] sm:$0xff] %vm24, -inf
    %37 = vst.msk [vmem:[#allocation2 + $0x60] sm:$0xff] %vm24, -inf
    %38 = vst.msk [vmem:[#allocation2 + $0x68] sm:$0xff] %vm24, -inf
    %39 = vst.msk [vmem:[#allocation2 + $0x70] sm:$0xff] %vm24, -inf
    %40 = vst.msk [vmem:[#allocation2 + $0x78] sm:$0xff] %vm24, -inf
    %41 = vst.msk [vmem:[#allocation2 + $0x80] sm:$0xff] %vm24, -inf
    %42 = vst.msk [vmem:[#allocation2 + $0x88] sm:$0xff] %vm24, -inf
    %43 = vst.msk [vmem:[#allocation2 + $0x90] sm:$0xff] %vm24, -inf
    %44 = vst.msk [vmem:[#allocation2 + $0x98] sm:$0xff] %vm24, -inf
    %45 = vst.msk [vmem:[#allocation2 + $0xa0] sm:$0xff] %vm24, -inf
    %46 = vst.msk [vmem:[#allocation2 + $0xa8] sm:$0xff] %vm24, -inf
    %47 = vst.msk [vmem:[#allocation2 + $0xb0] sm:$0xff] %vm24, -inf
    %48 = vst.msk [vmem:[#allocation2 + $0xb8] sm:$0xff] %vm24, -inf
    %49 = vst.msk [vmem:[#allocation2 + $0xc0] sm:$0xff] %vm24, -inf
    %50 = vst.msk [vmem:[#allocation2 + $0xc8] sm:$0xff] %vm24, -inf
    %51 = vst.msk [vmem:[#allocation2 + $0xd0] sm:$0xff] %vm24, -inf
    %52 = vst.msk [vmem:[#allocation2 + $0xd8] sm:$0xff] %vm24, -inf
    %53 = vst.msk [vmem:[#allocation2 + $0xe0] sm:$0xff] %vm24, -inf
    %54 = vst.msk [vmem:[#allocation2 + $0xe8] sm:$0xff] %vm24, -inf
    %55 = vst.msk [vmem:[#allocation2 + $0xf0] sm:$0xff] %vm24, -inf
    %56 = vst.msk [vmem:[#allocation2 + $0xf8] sm:$0xff] %vm24, -inf
    %57 = vst.msk [vmem:[#allocation3] sm:$0xff] %vm24, 0.0
    %58 = vst.msk [vmem:[#allocation3 + $0x8] sm:$0xff] %vm24, 0.0
    %59 = vst.msk [vmem:[#allocation3 + $0x10] sm:$0xff] %vm24, 0.0
    %60 = vst.msk [vmem:[#allocation3 + $0x18] sm:$0xff] %vm24, 0.0
    %61 = vst.msk [vmem:[#allocation3 + $0x20] sm:$0xff] %vm24, 0.0
    %62 = vst.msk [vmem:[#allocation3 + $0x28] sm:$0xff] %vm24, 0.0
    %63 = vst.msk [vmem:[#allocation3 + $0x30] sm:$0xff] %vm24, 0.0
    %64 = vst.msk [vmem:[#allocation3 + $0x38] sm:$0xff] %vm24, 0.0
    %65 = vst.msk [vmem:[#allocation3 + $0x40] sm:$0xff] %vm24, 0.0
    %66 = vst.msk [vmem:[#allocation3 + $0x48] sm:$0xff] %vm24, 0.0
    %67 = vst.msk [vmem:[#allocation3 + $0x50] sm:$0xff] %vm24, 0.0
    %68 = vst.msk [vmem:[#allocation3 + $0x58] sm:$0xff] %vm24, 0.0
    %69 = vst.msk [vmem:[#allocation3 + $0x60] sm:$0xff] %vm24, 0.0
    %70 = vst.msk [vmem:[#allocation3 + $0x68] sm:$0xff] %vm24, 0.0
    %71 = vst.msk [vmem:[#allocation3 + $0x70] sm:$0xff] %vm24, 0.0
    %72 = vst.msk [vmem:[#allocation3 + $0x78] sm:$0xff] %vm24, 0.0
    %73 = vst.msk [vmem:[#allocation3 + $0x80] sm:$0xff] %vm24, 0.0
    %74 = vst.msk [vmem:[#allocation3 + $0x88] sm:$0xff] %vm24, 0.0
    %75 = vst.msk [vmem:[#allocation3 + $0x90] sm:$0xff] %vm24, 0.0
    %76 = vst.msk [vmem:[#allocation3 + $0x98] sm:$0xff] %vm24, 0.0
    %77 = vst.msk [vmem:[#allocation3 + $0xa0] sm:$0xff] %vm24, 0.0
    %78 = vst.msk [vmem:[#allocation3 + $0xa8] sm:$0xff] %vm24, 0.0
    %79 = vst.msk [vmem:[#allocation3 + $0xb0] sm:$0xff] %vm24, 0.0
    %80 = vst.msk [vmem:[#allocation3 + $0xb8] sm:$0xff] %vm24, 0.0
    %81 = vst.msk [vmem:[#allocation3 + $0xc0] sm:$0xff] %vm24, 0.0
    %82 = vst.msk [vmem:[#allocation3 + $0xc8] sm:$0xff] %vm24, 0.0
    %83 = vst.msk [vmem:[#allocation3 + $0xd0] sm:$0xff] %vm24, 0.0
    %84 = vst.msk [vmem:[#allocation3 + $0xd8] sm:$0xff] %vm24, 0.0
    %85 = vst.msk [vmem:[#allocation3 + $0xe0] sm:$0xff] %vm24, 0.0
    %86 = vst.msk [vmem:[#allocation3 + $0xe8] sm:$0xff] %vm24, 0.0
    %87 = vst.msk [vmem:[#allocation3 + $0xf0] sm:$0xff] %vm24, 0.0
    %88 = vst.msk [vmem:[#allocation3 + $0xf8] sm:$0xff] %vm24, 0.0
    %89 = vst.msk [vmem:[#allocation4] sm:$0xff] %vm24, 0.0
    %90 = vst.msk [vmem:[#allocation4 + $0x8] sm:$0xff] %vm24, 0.0
    %91 = vst.msk [vmem:[#allocation4 + $0x10] sm:$0xff] %vm24, 0.0
    %92 = vst.msk [vmem:[#allocation4 + $0x18] sm:$0xff] %vm24, 0.0
    %93 = vst.msk [vmem:[#allocation4 + $0x20] sm:$0xff] %vm24, 0.0
    %94 = vst.msk [vmem:[#allocation4 + $0x28] sm:$0xff] %vm24, 0.0
    %95 = vst.msk [vmem:[#allocation4 + $0x30] sm:$0xff] %vm24, 0.0
    %96 = vst.msk [vmem:[#allocation4 + $0x38] sm:$0xff] %vm24, 0.0
    %97 = vst.msk [vmem:[#allocation4 + $0x40] sm:$0xff] %vm24, 0.0
    %98 = vst.msk [vmem:[#allocation4 + $0x48] sm:$0xff] %vm24, 0.0
    %99 = vst.msk [vmem:[#allocation4 + $0x50] sm:$0xff] %vm24, 0.0
    %100 = vst.msk [vmem:[#allocation4 + $0x58] sm:$0xff] %vm24, 0.0
    %101 = vst.msk [vmem:[#allocation4 + $0x60] sm:$0xff] %vm24, 0.0
    %102 = vst.msk [vmem:[#allocation4 + $0x68] sm:$0xff] %vm24, 0.0
    %103 = vst.msk [vmem:[#allocation4 + $0x70] sm:$0xff] %vm24, 0.0
    %104 = vst.msk [vmem:[#allocation4 + $0x78] sm:$0xff] %vm24, 0.0
    %105 = vst.msk [vmem:[#allocation4 + $0x80] sm:$0xff] %vm24, 0.0
    %106 = vst.msk [vmem:[#allocation4 + $0x88] sm:$0xff] %vm24, 0.0
    %107 = vst.msk [vmem:[#allocation4 + $0x90] sm:$0xff] %vm24, 0.0
    %108 = vst.msk [vmem:[#allocation4 + $0x98] sm:$0xff] %vm24, 0.0
    %109 = vst.msk [vmem:[#allocation4 + $0xa0] sm:$0xff] %vm24, 0.0
    %110 = vst.msk [vmem:[#allocation4 + $0xa8] sm:$0xff] %vm24, 0.0
    %111 = vst.msk [vmem:[#allocation4 + $0xb0] sm:$0xff] %vm24, 0.0
    %112 = vst.msk [vmem:[#allocation4 + $0xb8] sm:$0xff] %vm24, 0.0
    %113 = vst.msk [vmem:[#allocation4 + $0xc0] sm:$0xff] %vm24, 0.0
    %114 = vst.msk [vmem:[#allocation4 + $0xc8] sm:$0xff] %vm24, 0.0
    %115 = vst.msk [vmem:[#allocation4 + $0xd0] sm:$0xff] %vm24, 0.0
    %116 = vst.msk [vmem:[#allocation4 + $0xd8] sm:$0xff] %vm24, 0.0
    %117 = vst.msk [vmem:[#allocation4 + $0xe0] sm:$0xff] %vm24, 0.0
    %118 = vst.msk [vmem:[#allocation4 + $0xe8] sm:$0xff] %vm24, 0.0
    %119 = vst.msk [vmem:[#allocation4 + $0xf0] sm:$0xff] %vm24, 0.0
    %120 = vst.msk [vmem:[#allocation4 + $0xf8] sm:$0xff] %vm24, 0.0
  $region25: #{tpu_custom_call.1} parent=0 // pred_fallthru
    _
  %v121 = vld [vmem:[%s0] sm:$0xff]
  %v122 = vld [vmem:[%s0 + $0x8] sm:$0xff]
  %v123 = vld [vmem:[%s0 + $0x10] sm:$0xff]
  %v124 = vld [vmem:[%s0 + $0x18] sm:$0xff]
  %v125 = vld [vmem:[%s0 + $0x20] sm:$0xff]
  %v126 = vld [vmem:[%s0 + $0x28] sm:$0xff]
  %v127 = vld [vmem:[%s0 + $0x30] sm:$0xff]
  %v128 = vld [vmem:[%s0 + $0x38] sm:$0xff]
  %v129 = vld [vmem:[%s0 + $0x40] sm:$0xff]
  %v130 = vld [vmem:[%s0 + $0x48] sm:$0xff]
  %v131 = vld [vmem:[%s0 + $0x50] sm:$0xff]
  %v132 = vld [vmem:[%s0 + $0x58] sm:$0xff]
  %v133 = vld [vmem:[%s0 + $0x60] sm:$0xff]
  %v134 = vld [vmem:[%s0 + $0x68] sm:$0xff]
  %v135 = vld [vmem:[%s0 + $0x70] sm:$0xff]
  %v136 = vld [vmem:[%s0 + $0x78] sm:$0xff]
  %v137 = vld [vmem:[%s0 + $0x80] sm:$0xff]
  %v138 = vld [vmem:[%s0 + $0x88] sm:$0xff]
  %v139 = vld [vmem:[%s0 + $0x90] sm:$0xff]
  %v140 = vld [vmem:[%s0 + $0x98] sm:$0xff]
  %v141 = vld [vmem:[%s0 + $0xa0] sm:$0xff]
  %v142 = vld [vmem:[%s0 + $0xa8] sm:$0xff]
  %v143 = vld [vmem:[%s0 + $0xb0] sm:$0xff]
  %v144 = vld [vmem:[%s0 + $0xb8] sm:$0xff]
  %v145 = vld [vmem:[%s0 + $0xc0] sm:$0xff]
  %v146 = vld [vmem:[%s0 + $0xc8] sm:$0xff]
  %v147 = vld [vmem:[%s0 + $0xd0] sm:$0xff]
  %v148 = vld [vmem:[%s0 + $0xd8] sm:$0xff]
  %v149 = vld [vmem:[%s0 + $0xe0] sm:$0xff]
  %v150 = vld [vmem:[%s0 + $0xe8] sm:$0xff]
  %v151 = vld [vmem:[%s0 + $0xf0] sm:$0xff]
  %v152 = vld [vmem:[%s0 + $0xf8] sm:$0xff]
  %v153 = vld [vmem:[%s1] sm:$0xff]
  %v154 = vld [vmem:[%s1 + $0x8] sm:$0xff]
  %v155 = vld [vmem:[%s1 + $0x10] sm:$0xff]
  %v156 = vld [vmem:[%s1 + $0x18] sm:$0xff]
  %v157 = vld [vmem:[%s1 + $0x20] sm:$0xff]
  %v158 = vld [vmem:[%s1 + $0x28] sm:$0xff]
  %v159 = vld [vmem:[%s1 + $0x30] sm:$0xff]
  %v160 = vld [vmem:[%s1 + $0x38] sm:$0xff]
  %v161 = vld [vmem:[%s1 + $0x40] sm:$0xff]
  %v162 = vld [vmem:[%s1 + $0x48] sm:$0xff]
  %v163 = vld [vmem:[%s1 + $0x50] sm:$0xff]
  %v164 = vld [vmem:[%s1 + $0x58] sm:$0xff]
  %v165 = vld [vmem:[%s1 + $0x60] sm:$0xff]
  %v166 = vld [vmem:[%s1 + $0x68] sm:$0xff]
  %v167 = vld [vmem:[%s1 + $0x70] sm:$0xff]
  %v168 = vld [vmem:[%s1 + $0x78] sm:$0xff]
  %v169 = vld [vmem:[%s1 + $0x80] sm:$0xff]
  %v170 = vld [vmem:[%s1 + $0x88] sm:$0xff]
  %v171 = vld [vmem:[%s1 + $0x90] sm:$0xff]
  %v172 = vld [vmem:[%s1 + $0x98] sm:$0xff]
  %v173 = vld [vmem:[%s1 + $0xa0] sm:$0xff]
  %v174 = vld [vmem:[%s1 + $0xa8] sm:$0xff]
  %v175 = vld [vmem:[%s1 + $0xb0] sm:$0xff]
  %v176 = vld [vmem:[%s1 + $0xb8] sm:$0xff]
  %v177 = vld [vmem:[%s1 + $0xc0] sm:$0xff]
  %v178 = vld [vmem:[%s1 + $0xc8] sm:$0xff]
  %v179 = vld [vmem:[%s1 + $0xd0] sm:$0xff]
  %v180 = vld [vmem:[%s1 + $0xd8] sm:$0xff]
  %v181 = vld [vmem:[%s1 + $0xe0] sm:$0xff]
  %v182 = vld [vmem:[%s1 + $0xe8] sm:$0xff]
  %v183 = vld [vmem:[%s1 + $0xf0] sm:$0xff]
  %v184 = vld [vmem:[%s1 + $0xf8] sm:$0xff]
  %185 = vmatprep.subr.mxu0 0.0
  %186 = vmatpush1.xpose.msra.mxu0 %v153
  %187 = vmatprep.subr.mxu0 0.0
  %188 = vmatpush1.xpose.msra.mxu0 %v154
  %189 = vmatprep.subr.mxu0 0.0
  %190 = vmatpush1.xpose.msra.mxu0 %v155
  %191 = vmatprep.subr.mxu0 0.0
  %192 = vmatpush1.xpose.msra.mxu0 %v156
  %193 = vmatprep.subr.mxu0 0.0
  %194 = vmatpush1.xpose.msra.mxu0 %v157
  %195 = vmatprep.subr.mxu0 0.0
  %196 = vmatpush1.xpose.msra.mxu0 %v158
  %197 = vmatprep.subr.mxu0 0.0
  %198 = vmatpush1.xpose.msra.mxu0 %v159
  %199 = vmatprep.subr.mxu0 0.0
  %200 = vmatpush1.xpose.msra.mxu0 %v160
  %201 = vmatprep.subr.mxu0 0.0
  %202 = vmatpush1.xpose.msra.mxu0 %v161
  %203 = vmatprep.subr.mxu0 0.0
  %204 = vmatpush1.xpose.msra.mxu0 %v162
  %205 = vmatprep.subr.mxu0 0.0
  %206 = vmatpush1.xpose.msra.mxu0 %v163
  %207 = vmatprep.subr.mxu0 0.0
  %208 = vmatpush1.xpose.msra.mxu0 %v164
  %209 = vmatprep.subr.mxu0 0.0
  %210 = vmatpush1.xpose.msra.mxu0 %v165
  %211 = vmatprep.subr.mxu0 0.0
  %212 = vmatpush1.xpose.msra.mxu0 %v166
  %213 = vmatprep.subr.mxu0 0.0
  %214 = vmatpush1.xpose.msra.mxu0 %v167
  %215 = vmatprep.subr.mxu0 0.0
  %216 = vmatpush1.xpose.msra.mxu0 %v168
  %217 = vmatprep.subr.mxu0 0.0
  %218 = vmatpush1.xpose.msra.mxu0 %v169
  %219 = vmatprep.subr.mxu0 0.0
  %220 = vmatpush1.xpose.msra.mxu0 %v170
  %221 = vmatprep.subr.mxu0 0.0
  %222 = vmatpush1.xpose.msra.mxu0 %v171
  %223 = vmatprep.subr.mxu0 0.0
  %224 = vmatpush1.xpose.msra.mxu0 %v172
  %225 = vmatprep.subr.mxu0 0.0
  %226 = vmatpush1.xpose.msra.mxu0 %v173
  %227 = vmatprep.subr.mxu0 0.0
  %228 = vmatpush1.xpose.msra.mxu0 %v174
  %229 = vmatprep.subr.mxu0 0.0
  %230 = vmatpush1.xpose.msra.mxu0 %v175
  %231 = vmatprep.subr.mxu0 0.0
  %232 = vmatpush1.xpose.msra.mxu0 %v176
  %233 = vmatprep.subr.mxu0 0.0
  %234 = vmatpush1.xpose.msra.mxu0 %v177
  %235 = vmatprep.subr.mxu0 0.0
  %236 = vmatpush1.xpose.msra.mxu0 %v178
  %237 = vmatprep.subr.mxu0 0.0
  %238 = vmatpush1.xpose.msra.mxu0 %v179
  %239 = vmatprep.subr.mxu0 0.0
  %240 = vmatpush1.xpose.msra.mxu0 %v180
  %241 = vmatprep.subr.mxu0 0.0
  %242 = vmatpush1.xpose.msra.mxu0 %v181
  %243 = vmatprep.subr.mxu0 0.0
  %244 = vmatpush1.xpose.msra.mxu0 %v182
  %245 = vmatprep.subr.mxu0 0.0
  %246 = vmatpush1.xpose.msra.mxu0 %v183
  %247 = vmatprep.subr.mxu0 0.0
  %248 = vmatpush1.xpose.msra.mxu0 %v184
  %249 = vmatprep.mubr.f32.mxu0 0.0
  %250 = vmatmul.mubr.f32.gmra.mrb[0].mxu0 %v121
  %v251 = vpop.f32.mrb[0].mxu0
  %v252 = vadd.f32 0.0, %v251
  %v253 = vpop.f32.mrb[0].mxu0
  %v254 = vadd.f32 0.0, %v253
  %255 = vmatprep.mubr.f32.mxu0 0.0
  %256 = vmatmul.mubr.f32.gmra.mrb[0].mxu0 %v122
  %v257 = vpop.f32.mrb[0].mxu0
  %v258 = vadd.f32 0.0, %v257
  %v259 = vpop.f32.mrb[0].mxu0
  %v260 = vadd.f32 0.0, %v259
  %261 = vmatprep.mubr.f32.mxu0 0.0
  %262 = vmatmul.mubr.f32.gmra.mrb[0].mxu0 %v123
  %v263 = vpop.f32.mrb[0].mxu0
  %v264 = vadd.f32 0.0, %v263
  %v265 = vpop.f32.mrb[0].mxu0
  %v266 = vadd.f32 0.0, %v265
  %267 = vmatprep.mubr.f32.mxu0 0.0
  %268 = vmatmul.mubr.f32.gmra.mrb[0].mxu0 %v124
  %v269 = vpop.f32.mrb[0].mxu0
  %v270 = vadd.f32 0.0, %v269
  %v271 = vpop.f32.mrb[0].mxu0
  %v272 = vadd.f32 0.0, %v271
  %273 = vmatprep.mubr.f32.mxu0 0.0
  %274 = vmatmul.mubr.f32.gmra.mrb[0].mxu0 %v125
  %v275 = vpop.f32.mrb[0].mxu0
  %v276 = vadd.f32 0.0, %v275
  %v277 = vpop.f32.mrb[0].mxu0
  %v278 = vadd.f32 0.0, %v277
  %279 = vmatprep.mubr.f32.mxu0 0.0
  %280 = vmatmul.mubr.f32.gmra.mrb[0].mxu0 %v126
  %v281 = vpop.f32.mrb[0].mxu0
  %v282 = vadd.f32 0.0, %v281
  %v283 = vpop.f32.mrb[0].mxu0
  %v284 = vadd.f32 0.0, %v283
  %285 = vmatprep.mubr.f32.mxu0 0.0
  %286 = vmatmul.mubr.f32.gmra.mrb[0].mxu0 %v127
  %v287 = vpop.f32.mrb[0].mxu0
  %v288 = vadd.f32 0.0, %v287
  %v289 = vpop.f32.mrb[0].mxu0
  %v290 = vadd.f32 0.0, %v289
  %291 = vmatprep.mubr.f32.mxu0 0.0
  %292 = vmatmul.mubr.f32.gmra.mrb[0].mxu0 %v128
  %v293 = vpop.f32.mrb[0].mxu0
  %v294 = vadd.f32 0.0, %v293
  %v295 = vpop.f32.mrb[0].mxu0
  %v296 = vadd.f32 0.0, %v295
  %297 = vmatprep.mubr.f32.mxu0 0.0
  %298 = vmatmul.mubr.f32.gmra.mrb[0].mxu0 %v129
  %v299 = vpop.f32.mrb[0].mxu0
  %v300 = vadd.f32 0.0, %v299
  %v301 = vpop.f32.mrb[0].mxu0
  %v302 = vadd.f32 0.0, %v301
  %303 = vmatprep.mubr.f32.mxu0 0.0
  %304 = vmatmul.mubr.f32.gmra.mrb[0].mxu0 %v130
  %v305 = vpop.f32.mrb[0].mxu0
  %v306 = vadd.f32 0.0, %v305
  %v307 = vpop.f32.mrb[0].mxu0
  %v308 = vadd.f32 0.0, %v307
  %309 = vmatprep.mubr.f32.mxu0 0.0
  %310 = vmatmul.mubr.f32.gmra.mrb[0].mxu0 %v131
  %v311 = vpop.f32.mrb[0].mxu0
  %v312 = vadd.f32 0.0, %v311
  %v313 = vpop.f32.mrb[0].mxu0
  %v314 = vadd.f32 0.0, %v313
  %315 = vmatprep.mubr.f32.mxu0 0.0
  %316 = vmatmul.mubr.f32.gmra.mrb[0].mxu0 %v132
  %v317 = vpop.f32.mrb[0].mxu0
  %v318 = vadd.f32 0.0, %v317
  %v319 = vpop.f32.mrb[0].mxu0
  %v320 = vadd.f32 0.0, %v319
  %321 = vmatprep.mubr.f32.mxu0 0.0
  %322 = vmatmul.mubr.f32.gmra.mrb[0].mxu0 %v133
  %v323 = vpop.f32.mrb[0].mxu0
  %v324 = vadd.f32 0.0, %v323
  %v325 = vpop.f32.mrb[0].mxu0
  %v326 = vadd.f32 0.0, %v325
  %327 = vmatprep.mubr.f32.mxu0 0.0
  %328 = vmatmul.mubr.f32.gmra.mrb[0].mxu0 %v134
  %v329 = vpop.f32.mrb[0].mxu0
  %v330 = vadd.f32 0.0, %v329
  %v331 = vpop.f32.mrb[0].mxu0
  %v332 = vadd.f32 0.0, %v331
  %333 = vmatprep.mubr.f32.mxu0 0.0
  %334 = vmatmul.mubr.f32.gmra.mrb[0].mxu0 %v135
  %v335 = vpop.f32.mrb[0].mxu0
  %v336 = vadd.f32 0.0, %v335
  %v337 = vpop.f32.mrb[0].mxu0
  %v338 = vadd.f32 0.0, %v337
  %339 = vmatprep.mubr.f32.mxu0 0.0
  %340 = vmatmul.mubr.f32.gmra.mrb[0].mxu0 %v136
  %v341 = vpop.f32.mrb[0].mxu0
  %v342 = vadd.f32 0.0, %v341
  %v343 = vpop.f32.mrb[0].mxu0
  %v344 = vadd.f32 0.0, %v343
  %345 = vmatprep.mubr.f32.mxu0 0.0
  %346 = vmatmul.mubr.f32.gmra.mrb[0].mxu0 %v137
  %v347 = vpop.f32.mrb[0].mxu0
  %v348 = vadd.f32 0.0, %v347
  %v349 = vpop.f32.mrb[0].mxu0
  %v350 = vadd.f32 0.0, %v349
  %351 = vmatprep.mubr.f32.mxu0 0.0
  %352 = vmatmul.mubr.f32.gmra.mrb[0].mxu0 %v138
  %v353 = vpop.f32.mrb[0].mxu0
  %v354 = vadd.f32 0.0, %v353
  %v355 = vpop.f32.mrb[0].mxu0
  %v356 = vadd.f32 0.0, %v355
  %357 = vmatprep.mubr.f32.mxu0 0.0
  %358 = vmatmul.mubr.f32.gmra.mrb[0].mxu0 %v139
  %v359 = vpop.f32.mrb[0].mxu0
  %v360 = vadd.f32 0.0, %v359
  %v361 = vpop.f32.mrb[0].mxu0
  %v362 = vadd.f32 0.0, %v361
  %363 = vmatprep.mubr.f32.mxu0 0.0
  %364 = vmatmul.mubr.f32.gmra.mrb[0].mxu0 %v140
  %v365 = vpop.f32.mrb[0].mxu0
  %v366 = vadd.f32 0.0, %v365
  %v367 = vpop.f32.mrb[0].mxu0
  %v368 = vadd.f32 0.0, %v367
  %369 = vmatprep.mubr.f32.mxu0 0.0
  %370 = vmatmul.mubr.f32.gmra.mrb[0].mxu0 %v141
  %v371 = vpop.f32.mrb[0].mxu0
  %v372 = vadd.f32 0.0, %v371
  %v373 = vpop.f32.mrb[0].mxu0
  %v374 = vadd.f32 0.0, %v373
  %375 = vmatprep.mubr.f32.mxu0 0.0
  %376 = vmatmul.mubr.f32.gmra.mrb[0].mxu0 %v142
  %v377 = vpop.f32.mrb[0].mxu0
  %v378 = vadd.f32 0.0, %v377
  %v379 = vpop.f32.mrb[0].mxu0
  %v380 = vadd.f32 0.0, %v379
  %381 = vmatprep.mubr.f32.mxu0 0.0
  %382 = vmatmul.mubr.f32.gmra.mrb[0].mxu0 %v143
  %v383 = vpop.f32.mrb[0].mxu0
  %v384 = vadd.f32 0.0, %v383
  %v385 = vpop.f32.mrb[0].mxu0
  %v386 = vadd.f32 0.0, %v385
  %387 = vmatprep.mubr.f32.mxu0 0.0
  %388 = vmatmul.mubr.f32.gmra.mrb[0].mxu0 %v144
  %v389 = vpop.f32.mrb[0].mxu0
  %v390 = vadd.f32 0.0, %v389
  %v391 = vpop.f32.mrb[0].mxu0
  %v392 = vadd.f32 0.0, %v391
  %393 = vmatprep.mubr.f32.mxu0 0.0
  %394 = vmatmul.mubr.f32.gmra.mrb[0].mxu0 %v145
  %v395 = vpop.f32.mrb[0].mxu0
  %v396 = vadd.f32 0.0, %v395
  %v397 = vpop.f32.mrb[0].mxu0
  %v398 = vadd.f32 0.0, %v397
  %399 = vmatprep.mubr.f32.mxu0 0.0
  %400 = vmatmul.mubr.f32.gmra.mrb[0].mxu0 %v146
  %v401 = vpop.f32.mrb[0].mxu0
  %v402 = vadd.f32 0.0, %v401
  %v403 = vpop.f32.mrb[0].mxu0
  %v404 = vadd.f32 0.0, %v403
  %405 = vmatprep.mubr.f32.mxu0 0.0
  %406 = vmatmul.mubr.f32.gmra.mrb[0].mxu0 %v147
  %v407 = vpop.f32.mrb[0].mxu0
  %v408 = vadd.f32 0.0, %v407
  %v409 = vpop.f32.mrb[0].mxu0
  %v410 = vadd.f32 0.0, %v409
  %411 = vmatprep.mubr.f32.mxu0 0.0
  %412 = vmatmul.mubr.f32.gmra.mrb[0].mxu0 %v148
  %v413 = vpop.f32.mrb[0].mxu0
  %v414 = vadd.f32 0.0, %v413
  %v415 = vpop.f32.mrb[0].mxu0
  %v416 = vadd.f32 0.0, %v415
  %417 = vmatprep.mubr.f32.mxu0 0.0
  %418 = vmatmul.mubr.f32.gmra.mrb[0].mxu0 %v149
  %v419 = vpop.f32.mrb[0].mxu0
  %v420 = vadd.f32 0.0, %v419
  %v421 = vpop.f32.mrb[0].mxu0
  %v422 = vadd.f32 0.0, %v421
  %423 = vmatprep.mubr.f32.mxu0 0.0
  %424 = vmatmul.mubr.f32.gmra.mrb[0].mxu0 %v150
  %v425 = vpop.f32.mrb[0].mxu0
  %v426 = vadd.f32 0.0, %v425
  %v427 = vpop.f32.mrb[0].mxu0
  %v428 = vadd.f32 0.0, %v427
  %429 = vmatprep.mubr.f32.mxu0 0.0
  %430 = vmatmul.mubr.f32.gmra.mrb[0].mxu0 %v151
  %v431 = vpop.f32.mrb[0].mxu0
  %v432 = vadd.f32 0.0, %v431
  %v433 = vpop.f32.mrb[0].mxu0
  %v434 = vadd.f32 0.0, %v433
  %435 = vmatprep.mubr.f32.mxu0 0.0
  %436 = vmatmul.mubr.f32.gmra.mrb[0].mxu0 %v152
  %v437 = vpop.f32.mrb[0].mxu0
  %v438 = vadd.f32 0.0, %v437
  %v439 = vpop.f32.mrb[0].mxu0
  %v440 = vadd.f32 0.0, %v439
  %441 = vdwg.mxu0
  %v442 = vld [vmem:[%s2] sm:$0xff]
  %v443 = vld [vmem:[%s2 + $0x8] sm:$0xff]
  %v444 = vld [vmem:[%s2 + $0x10] sm:$0xff]
  %v445 = vld [vmem:[%s2 + $0x18] sm:$0xff]
  %v446 = vld [vmem:[%s2 + $0x20] sm:$0xff]
  %v447 = vld [vmem:[%s2 + $0x28] sm:$0xff]
  %v448 = vld [vmem:[%s2 + $0x30] sm:$0xff]
  %v449 = vld [vmem:[%s2 + $0x38] sm:$0xff]
  %v450 = vld [vmem:[%s2 + $0x40] sm:$0xff]
  %v451 = vld [vmem:[%s2 + $0x48] sm:$0xff]
  %v452 = vld [vmem:[%s2 + $0x50] sm:$0xff]
  %v453 = vld [vmem:[%s2 + $0x58] sm:$0xff]
  %v454 = vld [vmem:[%s2 + $0x60] sm:$0xff]
  %v455 = vld [vmem:[%s2 + $0x68] sm:$0xff]
  %v456 = vld [vmem:[%s2 + $0x70] sm:$0xff]
  %v457 = vld [vmem:[%s2 + $0x78] sm:$0xff]
  %v458 = vld [vmem:[%s2 + $0x80] sm:$0xff]
  %v459 = vld [vmem:[%s2 + $0x88] sm:$0xff]
  %v460 = vld [vmem:[%s2 + $0x90] sm:$0xff]
  %v461 = vld [vmem:[%s2 + $0x98] sm:$0xff]
  %v462 = vld [vmem:[%s2 + $0xa0] sm:$0xff]
  %v463 = vld [vmem:[%s2 + $0xa8] sm:$0xff]
  %v464 = vld [vmem:[%s2 + $0xb0] sm:$0xff]
  %v465 = vld [vmem:[%s2 + $0xb8] sm:$0xff]
  %v466 = vld [vmem:[%s2 + $0xc0] sm:$0xff]
  %v467 = vld [vmem:[%s2 + $0xc8] sm:$0xff]
  %v468 = vld [vmem:[%s2 + $0xd0] sm:$0xff]
  %v469 = vld [vmem:[%s2 + $0xd8] sm:$0xff]
  %v470 = vld [vmem:[%s2 + $0xe0] sm:$0xff]
  %v471 = vld [vmem:[%s2 + $0xe8] sm:$0xff]
  %v472 = vld [vmem:[%s2 + $0xf0] sm:$0xff]
  %v473 = vld [vmem:[%s2 + $0xf8] sm:$0xff]
  %v474 = vld [vmem:[%s3] sm:$0x3]
  %475 = vset.pattern.permute.xlu0 0
  %476 = vperm.xlu0 %475, %v442
  %v477 = vpop.permute.xlu0 %476
  %478 = vset.pattern.permute.xlu0 0
  %479 = vperm.xlu0 %478, %v443
  %v480 = vpop.permute.xlu0 %479
  %481 = vset.pattern.permute.xlu0 0
  %482 = vperm.xlu0 %481, %v444
  %v483 = vpop.permute.xlu0 %482
  %484 = vset.pattern.permute.xlu0 0
  %485 = vperm.xlu0 %484, %v445
  %v486 = vpop.permute.xlu0 %485
  %487 = vset.pattern.permute.xlu0 0
  %488 = vperm.xlu0 %487, %v446
  %v489 = vpop.permute.xlu0 %488
  %490 = vset.pattern.permute.xlu0 0
  %491 = vperm.xlu0 %490, %v447
  %v492 = vpop.permute.xlu0 %491
  %493 = vset.pattern.permute.xlu0 0
  %494 = vperm.xlu0 %493, %v448
  %v495 = vpop.permute.xlu0 %494
  %496 = vset.pattern.permute.xlu0 0
  %497 = vperm.xlu0 %496, %v449
  %v498 = vpop.permute.xlu0 %497
  %499 = vset.pattern.permute.xlu0 0
  %500 = vperm.xlu0 %499, %v450
  %v501 = vpop.permute.xlu0 %500
  %502 = vset.pattern.permute.xlu0 0
  %503 = vperm.xlu0 %502, %v451
  %v504 = vpop.permute.xlu0 %503
  %505 = vset.pattern.permute.xlu0 0
  %506 = vperm.xlu0 %505, %v452
  %v507 = vpop.permute.xlu0 %506
  %508 = vset.pattern.permute.xlu0 0
  %509 = vperm.xlu0 %508, %v453
  %v510 = vpop.permute.xlu0 %509
  %511 = vset.pattern.permute.xlu0 0
  %512 = vperm.xlu0 %511, %v454
  %v513 = vpop.permute.xlu0 %512
  %514 = vset.pattern.permute.xlu0 0
  %515 = vperm.xlu0 %514, %v455
  %v516 = vpop.permute.xlu0 %515
  %517 = vset.pattern.permute.xlu0 0
  %518 = vperm.xlu0 %517, %v456
  %v519 = vpop.permute.xlu0 %518
  %520 = vset.pattern.permute.xlu0 0
  %521 = vperm.xlu0 %520, %v457
  %v522 = vpop.permute.xlu0 %521
  %523 = vset.pattern.permute.xlu0 0
  %524 = vperm.xlu0 %523, %v458
  %v525 = vpop.permute.xlu0 %524
  %526 = vset.pattern.permute.xlu0 0
  %527 = vperm.xlu0 %526, %v459
  %v528 = vpop.permute.xlu0 %527
  %529 = vset.pattern.permute.xlu0 0
  %530 = vperm.xlu0 %529, %v460
  %v531 = vpop.permute.xlu0 %530
  %532 = vset.pattern.permute.xlu0 0
  %533 = vperm.xlu0 %532, %v461
  %v534 = vpop.permute.xlu0 %533
  %535 = vset.pattern.permute.xlu0 0
  %536 = vperm.xlu0 %535, %v462
  %v537 = vpop.permute.xlu0 %536
  %538 = vset.pattern.permute.xlu0 0
  %539 = vperm.xlu0 %538, %v463
  %v540 = vpop.permute.xlu0 %539
  %541 = vset.pattern.permute.xlu0 0
  %542 = vperm.xlu0 %541, %v464
  %v543 = vpop.permute.xlu0 %542
  %544 = vset.pattern.permute.xlu0 0
  %545 = vperm.xlu0 %544, %v465
  %v546 = vpop.permute.xlu0 %545
  %547 = vset.pattern.permute.xlu0 0
  %548 = vperm.xlu0 %547, %v466
  %v549 = vpop.permute.xlu0 %548
  %550 = vset.pattern.permute.xlu0 0
  %551 = vperm.xlu0 %550, %v467
  %v552 = vpop.permute.xlu0 %551
  %553 = vset.pattern.permute.xlu0 0
  %554 = vperm.xlu0 %553, %v468
  %v555 = vpop.permute.xlu0 %554
  %556 = vset.pattern.permute.xlu0 0
  %557 = vperm.xlu0 %556, %v469
  %v558 = vpop.permute.xlu0 %557
  %559 = vset.pattern.permute.xlu0 0
  %560 = vperm.xlu0 %559, %v470
  %v561 = vpop.permute.xlu0 %560
  %562 = vset.pattern.permute.xlu0 0
  %563 = vperm.xlu0 %562, %v471
  %v564 = vpop.permute.xlu0 %563
  %565 = vset.pattern.permute.xlu0 0
  %566 = vperm.xlu0 %565, %v472
  %v567 = vpop.permute.xlu0 %566
  %568 = vset.pattern.permute.xlu0 0
  %569 = vperm.xlu0 %568, %v473
  %v570 = vpop.permute.xlu0 %569
  %v571 = vlaneseq
  %v572 = vshrl.u32 %v571, 7
  %v573 = vsub.s32 0, %v572
  %v574 = vrot.slane %v474, %v573
  %v575 = vlaneseq
  %v576 = vshrl.u32 %v575, 7
  %v577 = vsub.s32 1, %v576
  %v578 = vrot.slane %v474, %v577
  %vm579 = vcmp.eq.s32.totalorder %v477, %v574
  %vm580 = vcmp.eq.s32.totalorder %v477, %v578
  %vm581 = vcmp.eq.s32.totalorder %v480, %v574
  %vm582 = vcmp.eq.s32.totalorder %v480, %v578
  %vm583 = vcmp.eq.s32.totalorder %v483, %v574
  %vm584 = vcmp.eq.s32.totalorder %v483, %v578
  %vm585 = vcmp.eq.s32.totalorder %v486, %v574
  %vm586 = vcmp.eq.s32.totalorder %v486, %v578
  %vm587 = vcmp.eq.s32.totalorder %v489, %v574
  %vm588 = vcmp.eq.s32.totalorder %v489, %v578
  %vm589 = vcmp.eq.s32.totalorder %v492, %v574
  %vm590 = vcmp.eq.s32.totalorder %v492, %v578
  %vm591 = vcmp.eq.s32.totalorder %v495, %v574
  %vm592 = vcmp.eq.s32.totalorder %v495, %v578
  %vm593 = vcmp.eq.s32.totalorder %v498, %v574
  %vm594 = vcmp.eq.s32.totalorder %v498, %v578
  %vm595 = vcmp.eq.s32.totalorder %v501, %v574
  %vm596 = vcmp.eq.s32.totalorder %v501, %v578
  %vm597 = vcmp.eq.s32.totalorder %v504, %v574
  %vm598 = vcmp.eq.s32.totalorder %v504, %v578
  %vm599 = vcmp.eq.s32.totalorder %v507, %v574
  %vm600 = vcmp.eq.s32.totalorder %v507, %v578
  %vm601 = vcmp.eq.s32.totalorder %v510, %v574
  %vm602 = vcmp.eq.s32.totalorder %v510, %v578
  %vm603 = vcmp.eq.s32.totalorder %v513, %v574
  %vm604 = vcmp.eq.s32.totalorder %v513, %v578
  %vm605 = vcmp.eq.s32.totalorder %v516, %v574
  %vm606 = vcmp.eq.s32.totalorder %v516, %v578
  %vm607 = vcmp.eq.s32.totalorder %v519, %v574
  %vm608 = vcmp.eq.s32.totalorder %v519, %v578
  %vm609 = vcmp.eq.s32.totalorder %v522, %v574
  %vm610 = vcmp.eq.s32.totalorder %v522, %v578
  %vm611 = vcmp.eq.s32.totalorder %v525, %v574
  %vm612 = vcmp.eq.s32.totalorder %v525, %v578
  %vm613 = vcmp.eq.s32.totalorder %v528, %v574
  %vm614 = vcmp.eq.s32.totalorder %v528, %v578
  %vm615 = vcmp.eq.s32.totalorder %v531, %v574
  %vm616 = vcmp.eq.s32.totalorder %v531, %v578
  %vm617 = vcmp.eq.s32.totalorder %v534, %v574
  %vm618 = vcmp.eq.s32.totalorder %v534, %v578
  %vm619 = vcmp.eq.s32.totalorder %v537, %v574
  %vm620 = vcmp.eq.s32.totalorder %v537, %v578
  %vm621 = vcmp.eq.s32.totalorder %v540, %v574
  %vm622 = vcmp.eq.s32.totalorder %v540, %v578
  %vm623 = vcmp.eq.s32.totalorder %v543, %v574
  %vm624 = vcmp.eq.s32.totalorder %v543, %v578
  %vm625 = vcmp.eq.s32.totalorder %v546, %v574
  %vm626 = vcmp.eq.s32.totalorder %v546, %v578
  %vm627 = vcmp.eq.s32.totalorder %v549, %v574
  %vm628 = vcmp.eq.s32.totalorder %v549, %v578
  %vm629 = vcmp.eq.s32.totalorder %v552, %v574
  %vm630 = vcmp.eq.s32.totalorder %v552, %v578
  %vm631 = vcmp.eq.s32.totalorder %v555, %v574
  %vm632 = vcmp.eq.s32.totalorder %v555, %v578
  %vm633 = vcmp.eq.s32.totalorder %v558, %v574
  %vm634 = vcmp.eq.s32.totalorder %v558, %v578
  %vm635 = vcmp.eq.s32.totalorder %v561, %v574
  %vm636 = vcmp.eq.s32.totalorder %v561, %v578
  %vm637 = vcmp.eq.s32.totalorder %v564, %v574
  %vm638 = vcmp.eq.s32.totalorder %v564, %v578
  %vm639 = vcmp.eq.s32.totalorder %v567, %v574
  %vm640 = vcmp.eq.s32.totalorder %v567, %v578
  %vm641 = vcmp.eq.s32.totalorder %v570, %v574
  %vm642 = vcmp.eq.s32.totalorder %v570, %v578
  %p643 = scmp.eq.s32.totalorder 0, 0
  %p644 = por %p643, %p20
  // Predicated region
  $region26: #{tpu_custom_call.1} parent=0 // pred_check
    %p645 = pneg %p644
  $region27: #{tpu_custom_call.1} parent=0 // pred_check_branch
    %647 = sbr.rel (%p645) target = $region29
  $region28: #{tpu_custom_call.1} parent=0 // pred_region
    %s648 = smul.u32 0, 256
    %v649 = vlaneseq
    %v650 = vshrl.u32 %v649, 7
    %v651 = vadd.s32 %v650, 8
    %v652 = vadd.s32 %v650, 16
    %v653 = vadd.s32 %v650, 24
    %v654 = vadd.s32 %v650, 32
    %v655 = vadd.s32 %v650, 40
    %v656 = vadd.s32 %v650, 48
    %v657 = vadd.s32 %v650, 56
    %v658 = vadd.s32 %v650, 64
    %v659 = vadd.s32 %v650, 72
    %v660 = vadd.s32 %v650, 80
    %v661 = vadd.s32 %v650, 88
    %v662 = vadd.s32 %v650, 96
    %v663 = vadd.s32 %v650, 104
    %v664 = vadd.s32 %v650, 112
    %v665 = vadd.s32 %v650, 120
    %v666 = vadd.s32 %v650, 128
    %v667 = vadd.s32 %v650, 136
    %v668 = vadd.s32 %v650, 144
    %v669 = vadd.s32 %v650, 152
    %v670 = vadd.s32 %v650, 160
    %v671 = vadd.s32 %v650, 168
    %v672 = vadd.s32 %v650, 176
    %v673 = vadd.s32 %v650, 184
    %v674 = vadd.s32 %v650, 192
    %v675 = vadd.s32 %v650, 200
    %v676 = vadd.s32 %v650, 208
    %v677 = vadd.s32 %v650, 216
    %v678 = vadd.s32 %v650, 224
    %v679 = vadd.s32 %v650, 232
    %v680 = vadd.s32 %v650, 240
    %v681 = vadd.s32 %v650, 248
    %v682 = vstv %s648
    %v683 = vadd.s32 %v682, %v650
    %v684 = vadd.s32 %v682, %v651
    %v685 = vadd.s32 %v682, %v652
    %v686 = vadd.s32 %v682, %v653
    %v687 = vadd.s32 %v682, %v654
    %v688 = vadd.s32 %v682, %v655
    %v689 = vadd.s32 %v682, %v656
    %v690 = vadd.s32 %v682, %v657
    %v691 = vadd.s32 %v682, %v658
    %v692 = vadd.s32 %v682, %v659
    %v693 = vadd.s32 %v682, %v660
    %v694 = vadd.s32 %v682, %v661
    %v695 = vadd.s32 %v682, %v662
    %v696 = vadd.s32 %v682, %v663
    %v697 = vadd.s32 %v682, %v664
    %v698 = vadd.s32 %v682, %v665
    %v699 = vadd.s32 %v682, %v666
    %v700 = vadd.s32 %v682, %v667
    %v701 = vadd.s32 %v682, %v668
    %v702 = vadd.s32 %v682, %v669
    %v703 = vadd.s32 %v682, %v670
    %v704 = vadd.s32 %v682, %v671
    %v705 = vadd.s32 %v682, %v672
    %v706 = vadd.s32 %v682, %v673
    %v707 = vadd.s32 %v682, %v674
    %v708 = vadd.s32 %v682, %v675
    %v709 = vadd.s32 %v682, %v676
    %v710 = vadd.s32 %v682, %v677
    %v711 = vadd.s32 %v682, %v678
    %v712 = vadd.s32 %v682, %v679
    %v713 = vadd.s32 %v682, %v680
    %v714 = vadd.s32 %v682, %v681
    %s715 = smul.u32 0, 256
    %v716 = vlaneseq
    %v717 = vand.u32 %v716, 127
    %v718 = vadd.s32 %v717, 128
    %v719 = vstv %s715
    %v720 = vadd.s32 %v719, %v717
    %v721 = vadd.s32 %v719, %v718
    %vm722 = vcmp.ne.s32.totalorder %v683, %v720
    %vm723 = vcmp.ne.s32.totalorder %v683, %v721
    %vm724 = vcmp.ne.s32.totalorder %v684, %v720
    %vm725 = vcmp.ne.s32.totalorder %v684, %v721
    %vm726 = vcmp.ne.s32.totalorder %v685, %v720
    %vm727 = vcmp.ne.s32.totalorder %v685, %v721
    %vm728 = vcmp.ne.s32.totalorder %v686, %v720
    %vm729 = vcmp.ne.s32.totalorder %v686, %v721
    %vm730 = vcmp.ne.s32.totalorder %v687, %v720
    %vm731 = vcmp.ne.s32.totalorder %v687, %v721
    %vm732 = vcmp.ne.s32.totalorder %v688, %v720
    %vm733 = vcmp.ne.s32.totalorder %v688, %v721
    %vm734 = vcmp.ne.s32.totalorder %v689, %v720
    %vm735 = vcmp.ne.s32.totalorder %v689, %v721
    %vm736 = vcmp.ne.s32.totalorder %v690, %v720
    %vm737 = vcmp.ne.s32.totalorder %v690, %v721
    %vm738 = vcmp.ne.s32.totalorder %v691, %v720
    %vm739 = vcmp.ne.s32.totalorder %v691, %v721
    %vm740 = vcmp.ne.s32.totalorder %v692, %v720
    %vm741 = vcmp.ne.s32.totalorder %v692, %v721
    %vm742 = vcmp.ne.s32.totalorder %v693, %v720
    %vm743 = vcmp.ne.s32.totalorder %v693, %v721
    %vm744 = vcmp.ne.s32.totalorder %v694, %v720
    %vm745 = vcmp.ne.s32.totalorder %v694, %v721
    %vm746 = vcmp.ne.s32.totalorder %v695, %v720
    %vm747 = vcmp.ne.s32.totalorder %v695, %v721
    %vm748 = vcmp.ne.s32.totalorder %v696, %v720
    %vm749 = vcmp.ne.s32.totalorder %v696, %v721
    %vm750 = vcmp.ne.s32.totalorder %v697, %v720
    %vm751 = vcmp.ne.s32.totalorder %v697, %v721
    %vm752 = vcmp.ne.s32.totalorder %v698, %v720
    %vm753 = vcmp.ne.s32.totalorder %v698, %v721
    %vm754 = vcmp.ne.s32.totalorder %v699, %v720
    %vm755 = vcmp.ne.s32.totalorder %v699, %v721
    %vm756 = vcmp.ne.s32.totalorder %v700, %v720
    %vm757 = vcmp.ne.s32.totalorder %v700, %v721
    %vm758 = vcmp.ne.s32.totalorder %v701, %v720
    %vm759 = vcmp.ne.s32.totalorder %v701, %v721
    %vm760 = vcmp.ne.s32.totalorder %v702, %v720
    %vm761 = vcmp.ne.s32.totalorder %v702, %v721
    %vm762 = vcmp.ne.s32.totalorder %v703, %v720
    %vm763 = vcmp.ne.s32.totalorder %v703, %v721
    %vm764 = vcmp.ne.s32.totalorder %v704, %v720
    %vm765 = vcmp.ne.s32.totalorder %v704, %v721
    %vm766 = vcmp.ne.s32.totalorder %v705, %v720
    %vm767 = vcmp.ne.s32.totalorder %v705, %v721
    %vm768 = vcmp.ne.s32.totalorder %v706, %v720
    %vm769 = vcmp.ne.s32.totalorder %v706, %v721
    %vm770 = vcmp.ne.s32.totalorder %v707, %v720
    %vm771 = vcmp.ne.s32.totalorder %v707, %v721
    %vm772 = vcmp.ne.s32.totalorder %v708, %v720
    %vm773 = vcmp.ne.s32.totalorder %v708, %v721
    %vm774 = vcmp.ne.s32.totalorder %v709, %v720
    %vm775 = vcmp.ne.s32.totalorder %v709, %v721
    %vm776 = vcmp.ne.s32.totalorder %v710, %v720
    %vm777 = vcmp.ne.s32.totalorder %v710, %v721
    %vm778 = vcmp.ne.s32.totalorder %v711, %v720
    %vm779 = vcmp.ne.s32.totalorder %v711, %v721
    %vm780 = vcmp.ne.s32.totalorder %v712, %v720
    %vm781 = vcmp.ne.s32.totalorder %v712, %v721
    %vm782 = vcmp.ne.s32.totalorder %v713, %v720
    %vm783 = vcmp.ne.s32.totalorder %v713, %v721
    %vm784 = vcmp.ne.s32.totalorder %v714, %v720
    %vm785 = vcmp.ne.s32.totalorder %v714, %v721
    %vm786 = vcmp.lt.s32.totalorder %v720, 16
    %vm787 = vcmp.lt.s32.totalorder %v721, 16
    %vm788 = vmand %vm722, %vm786
    %vm789 = vmand %vm723, %vm787
    %vm790 = vmand %vm724, %vm786
    %vm791 = vmand %vm725, %vm787
    %vm792 = vmand %vm726, %vm786
    %vm793 = vmand %vm727, %vm787
    %vm794 = vmand %vm728, %vm786
    %vm795 = vmand %vm729, %vm787
    %vm796 = vmand %vm730, %vm786
    %vm797 = vmand %vm731, %vm787
    %vm798 = vmand %vm732, %vm786
    %vm799 = vmand %vm733, %vm787
    %vm800 = vmand %vm734, %vm786
    %vm801 = vmand %vm735, %vm787
    %vm802 = vmand %vm736, %vm786
    %vm803 = vmand %vm737, %vm787
    %vm804 = vmand %vm738, %vm786
    %vm805 = vmand %vm739, %vm787
    %vm806 = vmand %vm740, %vm786
    %vm807 = vmand %vm741, %vm787
    %vm808 = vmand %vm742, %vm786
    %vm809 = vmand %vm743, %vm787
    %vm810 = vmand %vm744, %vm786
    %vm811 = vmand %vm745, %vm787
    %vm812 = vmand %vm746, %vm786
    %vm813 = vmand %vm747, %vm787
    %vm814 = vmand %vm748, %vm786
    %vm815 = vmand %vm749, %vm787
    %vm816 = vmand %vm750, %vm786
    %vm817 = vmand %vm751, %vm787
    %vm818 = vmand %vm752, %vm786
    %vm819 = vmand %vm753, %vm787
    %vm820 = vmand %vm754, %vm786
    %vm821 = vmand %vm755, %vm787
    %vm822 = vmand %vm756, %vm786
    %vm823 = vmand %vm757, %vm787
    %vm824 = vmand %vm758, %vm786
    %vm825 = vmand %vm759, %vm787
    %vm826 = vmand %vm760, %vm786
    %vm827 = vmand %vm761, %vm787
    %vm828 = vmand %vm762, %vm786
    %vm829 = vmand %vm763, %vm787
    %vm830 = vmand %vm764, %vm786
    %vm831 = vmand %vm765, %vm787
    %vm832 = vmand %vm766, %vm786
    %vm833 = vmand %vm767, %vm787
    %vm834 = vmand %vm768, %vm786
    %vm835 = vmand %vm769, %vm787
    %vm836 = vmand %vm770, %vm786
    %vm837 = vmand %vm771, %vm787
    %vm838 = vmand %vm772, %vm786
    %vm839 = vmand %vm773, %vm787
    %vm840 = vmand %vm774, %vm786
    %vm841 = vmand %vm775, %vm787
    %vm842 = vmand %vm776, %vm786
    %vm843 = vmand %vm777, %vm787
    %vm844 = vmand %vm778, %vm786
    %vm845 = vmand %vm779, %vm787
    %vm846 = vmand %vm780, %vm786
    %vm847 = vmand %vm781, %vm787
    %vm848 = vmand %vm782, %vm786
    %vm849 = vmand %vm783, %vm787
    %vm850 = vmand %vm784, %vm786
    %vm851 = vmand %vm785, %vm787
    %vm852 = vmand %vm788, %vm579
    %vm853 = vmand %vm789, %vm580
    %vm854 = vmand %vm790, %vm581
    %vm855 = vmand %vm791, %vm582
    %vm856 = vmand %vm792, %vm583
    %vm857 = vmand %vm793, %vm584
    %vm858 = vmand %vm794, %vm585
    %vm859 = vmand %vm795, %vm586
    %vm860 = vmand %vm796, %vm587
    %vm861 = vmand %vm797, %vm588
    %vm862 = vmand %vm798, %vm589
    %vm863 = vmand %vm799, %vm590
    %vm864 = vmand %vm800, %vm591
    %vm865 = vmand %vm801, %vm592
    %vm866 = vmand %vm802, %vm593
    %vm867 = vmand %vm803, %vm594
    %vm868 = vmand %vm804, %vm595
    %vm869 = vmand %vm805, %vm596
    %vm870 = vmand %vm806, %vm597
    %vm871 = vmand %vm807, %vm598
    %vm872 = vmand %vm808, %vm599
    %vm873 = vmand %vm809, %vm600
    %vm874 = vmand %vm810, %vm601
    %vm875 = vmand %vm811, %vm602
    %vm876 = vmand %vm812, %vm603
    %vm877 = vmand %vm813, %vm604
    %vm878 = vmand %vm814, %vm605
    %vm879 = vmand %vm815, %vm606
    %vm880 = vmand %vm816, %vm607
    %vm881 = vmand %vm817, %vm608
    %vm882 = vmand %vm818, %vm609
    %vm883 = vmand %vm819, %vm610
    %vm884 = vmand %vm820, %vm611
    %vm885 = vmand %vm821, %vm612
    %vm886 = vmand %vm822, %vm613
    %vm887 = vmand %vm823, %vm614
    %vm888 = vmand %vm824, %vm615
    %vm889 = vmand %vm825, %vm616
    %vm890 = vmand %vm826, %vm617
    %vm891 = vmand %vm827, %vm618
    %vm892 = vmand %vm828, %vm619
    %vm893 = vmand %vm829, %vm620
    %vm894 = vmand %vm830, %vm621
    %vm895 = vmand %vm831, %vm622
    %vm896 = vmand %vm832, %vm623
    %vm897 = vmand %vm833, %vm624
    %vm898 = vmand %vm834, %vm625
    %vm899 = vmand %vm835, %vm626
    %vm900 = vmand %vm836, %vm627
    %vm901 = vmand %vm837, %vm628
    %vm902 = vmand %vm838, %vm629
    %vm903 = vmand %vm839, %vm630
    %vm904 = vmand %vm840, %vm631
    %vm905 = vmand %vm841, %vm632
    %vm906 = vmand %vm842, %vm633
    %vm907 = vmand %vm843, %vm634
    %vm908 = vmand %vm844, %vm635
    %vm909 = vmand %vm845, %vm636
    %vm910 = vmand %vm846, %vm637
    %vm911 = vmand %vm847, %vm638
    %vm912 = vmand %vm848, %vm639
    %vm913 = vmand %vm849, %vm640
    %vm914 = vmand %vm850, %vm641
    %vm915 = vmand %vm851, %vm642
    %v916 = vsel %vm788, %v252, -inf
    %v917 = vsel %vm789, %v254, -inf
    %v918 = vsel %vm790, %v258, -inf
    %v919 = vsel %vm791, %v260, -inf
    %v920 = vsel %vm792, %v264, -inf
    %v921 = vsel %vm793, %v266, -inf
    %v922 = vsel %vm794, %v270, -inf
    %v923 = vsel %vm795, %v272, -inf
    %v924 = vsel %vm796, %v276, -inf
    %v925 = vsel %vm797, %v278, -inf
    %v926 = vsel %vm798, %v282, -inf
    %v927 = vsel %vm799, %v284, -inf
    %v928 = vsel %vm800, %v288, -inf
    %v929 = vsel %vm801, %v290, -inf
    %v930 = vsel %vm802, %v294, -inf
    %v931 = vsel %vm803, %v296, -inf
    %v932 = vsel %vm804, %v300, -inf
    %v933 = vsel %vm805, %v302, -inf
    %v934 = vsel %vm806, %v306, -inf
    %v935 = vsel %vm807, %v308, -inf
    %v936 = vsel %vm808, %v312, -inf
    %v937 = vsel %vm809, %v314, -inf
    %v938 = vsel %vm810, %v318, -inf
    %v939 = vsel %vm811, %v320, -inf
    %v940 = vsel %vm812, %v324, -inf
    %v941 = vsel %vm813, %v326, -inf
    %v942 = vsel %vm814, %v330, -inf
    %v943 = vsel %vm815, %v332, -inf
    %v944 = vsel %vm816, %v336, -inf
    %v945 = vsel %vm817, %v338, -inf
    %v946 = vsel %vm818, %v342, -inf
    %v947 = vsel %vm819, %v344, -inf
    %v948 = vsel %vm820, %v348, -inf
    %v949 = vsel %vm821, %v350, -inf
    %v950 = vsel %vm822, %v354, -inf
    %v951 = vsel %vm823, %v356, -inf
    %v952 = vsel %vm824, %v360, -inf
    %v953 = vsel %vm825, %v362, -inf
    %v954 = vsel %vm826, %v366, -inf
    %v955 = vsel %vm827, %v368, -inf
    %v956 = vsel %vm828, %v372, -inf
    %v957 = vsel %vm829, %v374, -inf
    %v958 = vsel %vm830, %v378, -inf
    %v959 = vsel %vm831, %v380, -inf
    %v960 = vsel %vm832, %v384, -inf
    %v961 = vsel %vm833, %v386, -inf
    %v962 = vsel %vm834, %v390, -inf
    %v963 = vsel %vm835, %v392, -inf
    %v964 = vsel %vm836, %v396, -inf
    %v965 = vsel %vm837, %v398, -inf
    %v966 = vsel %vm838, %v402, -inf
    %v967 = vsel %vm839, %v404, -inf
    %v968 = vsel %vm840, %v408, -inf
    %v969 = vsel %vm841, %v410, -inf
    %v970 = vsel %vm842, %v414, -inf
    %v971 = vsel %vm843, %v416, -inf
    %v972 = vsel %vm844, %v420, -inf
    %v973 = vsel %vm845, %v422, -inf
    %v974 = vsel %vm846, %v426, -inf
    %v975 = vsel %vm847, %v428, -inf
    %v976 = vsel %vm848, %v432, -inf
    %v977 = vsel %vm849, %v434, -inf
    %v978 = vsel %vm850, %v438, -inf
    %v979 = vsel %vm851, %v440, -inf
    %v980 = vsel %vm852, %v252, 0.0
    %v981 = vsel %vm853, %v254, 0.0
    %v982 = vsel %vm854, %v258, 0.0
    %v983 = vsel %vm855, %v260, 0.0
    %v984 = vsel %vm856, %v264, 0.0
    %v985 = vsel %vm857, %v266, 0.0
    %v986 = vsel %vm858, %v270, 0.0
    %v987 = vsel %vm859, %v272, 0.0
    %v988 = vsel %vm860, %v276, 0.0
    %v989 = vsel %vm861, %v278, 0.0
    %v990 = vsel %vm862, %v282, 0.0
    %v991 = vsel %vm863, %v284, 0.0
    %v992 = vsel %vm864, %v288, 0.0
    %v993 = vsel %vm865, %v290, 0.0
    %v994 = vsel %vm866, %v294, 0.0
    %v995 = vsel %vm867, %v296, 0.0
    %v996 = vsel %vm868, %v300, 0.0
    %v997 = vsel %vm869, %v302, 0.0
    %v998 = vsel %vm870, %v306, 0.0
    %v999 = vsel %vm871, %v308, 0.0
    %v1000 = vsel %vm872, %v312, 0.0
    %v1001 = vsel %vm873, %v314, 0.0
    %v1002 = vsel %vm874, %v318, 0.0
    %v1003 = vsel %vm875, %v320, 0.0
    %v1004 = vsel %vm876, %v324, 0.0
    %v1005 = vsel %vm877, %v326, 0.0
    %v1006 = vsel %vm878, %v330, 0.0
    %v1007 = vsel %vm879, %v332, 0.0
    %v1008 = vsel %vm880, %v336, 0.0
    %v1009 = vsel %vm881, %v338, 0.0
    %v1010 = vsel %vm882, %v342, 0.0
    %v1011 = vsel %vm883, %v344, 0.0
    %v1012 = vsel %vm884, %v348, 0.0
    %v1013 = vsel %vm885, %v350, 0.0
    %v1014 = vsel %vm886, %v354, 0.0
    %v1015 = vsel %vm887, %v356, 0.0
    %v1016 = vsel %vm888, %v360, 0.0
    %v1017 = vsel %vm889, %v362, 0.0
    %v1018 = vsel %vm890, %v366, 0.0
    %v1019 = vsel %vm891, %v368, 0.0
    %v1020 = vsel %vm892, %v372, 0.0
    %v1021 = vsel %vm893, %v374, 0.0
    %v1022 = vsel %vm894, %v378, 0.0
    %v1023 = vsel %vm895, %v380, 0.0
    %v1024 = vsel %vm896, %v384, 0.0
    %v1025 = vsel %vm897, %v386, 0.0
    %v1026 = vsel %vm898, %v390, 0.0
    %v1027 = vsel %vm899, %v392, 0.0
    %v1028 = vsel %vm900, %v396, 0.0
    %v1029 = vsel %vm901, %v398, 0.0
    %v1030 = vsel %vm902, %v402, 0.0
    %v1031 = vsel %vm903, %v404, 0.0
    %v1032 = vsel %vm904, %v408, 0.0
    %v1033 = vsel %vm905, %v410, 0.0
    %v1034 = vsel %vm906, %v414, 0.0
    %v1035 = vsel %vm907, %v416, 0.0
    %v1036 = vsel %vm908, %v420, 0.0
    %v1037 = vsel %vm909, %v422, 0.0
    %v1038 = vsel %vm910, %v426, 0.0
    %v1039 = vsel %vm911, %v428, 0.0
    %v1040 = vsel %vm912, %v432, 0.0
    %v1041 = vsel %vm913, %v434, 0.0
    %v1042 = vsel %vm914, %v438, 0.0
    %v1043 = vsel %vm915, %v440, 0.0
    %v1044 = vmax.f32 %v916, %v917
    %1045 = vmax.xlane.f32.xlu0 %v1044
    %v1046 = vpop.xlane.xlu0 %1045
    %v1047 = vmax.f32 %v918, %v919
    %1048 = vmax.xlane.f32.xlu0 %v1047
    %v1049 = vpop.xlane.xlu0 %1048
    %v1050 = vmax.f32 %v920, %v921
    %1051 = vmax.xlane.f32.xlu0 %v1050
    %v1052 = vpop.xlane.xlu0 %1051
    %v1053 = vmax.f32 %v922, %v923
    %1054 = vmax.xlane.f32.xlu0 %v1053
    %v1055 = vpop.xlane.xlu0 %1054
    %v1056 = vmax.f32 %v924, %v925
    %1057 = vmax.xlane.f32.xlu0 %v1056
    %v1058 = vpop.xlane.xlu0 %1057
    %v1059 = vmax.f32 %v926, %v927
    %1060 = vmax.xlane.f32.xlu0 %v1059
    %v1061 = vpop.xlane.xlu0 %1060
    %v1062 = vmax.f32 %v928, %v929
    %1063 = vmax.xlane.f32.xlu0 %v1062
    %v1064 = vpop.xlane.xlu0 %1063
    %v1065 = vmax.f32 %v930, %v931
    %1066 = vmax.xlane.f32.xlu0 %v1065
    %v1067 = vpop.xlane.xlu0 %1066
    %v1068 = vmax.f32 %v932, %v933
    %1069 = vmax.xlane.f32.xlu0 %v1068
    %v1070 = vpop.xlane.xlu0 %1069
    %v1071 = vmax.f32 %v934, %v935
    %1072 = vmax.xlane.f32.xlu0 %v1071
    %v1073 = vpop.xlane.xlu0 %1072
    %v1074 = vmax.f32 %v936, %v937
    %1075 = vmax.xlane.f32.xlu0 %v1074
    %v1076 = vpop.xlane.xlu0 %1075
    %v1077 = vmax.f32 %v938, %v939
    %1078 = vmax.xlane.f32.xlu0 %v1077
    %v1079 = vpop.xlane.xlu0 %1078
    %v1080 = vmax.f32 %v940, %v941
    %1081 = vmax.xlane.f32.xlu0 %v1080
    %v1082 = vpop.xlane.xlu0 %1081
    %v1083 = vmax.f32 %v942, %v943
    %1084 = vmax.xlane.f32.xlu0 %v1083
    %v1085 = vpop.xlane.xlu0 %1084
    %v1086 = vmax.f32 %v944, %v945
    %1087 = vmax.xlane.f32.xlu0 %v1086
    %v1088 = vpop.xlane.xlu0 %1087
    %v1089 = vmax.f32 %v946, %v947
    %1090 = vmax.xlane.f32.xlu0 %v1089
    %v1091 = vpop.xlane.xlu0 %1090
    %v1092 = vmax.f32 %v948, %v949
    %1093 = vmax.xlane.f32.xlu0 %v1092
    %v1094 = vpop.xlane.xlu0 %1093
    %v1095 = vmax.f32 %v950, %v951
    %1096 = vmax.xlane.f32.xlu0 %v1095
    %v1097 = vpop.xlane.xlu0 %1096
    %v1098 = vmax.f32 %v952, %v953
    %1099 = vmax.xlane.f32.xlu0 %v1098
    %v1100 = vpop.xlane.xlu0 %1099
    %v1101 = vmax.f32 %v954, %v955
    %1102 = vmax.xlane.f32.xlu0 %v1101
    %v1103 = vpop.xlane.xlu0 %1102
    %v1104 = vmax.f32 %v956, %v957
    %1105 = vmax.xlane.f32.xlu0 %v1104
    %v1106 = vpop.xlane.xlu0 %1105
    %v1107 = vmax.f32 %v958, %v959
    %1108 = vmax.xlane.f32.xlu0 %v1107
    %v1109 = vpop.xlane.xlu0 %1108
    %v1110 = vmax.f32 %v960, %v961
    %1111 = vmax.xlane.f32.xlu0 %v1110
    %v1112 = vpop.xlane.xlu0 %1111
    %v1113 = vmax.f32 %v962, %v963
    %1114 = vmax.xlane.f32.xlu0 %v1113
    %v1115 = vpop.xlane.xlu0 %1114
    %v1116 = vmax.f32 %v964, %v965
    %1117 = vmax.xlane.f32.xlu0 %v1116
    %v1118 = vpop.xlane.xlu0 %1117
    %v1119 = vmax.f32 %v966, %v967
    %1120 = vmax.xlane.f32.xlu0 %v1119
    %v1121 = vpop.xlane.xlu0 %1120
    %v1122 = vmax.f32 %v968, %v969
    %1123 = vmax.xlane.f32.xlu0 %v1122
    %v1124 = vpop.xlane.xlu0 %1123
    %v1125 = vmax.f32 %v970, %v971
    %1126 = vmax.xlane.f32.xlu0 %v1125
    %v1127 = vpop.xlane.xlu0 %1126
    %v1128 = vmax.f32 %v972, %v973
    %1129 = vmax.xlane.f32.xlu0 %v1128
    %v1130 = vpop.xlane.xlu0 %1129
    %v1131 = vmax.f32 %v974, %v975
    %1132 = vmax.xlane.f32.xlu0 %v1131
    %v1133 = vpop.xlane.xlu0 %1132
    %v1134 = vmax.f32 %v976, %v977
    %1135 = vmax.xlane.f32.xlu0 %v1134
    %v1136 = vpop.xlane.xlu0 %1135
    %v1137 = vmax.f32 %v978, %v979
    %1138 = vmax.xlane.f32.xlu0 %v1137
    %v1139 = vpop.xlane.xlu0 %1138
    %v1140 = vld [vmem:[#allocation2] sm:$0xff]
    %v1141 = vld [vmem:[#allocation2 + $0x8] sm:$0xff]
    %v1142 = vld [vmem:[#allocation2 + $0x10] sm:$0xff]
    %v1143 = vld [vmem:[#allocation2 + $0x18] sm:$0xff]
    %v1144 = vld [vmem:[#allocation2 + $0x20] sm:$0xff]
    %v1145 = vld [vmem:[#allocation2 + $0x28] sm:$0xff]
    %v1146 = vld [vmem:[#allocation2 + $0x30] sm:$0xff]
    %v1147 = vld [vmem:[#allocation2 + $0x38] sm:$0xff]
    %v1148 = vld [vmem:[#allocation2 + $0x40] sm:$0xff]
    %v1149 = vld [vmem:[#allocation2 + $0x48] sm:$0xff]
    %v1150 = vld [vmem:[#allocation2 + $0x50] sm:$0xff]
    %v1151 = vld [vmem:[#allocation2 + $0x58] sm:$0xff]
    %v1152 = vld [vmem:[#allocation2 + $0x60] sm:$0xff]
    %v1153 = vld [vmem:[#allocation2 + $0x68] sm:$0xff]
    %v1154 = vld [vmem:[#allocation2 + $0x70] sm:$0xff]
    %v1155 = vld [vmem:[#allocation2 + $0x78] sm:$0xff]
    %v1156 = vld [vmem:[#allocation2 + $0x80] sm:$0xff]
    %v1157 = vld [vmem:[#allocation2 + $0x88] sm:$0xff]
    %v1158 = vld [vmem:[#allocation2 + $0x90] sm:$0xff]
    %v1159 = vld [vmem:[#allocation2 + $0x98] sm:$0xff]
    %v1160 = vld [vmem:[#allocation2 + $0xa0] sm:$0xff]
    %v1161 = vld [vmem:[#allocation2 + $0xa8] sm:$0xff]
    %v1162 = vld [vmem:[#allocation2 + $0xb0] sm:$0xff]
    %v1163 = vld [vmem:[#allocation2 + $0xb8] sm:$0xff]
    %v1164 = vld [vmem:[#allocation2 + $0xc0] sm:$0xff]
    %v1165 = vld [vmem:[#allocation2 + $0xc8] sm:$0xff]
    %v1166 = vld [vmem:[#allocation2 + $0xd0] sm:$0xff]
    %v1167 = vld [vmem:[#allocation2 + $0xd8] sm:$0xff]
    %v1168 = vld [vmem:[#allocation2 + $0xe0] sm:$0xff]
    %v1169 = vld [vmem:[#allocation2 + $0xe8] sm:$0xff]
    %v1170 = vld [vmem:[#allocation2 + $0xf0] sm:$0xff]
    %v1171 = vld [vmem:[#allocation2 + $0xf8] sm:$0xff]
    %v1172 = vmax.f32 %v1140, %v1046
    %v1173 = vmax.f32 %v1141, %v1049
    %v1174 = vmax.f32 %v1142, %v1052
    %v1175 = vmax.f32 %v1143, %v1055
    %v1176 = vmax.f32 %v1144, %v1058
    %v1177 = vmax.f32 %v1145, %v1061
    %v1178 = vmax.f32 %v1146, %v1064
    %v1179 = vmax.f32 %v1147, %v1067
    %v1180 = vmax.f32 %v1148, %v1070
    %v1181 = vmax.f32 %v1149, %v1073
    %v1182 = vmax.f32 %v1150, %v1076
    %v1183 = vmax.f32 %v1151, %v1079
    %v1184 = vmax.f32 %v1152, %v1082
    %v1185 = vmax.f32 %v1153, %v1085
    %v1186 = vmax.f32 %v1154, %v1088
    %v1187 = vmax.f32 %v1155, %v1091
    %v1188 = vmax.f32 %v1156, %v1094
    %v1189 = vmax.f32 %v1157, %v1097
    %v1190 = vmax.f32 %v1158, %v1100
    %v1191 = vmax.f32 %v1159, %v1103
    %v1192 = vmax.f32 %v1160, %v1106
    %v1193 = vmax.f32 %v1161, %v1109
    %v1194 = vmax.f32 %v1162, %v1112
    %v1195 = vmax.f32 %v1163, %v1115
    %v1196 = vmax.f32 %v1164, %v1118
    %v1197 = vmax.f32 %v1165, %v1121
    %v1198 = vmax.f32 %v1166, %v1124
    %v1199 = vmax.f32 %v1167, %v1127
    %v1200 = vmax.f32 %v1168, %v1130
    %v1201 = vmax.f32 %v1169, %v1133
    %v1202 = vmax.f32 %v1170, %v1136
    %v1203 = vmax.f32 %v1171, %v1139
    %v1204 = vld [vmem:[#allocation3] sm:$0xff]
    %v1205 = vld [vmem:[#allocation3 + $0x8] sm:$0xff]
    %v1206 = vld [vmem:[#allocation3 + $0x10] sm:$0xff]
    %v1207 = vld [vmem:[#allocation3 + $0x18] sm:$0xff]
    %v1208 = vld [vmem:[#allocation3 + $0x20] sm:$0xff]
    %v1209 = vld [vmem:[#allocation3 + $0x28] sm:$0xff]
    %v1210 = vld [vmem:[#allocation3 + $0x30] sm:$0xff]
    %v1211 = vld [vmem:[#allocation3 + $0x38] sm:$0xff]
    %v1212 = vld [vmem:[#allocation3 + $0x40] sm:$0xff]
    %v1213 = vld [vmem:[#allocation3 + $0x48] sm:$0xff]
    %v1214 = vld [vmem:[#allocation3 + $0x50] sm:$0xff]
    %v1215 = vld [vmem:[#allocation3 + $0x58] sm:$0xff]
    %v1216 = vld [vmem:[#allocation3 + $0x60] sm:$0xff]
    %v1217 = vld [vmem:[#allocation3 + $0x68] sm:$0xff]
    %v1218 = vld [vmem:[#allocation3 + $0x70] sm:$0xff]
    %v1219 = vld [vmem:[#allocation3 + $0x78] sm:$0xff]
    %v1220 = vld [vmem:[#allocation3 + $0x80] sm:$0xff]
    %v1221 = vld [vmem:[#allocation3 + $0x88] sm:$0xff]
    %v1222 = vld [vmem:[#allocation3 + $0x90] sm:$0xff]
    %v1223 = vld [vmem:[#allocation3 + $0x98] sm:$0xff]
    %v1224 = vld [vmem:[#allocation3 + $0xa0] sm:$0xff]
    %v1225 = vld [vmem:[#allocation3 + $0xa8] sm:$0xff]
    %v1226 = vld [vmem:[#allocation3 + $0xb0] sm:$0xff]
    %v1227 = vld [vmem:[#allocation3 + $0xb8] sm:$0xff]
    %v1228 = vld [vmem:[#allocation3 + $0xc0] sm:$0xff]
    %v1229 = vld [vmem:[#allocation3 + $0xc8] sm:$0xff]
    %v1230 = vld [vmem:[#allocation3 + $0xd0] sm:$0xff]
    %v1231 = vld [vmem:[#allocation3 + $0xd8] sm:$0xff]
    %v1232 = vld [vmem:[#allocation3 + $0xe0] sm:$0xff]
    %v1233 = vld [vmem:[#allocation3 + $0xe8] sm:$0xff]
    %v1234 = vld [vmem:[#allocation3 + $0xf0] sm:$0xff]
    %v1235 = vld [vmem:[#allocation3 + $0xf8] sm:$0xff]
    %v1236 = vsub.f32 %v1140, %v1172
    %v1237 = vsub.f32 %v1141, %v1173
    %v1238 = vsub.f32 %v1142, %v1174
    %v1239 = vsub.f32 %v1143, %v1175
    %v1240 = vsub.f32 %v1144, %v1176
    %v1241 = vsub.f32 %v1145, %v1177
    %v1242 = vsub.f32 %v1146, %v1178
    %v1243 = vsub.f32 %v1147, %v1179
    %v1244 = vsub.f32 %v1148, %v1180
    %v1245 = vsub.f32 %v1149, %v1181
    %v1246 = vsub.f32 %v1150, %v1182
    %v1247 = vsub.f32 %v1151, %v1183
    %v1248 = vsub.f32 %v1152, %v1184
    %v1249 = vsub.f32 %v1153, %v1185
    %v1250 = vsub.f32 %v1154, %v1186
    %v1251 = vsub.f32 %v1155, %v1187
    %v1252 = vsub.f32 %v1156, %v1188
    %v1253 = vsub.f32 %v1157, %v1189
    %v1254 = vsub.f32 %v1158, %v1190
    %v1255 = vsub.f32 %v1159, %v1191
    %v1256 = vsub.f32 %v1160, %v1192
    %v1257 = vsub.f32 %v1161, %v1193
    %v1258 = vsub.f32 %v1162, %v1194
    %v1259 = vsub.f32 %v1163, %v1195
    %v1260 = vsub.f32 %v1164, %v1196
    %v1261 = vsub.f32 %v1165, %v1197
    %v1262 = vsub.f32 %v1166, %v1198
    %v1263 = vsub.f32 %v1167, %v1199
    %v1264 = vsub.f32 %v1168, %v1200
    %v1265 = vsub.f32 %v1169, %v1201
    %v1266 = vsub.f32 %v1170, %v1202
    %v1267 = vsub.f32 %v1171, %v1203
    %v1268 = vmul.f32 %v1236, 1.442695
    %v1269 = vpow.pop %v1268
    %v1270 = vmul.f32 %v1237, 1.442695
    %v1271 = vpow.pop %v1270
    %v1272 = vmul.f32 %v1238, 1.442695
    %v1273 = vpow.pop %v1272
    %v1274 = vmul.f32 %v1239, 1.442695
    %v1275 = vpow.pop %v1274
    %v1276 = vmul.f32 %v1240, 1.442695
    %v1277 = vpow.pop %v1276
    %v1278 = vmul.f32 %v1241, 1.442695
    %v1279 = vpow.pop %v1278
    %v1280 = vmul.f32 %v1242, 1.442695
    %v1281 = vpow.pop %v1280
    %v1282 = vmul.f32 %v1243, 1.442695
    %v1283 = vpow.pop %v1282
    %v1284 = vmul.f32 %v1244, 1.442695
    %v1285 = vpow.pop %v1284
    %v1286 = vmul.f32 %v1245, 1.442695
    %v1287 = vpow.pop %v1286
    %v1288 = vmul.f32 %v1246, 1.442695
    %v1289 = vpow.pop %v1288
    %v1290 = vmul.f32 %v1247, 1.442695
    %v1291 = vpow.pop %v1290
    %v1292 = vmul.f32 %v1248, 1.442695
    %v1293 = vpow.pop %v1292
    %v1294 = vmul.f32 %v1249, 1.442695
    %v1295 = vpow.pop %v1294
    %v1296 = vmul.f32 %v1250, 1.442695
    %v1297 = vpow.pop %v1296
    %v1298 = vmul.f32 %v1251, 1.442695
    %v1299 = vpow.pop %v1298
    %v1300 = vmul.f32 %v1252, 1.442695
    %v1301 = vpow.pop %v1300
    %v1302 = vmul.f32 %v1253, 1.442695
    %v1303 = vpow.pop %v1302
    %v1304 = vmul.f32 %v1254, 1.442695
    %v1305 = vpow.pop %v1304
    %v1306 = vmul.f32 %v1255, 1.442695
    %v1307 = vpow.pop %v1306
    %v1308 = vmul.f32 %v1256, 1.442695
    %v1309 = vpow.pop %v1308
    %v1310 = vmul.f32 %v1257, 1.442695
    %v1311 = vpow.pop %v1310
    %v1312 = vmul.f32 %v1258, 1.442695
    %v1313 = vpow.pop %v1312
    %v1314 = vmul.f32 %v1259, 1.442695
    %v1315 = vpow.pop %v1314
    %v1316 = vmul.f32 %v1260, 1.442695
    %v1317 = vpow.pop %v1316
    %v1318 = vmul.f32 %v1261, 1.442695
    %v1319 = vpow.pop %v1318
    %v1320 = vmul.f32 %v1262, 1.442695
    %v1321 = vpow.pop %v1320
    %v1322 = vmul.f32 %v1263, 1.442695
    %v1323 = vpow.pop %v1322
    %v1324 = vmul.f32 %v1264, 1.442695
    %v1325 = vpow.pop %v1324
    %v1326 = vmul.f32 %v1265, 1.442695
    %v1327 = vpow.pop %v1326
    %v1328 = vmul.f32 %v1266, 1.442695
    %v1329 = vpow.pop %v1328
    %v1330 = vmul.f32 %v1267, 1.442695
    %v1331 = vpow.pop %v1330
    %v1332 = vmul.f32 %v1204, %v1269
    %v1333 = vmul.f32 %v1205, %v1271
    %v1334 = vmul.f32 %v1206, %v1273
    %v1335 = vmul.f32 %v1207, %v1275
    %v1336 = vmul.f32 %v1208, %v1277
    %v1337 = vmul.f32 %v1209, %v1279
    %v1338 = vmul.f32 %v1210, %v1281
    %v1339 = vmul.f32 %v1211, %v1283
    %v1340 = vmul.f32 %v1212, %v1285
    %v1341 = vmul.f32 %v1213, %v1287
    %v1342 = vmul.f32 %v1214, %v1289
    %v1343 = vmul.f32 %v1215, %v1291
    %v1344 = vmul.f32 %v1216, %v1293
    %v1345 = vmul.f32 %v1217, %v1295
    %v1346 = vmul.f32 %v1218, %v1297
    %v1347 = vmul.f32 %v1219, %v1299
    %v1348 = vmul.f32 %v1220, %v1301
    %v1349 = vmul.f32 %v1221, %v1303
    %v1350 = vmul.f32 %v1222, %v1305
    %v1351 = vmul.f32 %v1223, %v1307
    %v1352 = vmul.f32 %v1224, %v1309
    %v1353 = vmul.f32 %v1225, %v1311
    %v1354 = vmul.f32 %v1226, %v1313
    %v1355 = vmul.f32 %v1227, %v1315
    %v1356 = vmul.f32 %v1228, %v1317
    %v1357 = vmul.f32 %v1229, %v1319
    %v1358 = vmul.f32 %v1230, %v1321
    %v1359 = vmul.f32 %v1231, %v1323
    %v1360 = vmul.f32 %v1232, %v1325
    %v1361 = vmul.f32 %v1233, %v1327
    %v1362 = vmul.f32 %v1234, %v1329
    %v1363 = vmul.f32 %v1235, %v1331
    %1365 = vset.pattern.permute.xlu0 0
    %1366 = vperm.xlu0 %1365, %v1172
    %v1367 = vpop.permute.xlu0 %1366
    %1370 = vset.pattern.permute.xlu0 0
    %1371 = vperm.xlu0 %1370, %v1173
    %v1372 = vpop.permute.xlu0 %1371
    %1375 = vset.pattern.permute.xlu0 0
    %1376 = vperm.xlu0 %1375, %v1174
    %v1377 = vpop.permute.xlu0 %1376
    %1380 = vset.pattern.permute.xlu0 0
    %1381 = vperm.xlu0 %1380, %v1175
    %v1382 = vpop.permute.xlu0 %1381
    %1385 = vset.pattern.permute.xlu0 0
    %1386 = vperm.xlu0 %1385, %v1176
    %v1387 = vpop.permute.xlu0 %1386
    %1390 = vset.pattern.permute.xlu0 0
    %1391 = vperm.xlu0 %1390, %v1177
    %v1392 = vpop.permute.xlu0 %1391
    %1395 = vset.pattern.permute.xlu0 0
    %1396 = vperm.xlu0 %1395, %v1178
    %v1397 = vpop.permute.xlu0 %1396
    %1400 = vset.pattern.permute.xlu0 0
    %1401 = vperm.xlu0 %1400, %v1179
    %v1402 = vpop.permute.xlu0 %1401
    %1405 = vset.pattern.permute.xlu0 0
    %1406 = vperm.xlu0 %1405, %v1180
    %v1407 = vpop.permute.xlu0 %1406
    %1410 = vset.pattern.permute.xlu0 0
    %1411 = vperm.xlu0 %1410, %v1181
    %v1412 = vpop.permute.xlu0 %1411
    %1415 = vset.pattern.permute.xlu0 0
    %1416 = vperm.xlu0 %1415, %v1182
    %v1417 = vpop.permute.xlu0 %1416
    %1420 = vset.pattern.permute.xlu0 0
    %1421 = vperm.xlu0 %1420, %v1183
    %v1422 = vpop.permute.xlu0 %1421
    %1425 = vset.pattern.permute.xlu0 0
    %1426 = vperm.xlu0 %1425, %v1184
    %v1427 = vpop.permute.xlu0 %1426
    %1430 = vset.pattern.permute.xlu0 0
    %1431 = vperm.xlu0 %1430, %v1185
    %v1432 = vpop.permute.xlu0 %1431
    %1435 = vset.pattern.permute.xlu0 0
    %1436 = vperm.xlu0 %1435, %v1186
    %v1437 = vpop.permute.xlu0 %1436
    %1440 = vset.pattern.permute.xlu0 0
    %1441 = vperm.xlu0 %1440, %v1187
    %v1442 = vpop.permute.xlu0 %1441
    %1445 = vset.pattern.permute.xlu0 0
    %1446 = vperm.xlu0 %1445, %v1188
    %v1447 = vpop.permute.xlu0 %1446
    %1450 = vset.pattern.permute.xlu0 0
    %1451 = vperm.xlu0 %1450, %v1189
    %v1452 = vpop.permute.xlu0 %1451
    %1455 = vset.pattern.permute.xlu0 0
    %1456 = vperm.xlu0 %1455, %v1190
    %v1457 = vpop.permute.xlu0 %1456
    %1460 = vset.pattern.permute.xlu0 0
    %1461 = vperm.xlu0 %1460, %v1191
    %v1462 = vpop.permute.xlu0 %1461
    %1465 = vset.pattern.permute.xlu0 0
    %1466 = vperm.xlu0 %1465, %v1192
    %v1467 = vpop.permute.xlu0 %1466
    %1470 = vset.pattern.permute.xlu0 0
    %1471 = vperm.xlu0 %1470, %v1193
    %v1472 = vpop.permute.xlu0 %1471
    %1475 = vset.pattern.permute.xlu0 0
    %1476 = vperm.xlu0 %1475, %v1194
    %v1477 = vpop.permute.xlu0 %1476
    %1480 = vset.pattern.permute.xlu0 0
    %1481 = vperm.xlu0 %1480, %v1195
    %v1482 = vpop.permute.xlu0 %1481
    %1485 = vset.pattern.permute.xlu0 0
    %1486 = vperm.xlu0 %1485, %v1196
    %v1487 = vpop.permute.xlu0 %1486
    %1490 = vset.pattern.permute.xlu0 0
    %1491 = vperm.xlu0 %1490, %v1197
    %v1492 = vpop.permute.xlu0 %1491
    %1495 = vset.pattern.permute.xlu0 0
    %1496 = vperm.xlu0 %1495, %v1198
    %v1497 = vpop.permute.xlu0 %1496
    %1500 = vset.pattern.permute.xlu0 0
    %1501 = vperm.xlu0 %1500, %v1199
    %v1502 = vpop.permute.xlu0 %1501
    %1505 = vset.pattern.permute.xlu0 0
    %1506 = vperm.xlu0 %1505, %v1200
    %v1507 = vpop.permute.xlu0 %1506
    %1510 = vset.pattern.permute.xlu0 0
    %1511 = vperm.xlu0 %1510, %v1201
    %v1512 = vpop.permute.xlu0 %1511
    %1515 = vset.pattern.permute.xlu0 0
    %1516 = vperm.xlu0 %1515, %v1202
    %v1517 = vpop.permute.xlu0 %1516
    %1520 = vset.pattern.permute.xlu0 0
    %1521 = vperm.xlu0 %1520, %v1203
    %v1522 = vpop.permute.xlu0 %1521
    %v1524 = vsub.f32 %v916, %v1367
    %v1525 = vsub.f32 %v917, %v1367
    %v1526 = vsub.f32 %v918, %v1372
    %v1527 = vsub.f32 %v919, %v1372
    %v1528 = vsub.f32 %v920, %v1377
    %v1529 = vsub.f32 %v921, %v1377
    %v1530 = vsub.f32 %v922, %v1382
    %v1531 = vsub.f32 %v923, %v1382
    %v1532 = vsub.f32 %v924, %v1387
    %v1533 = vsub.f32 %v925, %v1387
    %v1534 = vsub.f32 %v926, %v1392
    %v1535 = vsub.f32 %v927, %v1392
    %v1536 = vsub.f32 %v928, %v1397
    %v1537 = vsub.f32 %v929, %v1397
    %v1538 = vsub.f32 %v930, %v1402
    %v1539 = vsub.f32 %v931, %v1402
    %v1540 = vsub.f32 %v932, %v1407
    %v1541 = vsub.f32 %v933, %v1407
    %v1542 = vsub.f32 %v934, %v1412
    %v1543 = vsub.f32 %v935, %v1412
    %v1544 = vsub.f32 %v936, %v1417
    %v1545 = vsub.f32 %v937, %v1417
    %v1546 = vsub.f32 %v938, %v1422
    %v1547 = vsub.f32 %v939, %v1422
    %v1548 = vsub.f32 %v940, %v1427
    %v1549 = vsub.f32 %v941, %v1427
    %v1550 = vsub.f32 %v942, %v1432
    %v1551 = vsub.f32 %v943, %v1432
    %v1552 = vsub.f32 %v944, %v1437
    %v1553 = vsub.f32 %v945, %v1437
    %v1554 = vsub.f32 %v946, %v1442
    %v1555 = vsub.f32 %v947, %v1442
    %v1556 = vsub.f32 %v948, %v1447
    %v1557 = vsub.f32 %v949, %v1447
    %v1558 = vsub.f32 %v950, %v1452
    %v1559 = vsub.f32 %v951, %v1452
    %v1560 = vsub.f32 %v952, %v1457
    %v1561 = vsub.f32 %v953, %v1457
    %v1562 = vsub.f32 %v954, %v1462
    %v1563 = vsub.f32 %v955, %v1462
    %v1564 = vsub.f32 %v956, %v1467
    %v1565 = vsub.f32 %v957, %v1467
    %v1566 = vsub.f32 %v958, %v1472
    %v1567 = vsub.f32 %v959, %v1472
    %v1568 = vsub.f32 %v960, %v1477
    %v1569 = vsub.f32 %v961, %v1477
    %v1570 = vsub.f32 %v962, %v1482
    %v1571 = vsub.f32 %v963, %v1482
    %v1572 = vsub.f32 %v964, %v1487
    %v1573 = vsub.f32 %v965, %v1487
    %v1574 = vsub.f32 %v966, %v1492
    %v1575 = vsub.f32 %v967, %v1492
    %v1576 = vsub.f32 %v968, %v1497
    %v1577 = vsub.f32 %v969, %v1497
    %v1578 = vsub.f32 %v970, %v1502
    %v1579 = vsub.f32 %v971, %v1502
    %v1580 = vsub.f32 %v972, %v1507
    %v1581 = vsub.f32 %v973, %v1507
    %v1582 = vsub.f32 %v974, %v1512
    %v1583 = vsub.f32 %v975, %v1512
    %v1584 = vsub.f32 %v976, %v1517
    %v1585 = vsub.f32 %v977, %v1517
    %v1586 = vsub.f32 %v978, %v1522
    %v1587 = vsub.f32 %v979, %v1522
    %v1588 = vmul.f32 %v1524, 1.442695
    %v1589 = vpow.pop %v1588
    %v1590 = vmul.f32 %v1525, 1.442695
    %v1591 = vpow.pop %v1590
    %v1592 = vmul.f32 %v1526, 1.442695
    %v1593 = vpow.pop %v1592
    %v1594 = vmul.f32 %v1527, 1.442695
    %v1595 = vpow.pop %v1594
    %v1596 = vmul.f32 %v1528, 1.442695
    %v1597 = vpow.pop %v1596
    %v1598 = vmul.f32 %v1529, 1.442695
    %v1599 = vpow.pop %v1598
    %v1600 = vmul.f32 %v1530, 1.442695
    %v1601 = vpow.pop %v1600
    %v1602 = vmul.f32 %v1531, 1.442695
    %v1603 = vpow.pop %v1602
    %v1604 = vmul.f32 %v1532, 1.442695
    %v1605 = vpow.pop %v1604
    %v1606 = vmul.f32 %v1533, 1.442695
    %v1607 = vpow.pop %v1606
    %v1608 = vmul.f32 %v1534, 1.442695
    %v1609 = vpow.pop %v1608
    %v1610 = vmul.f32 %v1535, 1.442695
    %v1611 = vpow.pop %v1610
    %v1612 = vmul.f32 %v1536, 1.442695
    %v1613 = vpow.pop %v1612
    %v1614 = vmul.f32 %v1537, 1.442695
    %v1615 = vpow.pop %v1614
    %v1616 = vmul.f32 %v1538, 1.442695
    %v1617 = vpow.pop %v1616
    %v1618 = vmul.f32 %v1539, 1.442695
    %v1619 = vpow.pop %v1618
    %v1620 = vmul.f32 %v1540, 1.442695
    %v1621 = vpow.pop %v1620
    %v1622 = vmul.f32 %v1541, 1.442695
    %v1623 = vpow.pop %v1622
    %v1624 = vmul.f32 %v1542, 1.442695
    %v1625 = vpow.pop %v1624
    %v1626 = vmul.f32 %v1543, 1.442695
    %v1627 = vpow.pop %v1626
    %v1628 = vmul.f32 %v1544, 1.442695
    %v1629 = vpow.pop %v1628
    %v1630 = vmul.f32 %v1545, 1.442695
    %v1631 = vpow.pop %v1630
    %v1632 = vmul.f32 %v1546, 1.442695
    %v1633 = vpow.pop %v1632
    %v1634 = vmul.f32 %v1547, 1.442695
    %v1635 = vpow.pop %v1634
    %v1636 = vmul.f32 %v1548, 1.442695
    %v1637 = vpow.pop %v1636
    %v1638 = vmul.f32 %v1549, 1.442695
    %v1639 = vpow.pop %v1638
    %v1640 = vmul.f32 %v1550, 1.442695
    %v1641 = vpow.pop %v1640
    %v1642 = vmul.f32 %v1551, 1.442695
    %v1643 = vpow.pop %v1642
    %v1644 = vmul.f32 %v1552, 1.442695
    %v1645 = vpow.pop %v1644
    %v1646 = vmul.f32 %v1553, 1.442695
    %v1647 = vpow.pop %v1646
    %v1648 = vmul.f32 %v1554, 1.442695
    %v1649 = vpow.pop %v1648
    %v1650 = vmul.f32 %v1555, 1.442695
    %v1651 = vpow.pop %v1650
    %v1652 = vmul.f32 %v1556, 1.442695
    %v1653 = vpow.pop %v1652
    %v1654 = vmul.f32 %v1557, 1.442695
    %v1655 = vpow.pop %v1654
    %v1656 = vmul.f32 %v1558, 1.442695
    %v1657 = vpow.pop %v1656
    %v1658 = vmul.f32 %v1559, 1.442695
    %v1659 = vpow.pop %v1658
    %v1660 = vmul.f32 %v1560, 1.442695
    %v1661 = vpow.pop %v1660
    %v1662 = vmul.f32 %v1561, 1.442695
    %v1663 = vpow.pop %v1662
    %v1664 = vmul.f32 %v1562, 1.442695
    %v1665 = vpow.pop %v1664
    %v1666 = vmul.f32 %v1563, 1.442695
    %v1667 = vpow.pop %v1666
    %v1668 = vmul.f32 %v1564, 1.442695
    %v1669 = vpow.pop %v1668
    %v1670 = vmul.f32 %v1565, 1.442695
    %v1671 = vpow.pop %v1670
    %v1672 = vmul.f32 %v1566, 1.442695
    %v1673 = vpow.pop %v1672
    %v1674 = vmul.f32 %v1567, 1.442695
    %v1675 = vpow.pop %v1674
    %v1676 = vmul.f32 %v1568, 1.442695
    %v1677 = vpow.pop %v1676
    %v1678 = vmul.f32 %v1569, 1.442695
    %v1679 = vpow.pop %v1678
    %v1680 = vmul.f32 %v1570, 1.442695
    %v1681 = vpow.pop %v1680
    %v1682 = vmul.f32 %v1571, 1.442695
    %v1683 = vpow.pop %v1682
    %v1684 = vmul.f32 %v1572, 1.442695
    %v1685 = vpow.pop %v1684
    %v1686 = vmul.f32 %v1573, 1.442695
    %v1687 = vpow.pop %v1686
    %v1688 = vmul.f32 %v1574, 1.442695
    %v1689 = vpow.pop %v1688
    %v1690 = vmul.f32 %v1575, 1.442695
    %v1691 = vpow.pop %v1690
    %v1692 = vmul.f32 %v1576, 1.442695
    %v1693 = vpow.pop %v1692
    %v1694 = vmul.f32 %v1577, 1.442695
    %v1695 = vpow.pop %v1694
    %v1696 = vmul.f32 %v1578, 1.442695
    %v1697 = vpow.pop %v1696
    %v1698 = vmul.f32 %v1579, 1.442695
    %v1699 = vpow.pop %v1698
    %v1700 = vmul.f32 %v1580, 1.442695
    %v1701 = vpow.pop %v1700
    %v1702 = vmul.f32 %v1581, 1.442695
    %v1703 = vpow.pop %v1702
    %v1704 = vmul.f32 %v1582, 1.442695
    %v1705 = vpow.pop %v1704
    %v1706 = vmul.f32 %v1583, 1.442695
    %v1707 = vpow.pop %v1706
    %v1708 = vmul.f32 %v1584, 1.442695
    %v1709 = vpow.pop %v1708
    %v1710 = vmul.f32 %v1585, 1.442695
    %v1711 = vpow.pop %v1710
    %v1712 = vmul.f32 %v1586, 1.442695
    %v1713 = vpow.pop %v1712
    %v1714 = vmul.f32 %v1587, 1.442695
    %v1715 = vpow.pop %v1714
    %v1716 = vadd.f32 %v1589, %v1591
    %1717 = vadd.xlane.f32.xlu0 %v1716
    %v1718 = vpop.xlane.xlu0 %1717
    %v1719 = vadd.f32 %v1593, %v1595
    %1720 = vadd.xlane.f32.xlu0 %v1719
    %v1721 = vpop.xlane.xlu0 %1720
    %v1722 = vadd.f32 %v1597, %v1599
    %1723 = vadd.xlane.f32.xlu0 %v1722
    %v1724 = vpop.xlane.xlu0 %1723
    %v1725 = vadd.f32 %v1601, %v1603
    %1726 = vadd.xlane.f32.xlu0 %v1725
    %v1727 = vpop.xlane.xlu0 %1726
    %v1728 = vadd.f32 %v1605, %v1607
    %1729 = vadd.xlane.f32.xlu0 %v1728
    %v1730 = vpop.xlane.xlu0 %1729
    %v1731 = vadd.f32 %v1609, %v1611
    %1732 = vadd.xlane.f32.xlu0 %v1731
    %v1733 = vpop.xlane.xlu0 %1732
    %v1734 = vadd.f32 %v1613, %v1615
    %1735 = vadd.xlane.f32.xlu0 %v1734
    %v1736 = vpop.xlane.xlu0 %1735
    %v1737 = vadd.f32 %v1617, %v1619
    %1738 = vadd.xlane.f32.xlu0 %v1737
    %v1739 = vpop.xlane.xlu0 %1738
    %v1740 = vadd.f32 %v1621, %v1623
    %1741 = vadd.xlane.f32.xlu0 %v1740
    %v1742 = vpop.xlane.xlu0 %1741
    %v1743 = vadd.f32 %v1625, %v1627
    %1744 = vadd.xlane.f32.xlu0 %v1743
    %v1745 = vpop.xlane.xlu0 %1744
    %v1746 = vadd.f32 %v1629, %v1631
    %1747 = vadd.xlane.f32.xlu0 %v1746
    %v1748 = vpop.xlane.xlu0 %1747
    %v1749 = vadd.f32 %v1633, %v1635
    %1750 = vadd.xlane.f32.xlu0 %v1749
    %v1751 = vpop.xlane.xlu0 %1750
    %v1752 = vadd.f32 %v1637, %v1639
    %1753 = vadd.xlane.f32.xlu0 %v1752
    %v1754 = vpop.xlane.xlu0 %1753
    %v1755 = vadd.f32 %v1641, %v1643
    %1756 = vadd.xlane.f32.xlu0 %v1755
    %v1757 = vpop.xlane.xlu0 %1756
    %v1758 = vadd.f32 %v1645, %v1647
    %1759 = vadd.xlane.f32.xlu0 %v1758
    %v1760 = vpop.xlane.xlu0 %1759
    %v1761 = vadd.f32 %v1649, %v1651
    %1762 = vadd.xlane.f32.xlu0 %v1761
    %v1763 = vpop.xlane.xlu0 %1762
    %v1764 = vadd.f32 %v1653, %v1655
    %1765 = vadd.xlane.f32.xlu0 %v1764
    %v1766 = vpop.xlane.xlu0 %1765
    %v1767 = vadd.f32 %v1657, %v1659
    %1768 = vadd.xlane.f32.xlu0 %v1767
    %v1769 = vpop.xlane.xlu0 %1768
    %v1770 = vadd.f32 %v1661, %v1663
    %1771 = vadd.xlane.f32.xlu0 %v1770
    %v1772 = vpop.xlane.xlu0 %1771
    %v1773 = vadd.f32 %v1665, %v1667
    %1774 = vadd.xlane.f32.xlu0 %v1773
    %v1775 = vpop.xlane.xlu0 %1774
    %v1776 = vadd.f32 %v1669, %v1671
    %1777 = vadd.xlane.f32.xlu0 %v1776
    %v1778 = vpop.xlane.xlu0 %1777
    %v1779 = vadd.f32 %v1673, %v1675
    %1780 = vadd.xlane.f32.xlu0 %v1779
    %v1781 = vpop.xlane.xlu0 %1780
    %v1782 = vadd.f32 %v1677, %v1679
    %1783 = vadd.xlane.f32.xlu0 %v1782
    %v1784 = vpop.xlane.xlu0 %1783
    %v1785 = vadd.f32 %v1681, %v1683
    %1786 = vadd.xlane.f32.xlu0 %v1785
    %v1787 = vpop.xlane.xlu0 %1786
    %v1788 = vadd.f32 %v1685, %v1687
    %1789 = vadd.xlane.f32.xlu0 %v1788
    %v1790 = vpop.xlane.xlu0 %1789
    %v1791 = vadd.f32 %v1689, %v1691
    %1792 = vadd.xlane.f32.xlu0 %v1791
    %v1793 = vpop.xlane.xlu0 %1792
    %v1794 = vadd.f32 %v1693, %v1695
    %1795 = vadd.xlane.f32.xlu0 %v1794
    %v1796 = vpop.xlane.xlu0 %1795
    %v1797 = vadd.f32 %v1697, %v1699
    %1798 = vadd.xlane.f32.xlu0 %v1797
    %v1799 = vpop.xlane.xlu0 %1798
    %v1800 = vadd.f32 %v1701, %v1703
    %1801 = vadd.xlane.f32.xlu0 %v1800
    %v1802 = vpop.xlane.xlu0 %1801
    %v1803 = vadd.f32 %v1705, %v1707
    %1804 = vadd.xlane.f32.xlu0 %v1803
    %v1805 = vpop.xlane.xlu0 %1804
    %v1806 = vadd.f32 %v1709, %v1711
    %1807 = vadd.xlane.f32.xlu0 %v1806
    %v1808 = vpop.xlane.xlu0 %1807
    %v1809 = vadd.f32 %v1713, %v1715
    %1810 = vadd.xlane.f32.xlu0 %v1809
    %v1811 = vpop.xlane.xlu0 %1810
    %v1812 = vadd.f32 %v1332, %v1718
    %v1813 = vadd.f32 %v1333, %v1721
    %v1814 = vadd.f32 %v1334, %v1724
    %v1815 = vadd.f32 %v1335, %v1727
    %v1816 = vadd.f32 %v1336, %v1730
    %v1817 = vadd.f32 %v1337, %v1733
    %v1818 = vadd.f32 %v1338, %v1736
    %v1819 = vadd.f32 %v1339, %v1739
    %v1820 = vadd.f32 %v1340, %v1742
    %v1821 = vadd.f32 %v1341, %v1745
    %v1822 = vadd.f32 %v1342, %v1748
    %v1823 = vadd.f32 %v1343, %v1751
    %v1824 = vadd.f32 %v1344, %v1754
    %v1825 = vadd.f32 %v1345, %v1757
    %v1826 = vadd.f32 %v1346, %v1760
    %v1827 = vadd.f32 %v1347, %v1763
    %v1828 = vadd.f32 %v1348, %v1766
    %v1829 = vadd.f32 %v1349, %v1769
    %v1830 = vadd.f32 %v1350, %v1772
    %v1831 = vadd.f32 %v1351, %v1775
    %v1832 = vadd.f32 %v1352, %v1778
    %v1833 = vadd.f32 %v1353, %v1781
    %v1834 = vadd.f32 %v1354, %v1784
    %v1835 = vadd.f32 %v1355, %v1787
    %v1836 = vadd.f32 %v1356, %v1790
    %v1837 = vadd.f32 %v1357, %v1793
    %v1838 = vadd.f32 %v1358, %v1796
    %v1839 = vadd.f32 %v1359, %v1799
    %v1840 = vadd.f32 %v1360, %v1802
    %v1841 = vadd.f32 %v1361, %v1805
    %v1842 = vadd.f32 %v1362, %v1808
    %v1843 = vadd.f32 %v1363, %v1811
    %vm1844 = vcmask 7168
    %1845 = vst.msk [vmem:[#allocation3] sm:$0xff] %vm1844, %v1812
    %1846 = vst.msk [vmem:[#allocation3 + $0x8] sm:$0xff] %vm1844, %v1813
    %1847 = vst.msk [vmem:[#allocation3 + $0x10] sm:$0xff] %vm1844, %v1814
    %1848 = vst.msk [vmem:[#allocation3 + $0x18] sm:$0xff] %vm1844, %v1815
    %1849 = vst.msk [vmem:[#allocation3 + $0x20] sm:$0xff] %vm1844, %v1816
    %1850 = vst.msk [vmem:[#allocation3 + $0x28] sm:$0xff] %vm1844, %v1817
    %1851 = vst.msk [vmem:[#allocation3 + $0x30] sm:$0xff] %vm1844, %v1818
    %1852 = vst.msk [vmem:[#allocation3 + $0x38] sm:$0xff] %vm1844, %v1819
    %1853 = vst.msk [vmem:[#allocation3 + $0x40] sm:$0xff] %vm1844, %v1820
    %1854 = vst.msk [vmem:[#allocation3 + $0x48] sm:$0xff] %vm1844, %v1821
    %1855 = vst.msk [vmem:[#allocation3 + $0x50] sm:$0xff] %vm1844, %v1822
    %1856 = vst.msk [vmem:[#allocation3 + $0x58] sm:$0xff] %vm1844, %v1823
    %1857 = vst.msk [vmem:[#allocation3 + $0x60] sm:$0xff] %vm1844, %v1824
    %1858 = vst.msk [vmem:[#allocation3 + $0x68] sm:$0xff] %vm1844, %v1825
    %1859 = vst.msk [vmem:[#allocation3 + $0x70] sm:$0xff] %vm1844, %v1826
    %1860 = vst.msk [vmem:[#allocation3 + $0x78] sm:$0xff] %vm1844, %v1827
    %1861 = vst.msk [vmem:[#allocation3 + $0x80] sm:$0xff] %vm1844, %v1828
    %1862 = vst.msk [vmem:[#allocation3 + $0x88] sm:$0xff] %vm1844, %v1829
    %1863 = vst.msk [vmem:[#allocation3 + $0x90] sm:$0xff] %vm1844, %v1830
    %1864 = vst.msk [vmem:[#allocation3 + $0x98] sm:$0xff] %vm1844, %v1831
    %1865 = vst.msk [vmem:[#allocation3 + $0xa0] sm:$0xff] %vm1844, %v1832
    %1866 = vst.msk [vmem:[#allocation3 + $0xa8] sm:$0xff] %vm1844, %v1833
    %1867 = vst.msk [vmem:[#allocation3 + $0xb0] sm:$0xff] %vm1844, %v1834
    %1868 = vst.msk [vmem:[#allocation3 + $0xb8] sm:$0xff] %vm1844, %v1835
    %1869 = vst.msk [vmem:[#allocation3 + $0xc0] sm:$0xff] %vm1844, %v1836
    %1870 = vst.msk [vmem:[#allocation3 + $0xc8] sm:$0xff] %vm1844, %v1837
    %1871 = vst.msk [vmem:[#allocation3 + $0xd0] sm:$0xff] %vm1844, %v1838
    %1872 = vst.msk [vmem:[#allocation3 + $0xd8] sm:$0xff] %vm1844, %v1839
    %1873 = vst.msk [vmem:[#allocation3 + $0xe0] sm:$0xff] %vm1844, %v1840
    %1874 = vst.msk [vmem:[#allocation3 + $0xe8] sm:$0xff] %vm1844, %v1841
    %1875 = vst.msk [vmem:[#allocation3 + $0xf0] sm:$0xff] %vm1844, %v1842
    %1876 = vst.msk [vmem:[#allocation3 + $0xf8] sm:$0xff] %vm1844, %v1843
    %1877 = vst.msk [vmem:[#allocation2] sm:$0xff] %vm1844, %v1172
    %1878 = vst.msk [vmem:[#allocation2 + $0x8] sm:$0xff] %vm1844, %v1173
    %1879 = vst.msk [vmem:[#allocation2 + $0x10] sm:$0xff] %vm1844, %v1174
    %1880 = vst.msk [vmem:[#allocation2 + $0x18] sm:$0xff] %vm1844, %v1175
    %1881 = vst.msk [vmem:[#allocation2 + $0x20] sm:$0xff] %vm1844, %v1176
    %1882 = vst.msk [vmem:[#allocation2 + $0x28] sm:$0xff] %vm1844, %v1177
    %1883 = vst.msk [vmem:[#allocation2 + $0x30] sm:$0xff] %vm1844, %v1178
    %1884 = vst.msk [vmem:[#allocation2 + $0x38] sm:$0xff] %vm1844, %v1179
    %1885 = vst.msk [vmem:[#allocation2 + $0x40] sm:$0xff] %vm1844, %v1180
    %1886 = vst.msk [vmem:[#allocation2 + $0x48] sm:$0xff] %vm1844, %v1181
    %1887 = vst.msk [vmem:[#allocation2 + $0x50] sm:$0xff] %vm1844, %v1182
    %1888 = vst.msk [vmem:[#allocation2 + $0x58] sm:$0xff] %vm1844, %v1183
    %1889 = vst.msk [vmem:[#allocation2 + $0x60] sm:$0xff] %vm1844, %v1184
    %1890 = vst.msk [vmem:[#allocation2 + $0x68] sm:$0xff] %vm1844, %v1185
    %1891 = vst.msk [vmem:[#allocation2 + $0x70] sm:$0xff] %vm1844, %v1186
    %1892 = vst.msk [vmem:[#allocation2 + $0x78] sm:$0xff] %vm1844, %v1187
    %1893 = vst.msk [vmem:[#allocation2 + $0x80] sm:$0xff] %vm1844, %v1188
    %1894 = vst.msk [vmem:[#allocation2 + $0x88] sm:$0xff] %vm1844, %v1189
    %1895 = vst.msk [vmem:[#allocation2 + $0x90] sm:$0xff] %vm1844, %v1190
    %1896 = vst.msk [vmem:[#allocation2 + $0x98] sm:$0xff] %vm1844, %v1191
    %1897 = vst.msk [vmem:[#allocation2 + $0xa0] sm:$0xff] %vm1844, %v1192
    %1898 = vst.msk [vmem:[#allocation2 + $0xa8] sm:$0xff] %vm1844, %v1193
    %1899 = vst.msk [vmem:[#allocation2 + $0xb0] sm:$0xff] %vm1844, %v1194
    %1900 = vst.msk [vmem:[#allocation2 + $0xb8] sm:$0xff] %vm1844, %v1195
    %1901 = vst.msk [vmem:[#allocation2 + $0xc0] sm:$0xff] %vm1844, %v1196
    %1902 = vst.msk [vmem:[#allocation2 + $0xc8] sm:$0xff] %vm1844, %v1197
    %1903 = vst.msk [vmem:[#allocation2 + $0xd0] sm:$0xff] %vm1844, %v1198
    %1904 = vst.msk [vmem:[#allocation2 + $0xd8] sm:$0xff] %vm1844, %v1199
    %1905 = vst.msk [vmem:[#allocation2 + $0xe0] sm:$0xff] %vm1844, %v1200
    %1906 = vst.msk [vmem:[#allocation2 + $0xe8] sm:$0xff] %vm1844, %v1201
    %1907 = vst.msk [vmem:[#allocation2 + $0xf0] sm:$0xff] %vm1844, %v1202
    %1908 = vst.msk [vmem:[#allocation2 + $0xf8] sm:$0xff] %vm1844, %v1203
    %v1909 = vld [vmem:[#allocation4] sm:$0xff]
    %v1910 = vld [vmem:[#allocation4 + $0x8] sm:$0xff]
    %v1911 = vld [vmem:[#allocation4 + $0x10] sm:$0xff]
    %v1912 = vld [vmem:[#allocation4 + $0x18] sm:$0xff]
    %v1913 = vld [vmem:[#allocation4 + $0x20] sm:$0xff]
    %v1914 = vld [vmem:[#allocation4 + $0x28] sm:$0xff]
    %v1915 = vld [vmem:[#allocation4 + $0x30] sm:$0xff]
    %v1916 = vld [vmem:[#allocation4 + $0x38] sm:$0xff]
    %v1917 = vld [vmem:[#allocation4 + $0x40] sm:$0xff]
    %v1918 = vld [vmem:[#allocation4 + $0x48] sm:$0xff]
    %v1919 = vld [vmem:[#allocation4 + $0x50] sm:$0xff]
    %v1920 = vld [vmem:[#allocation4 + $0x58] sm:$0xff]
    %v1921 = vld [vmem:[#allocation4 + $0x60] sm:$0xff]
    %v1922 = vld [vmem:[#allocation4 + $0x68] sm:$0xff]
    %v1923 = vld [vmem:[#allocation4 + $0x70] sm:$0xff]
    %v1924 = vld [vmem:[#allocation4 + $0x78] sm:$0xff]
    %v1925 = vld [vmem:[#allocation4 + $0x80] sm:$0xff]
    %v1926 = vld [vmem:[#allocation4 + $0x88] sm:$0xff]
    %v1927 = vld [vmem:[#allocation4 + $0x90] sm:$0xff]
    %v1928 = vld [vmem:[#allocation4 + $0x98] sm:$0xff]
    %v1929 = vld [vmem:[#allocation4 + $0xa0] sm:$0xff]
    %v1930 = vld [vmem:[#allocation4 + $0xa8] sm:$0xff]
    %v1931 = vld [vmem:[#allocation4 + $0xb0] sm:$0xff]
    %v1932 = vld [vmem:[#allocation4 + $0xb8] sm:$0xff]
    %v1933 = vld [vmem:[#allocation4 + $0xc0] sm:$0xff]
    %v1934 = vld [vmem:[#allocation4 + $0xc8] sm:$0xff]
    %v1935 = vld [vmem:[#allocation4 + $0xd0] sm:$0xff]
    %v1936 = vld [vmem:[#allocation4 + $0xd8] sm:$0xff]
    %v1937 = vld [vmem:[#allocation4 + $0xe0] sm:$0xff]
    %v1938 = vld [vmem:[#allocation4 + $0xe8] sm:$0xff]
    %v1939 = vld [vmem:[#allocation4 + $0xf0] sm:$0xff]
    %v1940 = vld [vmem:[#allocation4 + $0xf8] sm:$0xff]
    %v1941 = vadd.f32 %v980, %v981
    %1942 = vadd.xlane.f32.xlu0 %v1941
    %v1943 = vpop.xlane.xlu0 %1942
    %v1944 = vadd.f32 %v982, %v983
    %1945 = vadd.xlane.f32.xlu0 %v1944
    %v1946 = vpop.xlane.xlu0 %1945
    %v1947 = vadd.f32 %v984, %v985
    %1948 = vadd.xlane.f32.xlu0 %v1947
    %v1949 = vpop.xlane.xlu0 %1948
    %v1950 = vadd.f32 %v986, %v987
    %1951 = vadd.xlane.f32.xlu0 %v1950
    %v1952 = vpop.xlane.xlu0 %1951
    %v1953 = vadd.f32 %v988, %v989
    %1954 = vadd.xlane.f32.xlu0 %v1953
    %v1955 = vpop.xlane.xlu0 %1954
    %v1956 = vadd.f32 %v990, %v991
    %1957 = vadd.xlane.f32.xlu0 %v1956
    %v1958 = vpop.xlane.xlu0 %1957
    %v1959 = vadd.f32 %v992, %v993
    %1960 = vadd.xlane.f32.xlu0 %v1959
    %v1961 = vpop.xlane.xlu0 %1960
    %v1962 = vadd.f32 %v994, %v995
    %1963 = vadd.xlane.f32.xlu0 %v1962
    %v1964 = vpop.xlane.xlu0 %1963
    %v1965 = vadd.f32 %v996, %v997
    %1966 = vadd.xlane.f32.xlu0 %v1965
    %v1967 = vpop.xlane.xlu0 %1966
    %v1968 = vadd.f32 %v998, %v999
    %1969 = vadd.xlane.f32.xlu0 %v1968
    %v1970 = vpop.xlane.xlu0 %1969
    %v1971 = vadd.f32 %v1000, %v1001
    %1972 = vadd.xlane.f32.xlu0 %v1971
    %v1973 = vpop.xlane.xlu0 %1972
    %v1974 = vadd.f32 %v1002, %v1003
    %1975 = vadd.xlane.f32.xlu0 %v1974
    %v1976 = vpop.xlane.xlu0 %1975
    %v1977 = vadd.f32 %v1004, %v1005
    %1978 = vadd.xlane.f32.xlu0 %v1977
    %v1979 = vpop.xlane.xlu0 %1978
    %v1980 = vadd.f32 %v1006, %v1007
    %1981 = vadd.xlane.f32.xlu0 %v1980
    %v1982 = vpop.xlane.xlu0 %1981
    %v1983 = vadd.f32 %v1008, %v1009
    %1984 = vadd.xlane.f32.xlu0 %v1983
    %v1985 = vpop.xlane.xlu0 %1984
    %v1986 = vadd.f32 %v1010, %v1011
    %1987 = vadd.xlane.f32.xlu0 %v1986
    %v1988 = vpop.xlane.xlu0 %1987
    %v1989 = vadd.f32 %v1012, %v1013
    %1990 = vadd.xlane.f32.xlu0 %v1989
    %v1991 = vpop.xlane.xlu0 %1990
    %v1992 = vadd.f32 %v1014, %v1015
    %1993 = vadd.xlane.f32.xlu0 %v1992
    %v1994 = vpop.xlane.xlu0 %1993
    %v1995 = vadd.f32 %v1016, %v1017
    %1996 = vadd.xlane.f32.xlu0 %v1995
    %v1997 = vpop.xlane.xlu0 %1996
    %v1998 = vadd.f32 %v1018, %v1019
    %1999 = vadd.xlane.f32.xlu0 %v1998
    %v2000 = vpop.xlane.xlu0 %1999
    %v2001 = vadd.f32 %v1020, %v1021
    %2002 = vadd.xlane.f32.xlu0 %v2001
    %v2003 = vpop.xlane.xlu0 %2002
    %v2004 = vadd.f32 %v1022, %v1023
    %2005 = vadd.xlane.f32.xlu0 %v2004
    %v2006 = vpop.xlane.xlu0 %2005
    %v2007 = vadd.f32 %v1024, %v1025
    %2008 = vadd.xlane.f32.xlu0 %v2007
    %v2009 = vpop.xlane.xlu0 %2008
    %v2010 = vadd.f32 %v1026, %v1027
    %2011 = vadd.xlane.f32.xlu0 %v2010
    %v2012 = vpop.xlane.xlu0 %2011
    %v2013 = vadd.f32 %v1028, %v1029
    %2014 = vadd.xlane.f32.xlu0 %v2013
    %v2015 = vpop.xlane.xlu0 %2014
    %v2016 = vadd.f32 %v1030, %v1031
    %2017 = vadd.xlane.f32.xlu0 %v2016
    %v2018 = vpop.xlane.xlu0 %2017
    %v2019 = vadd.f32 %v1032, %v1033
    %2020 = vadd.xlane.f32.xlu0 %v2019
    %v2021 = vpop.xlane.xlu0 %2020
    %v2022 = vadd.f32 %v1034, %v1035
    %2023 = vadd.xlane.f32.xlu0 %v2022
    %v2024 = vpop.xlane.xlu0 %2023
    %v2025 = vadd.f32 %v1036, %v1037
    %2026 = vadd.xlane.f32.xlu0 %v2025
    %v2027 = vpop.xlane.xlu0 %2026
    %v2028 = vadd.f32 %v1038, %v1039
    %2029 = vadd.xlane.f32.xlu0 %v2028
    %v2030 = vpop.xlane.xlu0 %2029
    %v2031 = vadd.f32 %v1040, %v1041
    %2032 = vadd.xlane.f32.xlu0 %v2031
    %v2033 = vpop.xlane.xlu0 %2032
    %v2034 = vadd.f32 %v1042, %v1043
    %2035 = vadd.xlane.f32.xlu0 %v2034
    %v2036 = vpop.xlane.xlu0 %2035
    %v2037 = vadd.f32 %v1909, %v1943
    %v2038 = vadd.f32 %v1910, %v1946
    %v2039 = vadd.f32 %v1911, %v1949
    %v2040 = vadd.f32 %v1912, %v1952
    %v2041 = vadd.f32 %v1913, %v1955
    %v2042 = vadd.f32 %v1914, %v1958
    %v2043 = vadd.f32 %v1915, %v1961
    %v2044 = vadd.f32 %v1916, %v1964
    %v2045 = vadd.f32 %v1917, %v1967
    %v2046 = vadd.f32 %v1918, %v1970
    %v2047 = vadd.f32 %v1919, %v1973
    %v2048 = vadd.f32 %v1920, %v1976
    %v2049 = vadd.f32 %v1921, %v1979
    %v2050 = vadd.f32 %v1922, %v1982
    %v2051 = vadd.f32 %v1923, %v1985
    %v2052 = vadd.f32 %v1924, %v1988
    %v2053 = vadd.f32 %v1925, %v1991
    %v2054 = vadd.f32 %v1926, %v1994
    %v2055 = vadd.f32 %v1927, %v1997
    %v2056 = vadd.f32 %v1928, %v2000
    %v2057 = vadd.f32 %v1929, %v2003
    %v2058 = vadd.f32 %v1930, %v2006
    %v2059 = vadd.f32 %v1931, %v2009
    %v2060 = vadd.f32 %v1932, %v2012
    %v2061 = vadd.f32 %v1933, %v2015
    %v2062 = vadd.f32 %v1934, %v2018
    %v2063 = vadd.f32 %v1935, %v2021
    %v2064 = vadd.f32 %v1936, %v2024
    %v2065 = vadd.f32 %v1937, %v2027
    %v2066 = vadd.f32 %v1938, %v2030
    %v2067 = vadd.f32 %v1939, %v2033
    %v2068 = vadd.f32 %v1940, %v2036
    %2069 = vst.msk [vmem:[#allocation4] sm:$0xff] %vm1844, %v2037
    %2070 = vst.msk [vmem:[#allocation4 + $0x8] sm:$0xff] %vm1844, %v2038
    %2071 = vst.msk [vmem:[#allocation4 + $0x10] sm:$0xff] %vm1844, %v2039
    %2072 = vst.msk [vmem:[#allocation4 + $0x18] sm:$0xff] %vm1844, %v2040
    %2073 = vst.msk [vmem:[#allocation4 + $0x20] sm:$0xff] %vm1844, %v2041
    %2074 = vst.msk [vmem:[#allocation4 + $0x28] sm:$0xff] %vm1844, %v2042
    %2075 = vst.msk [vmem:[#allocation4 + $0x30] sm:$0xff] %vm1844, %v2043
    %2076 = vst.msk [vmem:[#allocation4 + $0x38] sm:$0xff] %vm1844, %v2044
    %2077 = vst.msk [vmem:[#allocation4 + $0x40] sm:$0xff] %vm1844, %v2045
    %2078 = vst.msk [vmem:[#allocation4 + $0x48] sm:$0xff] %vm1844, %v2046
    %2079 = vst.msk [vmem:[#allocation4 + $0x50] sm:$0xff] %vm1844, %v2047
    %2080 = vst.msk [vmem:[#allocation4 + $0x58] sm:$0xff] %vm1844, %v2048
    %2081 = vst.msk [vmem:[#allocation4 + $0x60] sm:$0xff] %vm1844, %v2049
    %2082 = vst.msk [vmem:[#allocation4 + $0x68] sm:$0xff] %vm1844, %v2050
    %2083 = vst.msk [vmem:[#allocation4 + $0x70] sm:$0xff] %vm1844, %v2051
    %2084 = vst.msk [vmem:[#allocation4 + $0x78] sm:$0xff] %vm1844, %v2052
    %2085 = vst.msk [vmem:[#allocation4 + $0x80] sm:$0xff] %vm1844, %v2053
    %2086 = vst.msk [vmem:[#allocation4 + $0x88] sm:$0xff] %vm1844, %v2054
    %2087 = vst.msk [vmem:[#allocation4 + $0x90] sm:$0xff] %vm1844, %v2055
    %2088 = vst.msk [vmem:[#allocation4 + $0x98] sm:$0xff] %vm1844, %v2056
    %2089 = vst.msk [vmem:[#allocation4 + $0xa0] sm:$0xff] %vm1844, %v2057
    %2090 = vst.msk [vmem:[#allocation4 + $0xa8] sm:$0xff] %vm1844, %v2058
    %2091 = vst.msk [vmem:[#allocation4 + $0xb0] sm:$0xff] %vm1844, %v2059
    %2092 = vst.msk [vmem:[#allocation4 + $0xb8] sm:$0xff] %vm1844, %v2060
    %2093 = vst.msk [vmem:[#allocation4 + $0xc0] sm:$0xff] %vm1844, %v2061
    %2094 = vst.msk [vmem:[#allocation4 + $0xc8] sm:$0xff] %vm1844, %v2062
    %2095 = vst.msk [vmem:[#allocation4 + $0xd0] sm:$0xff] %vm1844, %v2063
    %2096 = vst.msk [vmem:[#allocation4 + $0xd8] sm:$0xff] %vm1844, %v2064
    %2097 = vst.msk [vmem:[#allocation4 + $0xe0] sm:$0xff] %vm1844, %v2065
    %2098 = vst.msk [vmem:[#allocation4 + $0xe8] sm:$0xff] %vm1844, %v2066
    %2099 = vst.msk [vmem:[#allocation4 + $0xf0] sm:$0xff] %vm1844, %v2067
    %2100 = vst.msk [vmem:[#allocation4 + $0xf8] sm:$0xff] %vm1844, %v2068
  $region29: #{tpu_custom_call.1} parent=0 // pred_fallthru
    _
  %p2101 = pneg %p644
  // Predicated region
  $region30: #{tpu_custom_call.1} parent=0 // pred_check
    _
  $region31: #{tpu_custom_call.1} parent=0 // pred_check_branch
    %2103 = sbr.rel (%p644) target = $region33
  $region32: #{tpu_custom_call.1} parent=0 // pred_region
    %v2104 = vsel %vm579, %v252, 0.0
    %v2105 = vsel %vm580, %v254, 0.0
    %v2106 = vsel %vm581, %v258, 0.0
    %v2107 = vsel %vm582, %v260, 0.0
    %v2108 = vsel %vm583, %v264, 0.0
    %v2109 = vsel %vm584, %v266, 0.0
    %v2110 = vsel %vm585, %v270, 0.0
    %v2111 = vsel %vm586, %v272, 0.0
    %v2112 = vsel %vm587, %v276, 0.0
    %v2113 = vsel %vm588, %v278, 0.0
    %v2114 = vsel %vm589, %v282, 0.0
    %v2115 = vsel %vm590, %v284, 0.0
    %v2116 = vsel %vm591, %v288, 0.0
    %v2117 = vsel %vm592, %v290, 0.0
    %v2118 = vsel %vm593, %v294, 0.0
    %v2119 = vsel %vm594, %v296, 0.0
    %v2120 = vsel %vm595, %v300, 0.0
    %v2121 = vsel %vm596, %v302, 0.0
    %v2122 = vsel %vm597, %v306, 0.0
    %v2123 = vsel %vm598, %v308, 0.0
    %v2124 = vsel %vm599, %v312, 0.0
    %v2125 = vsel %vm600, %v314, 0.0
    %v2126 = vsel %vm601, %v318, 0.0
    %v2127 = vsel %vm602, %v320, 0.0
    %v2128 = vsel %vm603, %v324, 0.0
    %v2129 = vsel %vm604, %v326, 0.0
    %v2130 = vsel %vm605, %v330, 0.0
    %v2131 = vsel %vm606, %v332, 0.0
    %v2132 = vsel %vm607, %v336, 0.0
    %v2133 = vsel %vm608, %v338, 0.0
    %v2134 = vsel %vm609, %v342, 0.0
    %v2135 = vsel %vm610, %v344, 0.0
    %v2136 = vsel %vm611, %v348, 0.0
    %v2137 = vsel %vm612, %v350, 0.0
    %v2138 = vsel %vm613, %v354, 0.0
    %v2139 = vsel %vm614, %v356, 0.0
    %v2140 = vsel %vm615, %v360, 0.0
    %v2141 = vsel %vm616, %v362, 0.0
    %v2142 = vsel %vm617, %v366, 0.0
    %v2143 = vsel %vm618, %v368, 0.0
    %v2144 = vsel %vm619, %v372, 0.0
    %v2145 = vsel %vm620, %v374, 0.0
    %v2146 = vsel %vm621, %v378, 0.0
    %v2147 = vsel %vm622, %v380, 0.0
    %v2148 = vsel %vm623, %v384, 0.0
    %v2149 = vsel %vm624, %v386, 0.0
    %v2150 = vsel %vm625, %v390, 0.0
    %v2151 = vsel %vm626, %v392, 0.0
    %v2152 = vsel %vm627, %v396, 0.0
    %v2153 = vsel %vm628, %v398, 0.0
    %v2154 = vsel %vm629, %v402, 0.0
    %v2155 = vsel %vm630, %v404, 0.0
    %v2156 = vsel %vm631, %v408, 0.0
    %v2157 = vsel %vm632, %v410, 0.0
    %v2158 = vsel %vm633, %v414, 0.0
    %v2159 = vsel %vm634, %v416, 0.0
    %v2160 = vsel %vm635, %v420, 0.0
    %v2161 = vsel %vm636, %v422, 0.0
    %v2162 = vsel %vm637, %v426, 0.0
    %v2163 = vsel %vm638, %v428, 0.0
    %v2164 = vsel %vm639, %v432, 0.0
    %v2165 = vsel %vm640, %v434, 0.0
    %v2166 = vsel %vm641, %v438, 0.0
    %v2167 = vsel %vm642, %v440, 0.0
    %v2168 = vmax.f32 %v252, %v254
    %2169 = vmax.xlane.f32.xlu0 %v2168
    %v2170 = vpop.xlane.xlu0 %2169
    %v2171 = vmax.f32 %v258, %v260
    %2172 = vmax.xlane.f32.xlu0 %v2171
    %v2173 = vpop.xlane.xlu0 %2172
    %v2174 = vmax.f32 %v264, %v266
    %2175 = vmax.xlane.f32.xlu0 %v2174
    %v2176 = vpop.xlane.xlu0 %2175
    %v2177 = vmax.f32 %v270, %v272
    %2178 = vmax.xlane.f32.xlu0 %v2177
    %v2179 = vpop.xlane.xlu0 %2178
    %v2180 = vmax.f32 %v276, %v278
    %2181 = vmax.xlane.f32.xlu0 %v2180
    %v2182 = vpop.xlane.xlu0 %2181
    %v2183 = vmax.f32 %v282, %v284
    %2184 = vmax.xlane.f32.xlu0 %v2183
    %v2185 = vpop.xlane.xlu0 %2184
    %v2186 = vmax.f32 %v288, %v290
    %2187 = vmax.xlane.f32.xlu0 %v2186
    %v2188 = vpop.xlane.xlu0 %2187
    %v2189 = vmax.f32 %v294, %v296
    %2190 = vmax.xlane.f32.xlu0 %v2189
    %v2191 = vpop.xlane.xlu0 %2190
    %v2192 = vmax.f32 %v300, %v302
    %2193 = vmax.xlane.f32.xlu0 %v2192
    %v2194 = vpop.xlane.xlu0 %2193
    %v2195 = vmax.f32 %v306, %v308
    %2196 = vmax.xlane.f32.xlu0 %v2195
    %v2197 = vpop.xlane.xlu0 %2196
    %v2198 = vmax.f32 %v312, %v314
    %2199 = vmax.xlane.f32.xlu0 %v2198
    %v2200 = vpop.xlane.xlu0 %2199
    %v2201 = vmax.f32 %v318, %v320
    %2202 = vmax.xlane.f32.xlu0 %v2201
    %v2203 = vpop.xlane.xlu0 %2202
    %v2204 = vmax.f32 %v324, %v326
    %2205 = vmax.xlane.f32.xlu0 %v2204
    %v2206 = vpop.xlane.xlu0 %2205
    %v2207 = vmax.f32 %v330, %v332
    %2208 = vmax.xlane.f32.xlu0 %v2207
    %v2209 = vpop.xlane.xlu0 %2208
    %v2210 = vmax.f32 %v336, %v338
    %2211 = vmax.xlane.f32.xlu0 %v2210
    %v2212 = vpop.xlane.xlu0 %2211
    %v2213 = vmax.f32 %v342, %v344
    %2214 = vmax.xlane.f32.xlu0 %v2213
    %v2215 = vpop.xlane.xlu0 %2214
    %v2216 = vmax.f32 %v348, %v350
    %2217 = vmax.xlane.f32.xlu0 %v2216
    %v2218 = vpop.xlane.xlu0 %2217
    %v2219 = vmax.f32 %v354, %v356
    %2220 = vmax.xlane.f32.xlu0 %v2219
    %v2221 = vpop.xlane.xlu0 %2220
    %v2222 = vmax.f32 %v360, %v362
    %2223 = vmax.xlane.f32.xlu0 %v2222
    %v2224 = vpop.xlane.xlu0 %2223
    %v2225 = vmax.f32 %v366, %v368
    %2226 = vmax.xlane.f32.xlu0 %v2225
    %v2227 = vpop.xlane.xlu0 %2226
    %v2228 = vmax.f32 %v372, %v374
    %2229 = vmax.xlane.f32.xlu0 %v2228
    %v2230 = vpop.xlane.xlu0 %2229
    %v2231 = vmax.f32 %v378, %v380
    %2232 = vmax.xlane.f32.xlu0 %v2231
    %v2233 = vpop.xlane.xlu0 %2232
    %v2234 = vmax.f32 %v384, %v386
    %2235 = vmax.xlane.f32.xlu0 %v2234
    %v2236 = vpop.xlane.xlu0 %2235
    %v2237 = vmax.f32 %v390, %v392
    %2238 = vmax.xlane.f32.xlu0 %v2237
    %v2239 = vpop.xlane.xlu0 %2238
    %v2240 = vmax.f32 %v396, %v398
    %2241 = vmax.xlane.f32.xlu0 %v2240
    %v2242 = vpop.xlane.xlu0 %2241
    %v2243 = vmax.f32 %v402, %v404
    %2244 = vmax.xlane.f32.xlu0 %v2243
    %v2245 = vpop.xlane.xlu0 %2244
    %v2246 = vmax.f32 %v408, %v410
    %2247 = vmax.xlane.f32.xlu0 %v2246
    %v2248 = vpop.xlane.xlu0 %2247
    %v2249 = vmax.f32 %v414, %v416
    %2250 = vmax.xlane.f32.xlu0 %v2249
    %v2251 = vpop.xlane.xlu0 %2250
    %v2252 = vmax.f32 %v420, %v422
    %2253 = vmax.xlane.f32.xlu0 %v2252
    %v2254 = vpop.xlane.xlu0 %2253
    %v2255 = vmax.f32 %v426, %v428
    %2256 = vmax.xlane.f32.xlu0 %v2255
    %v2257 = vpop.xlane.xlu0 %2256
    %v2258 = vmax.f32 %v432, %v434
    %2259 = vmax.xlane.f32.xlu0 %v2258
    %v2260 = vpop.xlane.xlu0 %2259
    %v2261 = vmax.f32 %v438, %v440
    %2262 = vmax.xlane.f32.xlu0 %v2261
    %v2263 = vpop.xlane.xlu0 %2262
    %v2264 = vld [vmem:[#allocation2] sm:$0xff]
    %v2265 = vld [vmem:[#allocation2 + $0x8] sm:$0xff]
    %v2266 = vld [vmem:[#allocation2 + $0x10] sm:$0xff]
    %v2267 = vld [vmem:[#allocation2 + $0x18] sm:$0xff]
    %v2268 = vld [vmem:[#allocation2 + $0x20] sm:$0xff]
    %v2269 = vld [vmem:[#allocation2 + $0x28] sm:$0xff]
    %v2270 = vld [vmem:[#allocation2 + $0x30] sm:$0xff]
    %v2271 = vld [vmem:[#allocation2 + $0x38] sm:$0xff]
    %v2272 = vld [vmem:[#allocation2 + $0x40] sm:$0xff]
    %v2273 = vld [vmem:[#allocation2 + $0x48] sm:$0xff]
    %v2274 = vld [vmem:[#allocation2 + $0x50] sm:$0xff]
    %v2275 = vld [vmem:[#allocation2 + $0x58] sm:$0xff]
    %v2276 = vld [vmem:[#allocation2 + $0x60] sm:$0xff]
    %v2277 = vld [vmem:[#allocation2 + $0x68] sm:$0xff]
    %v2278 = vld [vmem:[#allocation2 + $0x70] sm:$0xff]
    %v2279 = vld [vmem:[#allocation2 + $0x78] sm:$0xff]
    %v2280 = vld [vmem:[#allocation2 + $0x80] sm:$0xff]
    %v2281 = vld [vmem:[#allocation2 + $0x88] sm:$0xff]
    %v2282 = vld [vmem:[#allocation2 + $0x90] sm:$0xff]
    %v2283 = vld [vmem:[#allocation2 + $0x98] sm:$0xff]
    %v2284 = vld [vmem:[#allocation2 + $0xa0] sm:$0xff]
    %v2285 = vld [vmem:[#allocation2 + $0xa8] sm:$0xff]
    %v2286 = vld [vmem:[#allocation2 + $0xb0] sm:$0xff]
    %v2287 = vld [vmem:[#allocation2 + $0xb8] sm:$0xff]
    %v2288 = vld [vmem:[#allocation2 + $0xc0] sm:$0xff]
    %v2289 = vld [vmem:[#allocation2 + $0xc8] sm:$0xff]
    %v2290 = vld [vmem:[#allocation2 + $0xd0] sm:$0xff]
    %v2291 = vld [vmem:[#allocation2 + $0xd8] sm:$0xff]
    %v2292 = vld [vmem:[#allocation2 + $0xe0] sm:$0xff]
    %v2293 = vld [vmem:[#allocation2 + $0xe8] sm:$0xff]
    %v2294 = vld [vmem:[#allocation2 + $0xf0] sm:$0xff]
    %v2295 = vld [vmem:[#allocation2 + $0xf8] sm:$0xff]
    %v2296 = vmax.f32 %v2264, %v2170
    %v2297 = vmax.f32 %v2265, %v2173
    %v2298 = vmax.f32 %v2266, %v2176
    %v2299 = vmax.f32 %v2267, %v2179
    %v2300 = vmax.f32 %v2268, %v2182
    %v2301 = vmax.f32 %v2269, %v2185
    %v2302 = vmax.f32 %v2270, %v2188
    %v2303 = vmax.f32 %v2271, %v2191
    %v2304 = vmax.f32 %v2272, %v2194
    %v2305 = vmax.f32 %v2273, %v2197
    %v2306 = vmax.f32 %v2274, %v2200
    %v2307 = vmax.f32 %v2275, %v2203
    %v2308 = vmax.f32 %v2276, %v2206
    %v2309 = vmax.f32 %v2277, %v2209
    %v2310 = vmax.f32 %v2278, %v2212
    %v2311 = vmax.f32 %v2279, %v2215
    %v2312 = vmax.f32 %v2280, %v2218
    %v2313 = vmax.f32 %v2281, %v2221
    %v2314 = vmax.f32 %v2282, %v2224
    %v2315 = vmax.f32 %v2283, %v2227
    %v2316 = vmax.f32 %v2284, %v2230
    %v2317 = vmax.f32 %v2285, %v2233
    %v2318 = vmax.f32 %v2286, %v2236
    %v2319 = vmax.f32 %v2287, %v2239
    %v2320 = vmax.f32 %v2288, %v2242
    %v2321 = vmax.f32 %v2289, %v2245
    %v2322 = vmax.f32 %v2290, %v2248
    %v2323 = vmax.f32 %v2291, %v2251
    %v2324 = vmax.f32 %v2292, %v2254
    %v2325 = vmax.f32 %v2293, %v2257
    %v2326 = vmax.f32 %v2294, %v2260
    %v2327 = vmax.f32 %v2295, %v2263
    %v2328 = vld [vmem:[#allocation3] sm:$0xff]
    %v2329 = vld [vmem:[#allocation3 + $0x8] sm:$0xff]
    %v2330 = vld [vmem:[#allocation3 + $0x10] sm:$0xff]
    %v2331 = vld [vmem:[#allocation3 + $0x18] sm:$0xff]
    %v2332 = vld [vmem:[#allocation3 + $0x20] sm:$0xff]
    %v2333 = vld [vmem:[#allocation3 + $0x28] sm:$0xff]
    %v2334 = vld [vmem:[#allocation3 + $0x30] sm:$0xff]
    %v2335 = vld [vmem:[#allocation3 + $0x38] sm:$0xff]
    %v2336 = vld [vmem:[#allocation3 + $0x40] sm:$0xff]
    %v2337 = vld [vmem:[#allocation3 + $0x48] sm:$0xff]
    %v2338 = vld [vmem:[#allocation3 + $0x50] sm:$0xff]
    %v2339 = vld [vmem:[#allocation3 + $0x58] sm:$0xff]
    %v2340 = vld [vmem:[#allocation3 + $0x60] sm:$0xff]
    %v2341 = vld [vmem:[#allocation3 + $0x68] sm:$0xff]
    %v2342 = vld [vmem:[#allocation3 + $0x70] sm:$0xff]
    %v2343 = vld [vmem:[#allocation3 + $0x78] sm:$0xff]
    %v2344 = vld [vmem:[#allocation3 + $0x80] sm:$0xff]
    %v2345 = vld [vmem:[#allocation3 + $0x88] sm:$0xff]
    %v2346 = vld [vmem:[#allocation3 + $0x90] sm:$0xff]
    %v2347 = vld [vmem:[#allocation3 + $0x98] sm:$0xff]
    %v2348 = vld [vmem:[#allocation3 + $0xa0] sm:$0xff]
    %v2349 = vld [vmem:[#allocation3 + $0xa8] sm:$0xff]
    %v2350 = vld [vmem:[#allocation3 + $0xb0] sm:$0xff]
    %v2351 = vld [vmem:[#allocation3 + $0xb8] sm:$0xff]
    %v2352 = vld [vmem:[#allocation3 + $0xc0] sm:$0xff]
    %v2353 = vld [vmem:[#allocation3 + $0xc8] sm:$0xff]
    %v2354 = vld [vmem:[#allocation3 + $0xd0] sm:$0xff]
    %v2355 = vld [vmem:[#allocation3 + $0xd8] sm:$0xff]
    %v2356 = vld [vmem:[#allocation3 + $0xe0] sm:$0xff]
    %v2357 = vld [vmem:[#allocation3 + $0xe8] sm:$0xff]
    %v2358 = vld [vmem:[#allocation3 + $0xf0] sm:$0xff]
    %v2359 = vld [vmem:[#allocation3 + $0xf8] sm:$0xff]
    %v2360 = vsub.f32 %v2264, %v2296
    %v2361 = vsub.f32 %v2265, %v2297
    %v2362 = vsub.f32 %v2266, %v2298
    %v2363 = vsub.f32 %v2267, %v2299
    %v2364 = vsub.f32 %v2268, %v2300
    %v2365 = vsub.f32 %v2269, %v2301
    %v2366 = vsub.f32 %v2270, %v2302
    %v2367 = vsub.f32 %v2271, %v2303
    %v2368 = vsub.f32 %v2272, %v2304
    %v2369 = vsub.f32 %v2273, %v2305
    %v2370 = vsub.f32 %v2274, %v2306
    %v2371 = vsub.f32 %v2275, %v2307
    %v2372 = vsub.f32 %v2276, %v2308
    %v2373 = vsub.f32 %v2277, %v2309
    %v2374 = vsub.f32 %v2278, %v2310
    %v2375 = vsub.f32 %v2279, %v2311
    %v2376 = vsub.f32 %v2280, %v2312
    %v2377 = vsub.f32 %v2281, %v2313
    %v2378 = vsub.f32 %v2282, %v2314
    %v2379 = vsub.f32 %v2283, %v2315
    %v2380 = vsub.f32 %v2284, %v2316
    %v2381 = vsub.f32 %v2285, %v2317
    %v2382 = vsub.f32 %v2286, %v2318
    %v2383 = vsub.f32 %v2287, %v2319
    %v2384 = vsub.f32 %v2288, %v2320
    %v2385 = vsub.f32 %v2289, %v2321
    %v2386 = vsub.f32 %v2290, %v2322
    %v2387 = vsub.f32 %v2291, %v2323
    %v2388 = vsub.f32 %v2292, %v2324
    %v2389 = vsub.f32 %v2293, %v2325
    %v2390 = vsub.f32 %v2294, %v2326
    %v2391 = vsub.f32 %v2295, %v2327
    %v2392 = vmul.f32 %v2360, 1.442695
    %v2393 = vpow.pop %v2392
    %v2394 = vmul.f32 %v2361, 1.442695
    %v2395 = vpow.pop %v2394
    %v2396 = vmul.f32 %v2362, 1.442695
    %v2397 = vpow.pop %v2396
    %v2398 = vmul.f32 %v2363, 1.442695
    %v2399 = vpow.pop %v2398
    %v2400 = vmul.f32 %v2364, 1.442695
    %v2401 = vpow.pop %v2400
    %v2402 = vmul.f32 %v2365, 1.442695
    %v2403 = vpow.pop %v2402
    %v2404 = vmul.f32 %v2366, 1.442695
    %v2405 = vpow.pop %v2404
    %v2406 = vmul.f32 %v2367, 1.442695
    %v2407 = vpow.pop %v2406
    %v2408 = vmul.f32 %v2368, 1.442695
    %v2409 = vpow.pop %v2408
    %v2410 = vmul.f32 %v2369, 1.442695
    %v2411 = vpow.pop %v2410
    %v2412 = vmul.f32 %v2370, 1.442695
    %v2413 = vpow.pop %v2412
    %v2414 = vmul.f32 %v2371, 1.442695
    %v2415 = vpow.pop %v2414
    %v2416 = vmul.f32 %v2372, 1.442695
    %v2417 = vpow.pop %v2416
    %v2418 = vmul.f32 %v2373, 1.442695
    %v2419 = vpow.pop %v2418
    %v2420 = vmul.f32 %v2374, 1.442695
    %v2421 = vpow.pop %v2420
    %v2422 = vmul.f32 %v2375, 1.442695
    %v2423 = vpow.pop %v2422
    %v2424 = vmul.f32 %v2376, 1.442695
    %v2425 = vpow.pop %v2424
    %v2426 = vmul.f32 %v2377, 1.442695
    %v2427 = vpow.pop %v2426
    %v2428 = vmul.f32 %v2378, 1.442695
    %v2429 = vpow.pop %v2428
    %v2430 = vmul.f32 %v2379, 1.442695
    %v2431 = vpow.pop %v2430
    %v2432 = vmul.f32 %v2380, 1.442695
    %v2433 = vpow.pop %v2432
    %v2434 = vmul.f32 %v2381, 1.442695
    %v2435 = vpow.pop %v2434
    %v2436 = vmul.f32 %v2382, 1.442695
    %v2437 = vpow.pop %v2436
    %v2438 = vmul.f32 %v2383, 1.442695
    %v2439 = vpow.pop %v2438
    %v2440 = vmul.f32 %v2384, 1.442695
    %v2441 = vpow.pop %v2440
    %v2442 = vmul.f32 %v2385, 1.442695
    %v2443 = vpow.pop %v2442
    %v2444 = vmul.f32 %v2386, 1.442695
    %v2445 = vpow.pop %v2444
    %v2446 = vmul.f32 %v2387, 1.442695
    %v2447 = vpow.pop %v2446
    %v2448 = vmul.f32 %v2388, 1.442695
    %v2449 = vpow.pop %v2448
    %v2450 = vmul.f32 %v2389, 1.442695
    %v2451 = vpow.pop %v2450
    %v2452 = vmul.f32 %v2390, 1.442695
    %v2453 = vpow.pop %v2452
    %v2454 = vmul.f32 %v2391, 1.442695
    %v2455 = vpow.pop %v2454
    %v2456 = vmul.f32 %v2328, %v2393
    %v2457 = vmul.f32 %v2329, %v2395
    %v2458 = vmul.f32 %v2330, %v2397
    %v2459 = vmul.f32 %v2331, %v2399
    %v2460 = vmul.f32 %v2332, %v2401
    %v2461 = vmul.f32 %v2333, %v2403
    %v2462 = vmul.f32 %v2334, %v2405
    %v2463 = vmul.f32 %v2335, %v2407
    %v2464 = vmul.f32 %v2336, %v2409
    %v2465 = vmul.f32 %v2337, %v2411
    %v2466 = vmul.f32 %v2338, %v2413
    %v2467 = vmul.f32 %v2339, %v2415
    %v2468 = vmul.f32 %v2340, %v2417
    %v2469 = vmul.f32 %v2341, %v2419
    %v2470 = vmul.f32 %v2342, %v2421
    %v2471 = vmul.f32 %v2343, %v2423
    %v2472 = vmul.f32 %v2344, %v2425
    %v2473 = vmul.f32 %v2345, %v2427
    %v2474 = vmul.f32 %v2346, %v2429
    %v2475 = vmul.f32 %v2347, %v2431
    %v2476 = vmul.f32 %v2348, %v2433
    %v2477 = vmul.f32 %v2349, %v2435
    %v2478 = vmul.f32 %v2350, %v2437
    %v2479 = vmul.f32 %v2351, %v2439
    %v2480 = vmul.f32 %v2352, %v2441
    %v2481 = vmul.f32 %v2353, %v2443
    %v2482 = vmul.f32 %v2354, %v2445
    %v2483 = vmul.f32 %v2355, %v2447
    %v2484 = vmul.f32 %v2356, %v2449
    %v2485 = vmul.f32 %v2357, %v2451
    %v2486 = vmul.f32 %v2358, %v2453
    %v2487 = vmul.f32 %v2359, %v2455
    %2489 = vset.pattern.permute.xlu0 0
    %2490 = vperm.xlu0 %2489, %v2296
    %v2491 = vpop.permute.xlu0 %2490
    %2494 = vset.pattern.permute.xlu0 0
    %2495 = vperm.xlu0 %2494, %v2297
    %v2496 = vpop.permute.xlu0 %2495
    %2499 = vset.pattern.permute.xlu0 0
    %2500 = vperm.xlu0 %2499, %v2298
    %v2501 = vpop.permute.xlu0 %2500
    %2504 = vset.pattern.permute.xlu0 0
    %2505 = vperm.xlu0 %2504, %v2299
    %v2506 = vpop.permute.xlu0 %2505
    %2509 = vset.pattern.permute.xlu0 0
    %2510 = vperm.xlu0 %2509, %v2300
    %v2511 = vpop.permute.xlu0 %2510
    %2514 = vset.pattern.permute.xlu0 0
    %2515 = vperm.xlu0 %2514, %v2301
    %v2516 = vpop.permute.xlu0 %2515
    %2519 = vset.pattern.permute.xlu0 0
    %2520 = vperm.xlu0 %2519, %v2302
    %v2521 = vpop.permute.xlu0 %2520
    %2524 = vset.pattern.permute.xlu0 0
    %2525 = vperm.xlu0 %2524, %v2303
    %v2526 = vpop.permute.xlu0 %2525
    %2529 = vset.pattern.permute.xlu0 0
    %2530 = vperm.xlu0 %2529, %v2304
    %v2531 = vpop.permute.xlu0 %2530
    %2534 = vset.pattern.permute.xlu0 0
    %2535 = vperm.xlu0 %2534, %v2305
    %v2536 = vpop.permute.xlu0 %2535
    %2539 = vset.pattern.permute.xlu0 0
    %2540 = vperm.xlu0 %2539, %v2306
    %v2541 = vpop.permute.xlu0 %2540
    %2544 = vset.pattern.permute.xlu0 0
    %2545 = vperm.xlu0 %2544, %v2307
    %v2546 = vpop.permute.xlu0 %2545
    %2549 = vset.pattern.permute.xlu0 0
    %2550 = vperm.xlu0 %2549, %v2308
    %v2551 = vpop.permute.xlu0 %2550
    %2554 = vset.pattern.permute.xlu0 0
    %2555 = vperm.xlu0 %2554, %v2309
    %v2556 = vpop.permute.xlu0 %2555
    %2559 = vset.pattern.permute.xlu0 0
    %2560 = vperm.xlu0 %2559, %v2310
    %v2561 = vpop.permute.xlu0 %2560
    %2564 = vset.pattern.permute.xlu0 0
    %2565 = vperm.xlu0 %2564, %v2311
    %v2566 = vpop.permute.xlu0 %2565
    %2569 = vset.pattern.permute.xlu0 0
    %2570 = vperm.xlu0 %2569, %v2312
    %v2571 = vpop.permute.xlu0 %2570
    %2574 = vset.pattern.permute.xlu0 0
    %2575 = vperm.xlu0 %2574, %v2313
    %v2576 = vpop.permute.xlu0 %2575
    %2579 = vset.pattern.permute.xlu0 0
    %2580 = vperm.xlu0 %2579, %v2314
    %v2581 = vpop.permute.xlu0 %2580
    %2584 = vset.pattern.permute.xlu0 0
    %2585 = vperm.xlu0 %2584, %v2315
    %v2586 = vpop.permute.xlu0 %2585
    %2589 = vset.pattern.permute.xlu0 0
    %2590 = vperm.xlu0 %2589, %v2316
    %v2591 = vpop.permute.xlu0 %2590
    %2594 = vset.pattern.permute.xlu0 0
    %2595 = vperm.xlu0 %2594, %v2317
    %v2596 = vpop.permute.xlu0 %2595
    %2599 = vset.pattern.permute.xlu0 0
    %2600 = vperm.xlu0 %2599, %v2318
    %v2601 = vpop.permute.xlu0 %2600
    %2604 = vset.pattern.permute.xlu0 0
    %2605 = vperm.xlu0 %2604, %v2319
    %v2606 = vpop.permute.xlu0 %2605
    %2609 = vset.pattern.permute.xlu0 0
    %2610 = vperm.xlu0 %2609, %v2320
    %v2611 = vpop.permute.xlu0 %2610
    %2614 = vset.pattern.permute.xlu0 0
    %2615 = vperm.xlu0 %2614, %v2321
    %v2616 = vpop.permute.xlu0 %2615
    %2619 = vset.pattern.permute.xlu0 0
    %2620 = vperm.xlu0 %2619, %v2322
    %v2621 = vpop.permute.xlu0 %2620
    %2624 = vset.pattern.permute.xlu0 0
    %2625 = vperm.xlu0 %2624, %v2323
    %v2626 = vpop.permute.xlu0 %2625
    %2629 = vset.pattern.permute.xlu0 0
    %2630 = vperm.xlu0 %2629, %v2324
    %v2631 = vpop.permute.xlu0 %2630
    %2634 = vset.pattern.permute.xlu0 0
    %2635 = vperm.xlu0 %2634, %v2325
    %v2636 = vpop.permute.xlu0 %2635
    %2639 = vset.pattern.permute.xlu0 0
    %2640 = vperm.xlu0 %2639, %v2326
    %v2641 = vpop.permute.xlu0 %2640
    %2644 = vset.pattern.permute.xlu0 0
    %2645 = vperm.xlu0 %2644, %v2327
    %v2646 = vpop.permute.xlu0 %2645
    %v2648 = vsub.f32 %v252, %v2491
    %v2649 = vsub.f32 %v254, %v2491
    %v2650 = vsub.f32 %v258, %v2496
    %v2651 = vsub.f32 %v260, %v2496
    %v2652 = vsub.f32 %v264, %v2501
    %v2653 = vsub.f32 %v266, %v2501
    %v2654 = vsub.f32 %v270, %v2506
    %v2655 = vsub.f32 %v272, %v2506
    %v2656 = vsub.f32 %v276, %v2511
    %v2657 = vsub.f32 %v278, %v2511
    %v2658 = vsub.f32 %v282, %v2516
    %v2659 = vsub.f32 %v284, %v2516
    %v2660 = vsub.f32 %v288, %v2521
    %v2661 = vsub.f32 %v290, %v2521
    %v2662 = vsub.f32 %v294, %v2526
    %v2663 = vsub.f32 %v296, %v2526
    %v2664 = vsub.f32 %v300, %v2531
    %v2665 = vsub.f32 %v302, %v2531
    %v2666 = vsub.f32 %v306, %v2536
    %v2667 = vsub.f32 %v308, %v2536
    %v2668 = vsub.f32 %v312, %v2541
    %v2669 = vsub.f32 %v314, %v2541
    %v2670 = vsub.f32 %v318, %v2546
    %v2671 = vsub.f32 %v320, %v2546
    %v2672 = vsub.f32 %v324, %v2551
    %v2673 = vsub.f32 %v326, %v2551
    %v2674 = vsub.f32 %v330, %v2556
    %v2675 = vsub.f32 %v332, %v2556
    %v2676 = vsub.f32 %v336, %v2561
    %v2677 = vsub.f32 %v338, %v2561
    %v2678 = vsub.f32 %v342, %v2566
    %v2679 = vsub.f32 %v344, %v2566
    %v2680 = vsub.f32 %v348, %v2571
    %v2681 = vsub.f32 %v350, %v2571
    %v2682 = vsub.f32 %v354, %v2576
    %v2683 = vsub.f32 %v356, %v2576
    %v2684 = vsub.f32 %v360, %v2581
    %v2685 = vsub.f32 %v362, %v2581
    %v2686 = vsub.f32 %v366, %v2586
    %v2687 = vsub.f32 %v368, %v2586
    %v2688 = vsub.f32 %v372, %v2591
    %v2689 = vsub.f32 %v374, %v2591
    %v2690 = vsub.f32 %v378, %v2596
    %v2691 = vsub.f32 %v380, %v2596
    %v2692 = vsub.f32 %v384, %v2601
    %v2693 = vsub.f32 %v386, %v2601
    %v2694 = vsub.f32 %v390, %v2606
    %v2695 = vsub.f32 %v392, %v2606
    %v2696 = vsub.f32 %v396, %v2611
    %v2697 = vsub.f32 %v398, %v2611
    %v2698 = vsub.f32 %v402, %v2616
    %v2699 = vsub.f32 %v404, %v2616
    %v2700 = vsub.f32 %v408, %v2621
    %v2701 = vsub.f32 %v410, %v2621
    %v2702 = vsub.f32 %v414, %v2626
    %v2703 = vsub.f32 %v416, %v2626
    %v2704 = vsub.f32 %v420, %v2631
    %v2705 = vsub.f32 %v422, %v2631
    %v2706 = vsub.f32 %v426, %v2636
    %v2707 = vsub.f32 %v428, %v2636
    %v2708 = vsub.f32 %v432, %v2641
    %v2709 = vsub.f32 %v434, %v2641
    %v2710 = vsub.f32 %v438, %v2646
    %v2711 = vsub.f32 %v440, %v2646
    %v2712 = vmul.f32 %v2648, 1.442695
    %v2713 = vpow.pop %v2712
    %v2714 = vmul.f32 %v2649, 1.442695
    %v2715 = vpow.pop %v2714
    %v2716 = vmul.f32 %v2650, 1.442695
    %v2717 = vpow.pop %v2716
    %v2718 = vmul.f32 %v2651, 1.442695
    %v2719 = vpow.pop %v2718
    %v2720 = vmul.f32 %v2652, 1.442695
    %v2721 = vpow.pop %v2720
    %v2722 = vmul.f32 %v2653, 1.442695
    %v2723 = vpow.pop %v2722
    %v2724 = vmul.f32 %v2654, 1.442695
    %v2725 = vpow.pop %v2724
    %v2726 = vmul.f32 %v2655, 1.442695
    %v2727 = vpow.pop %v2726
    %v2728 = vmul.f32 %v2656, 1.442695
    %v2729 = vpow.pop %v2728
    %v2730 = vmul.f32 %v2657, 1.442695
    %v2731 = vpow.pop %v2730
    %v2732 = vmul.f32 %v2658, 1.442695
    %v2733 = vpow.pop %v2732
    %v2734 = vmul.f32 %v2659, 1.442695
    %v2735 = vpow.pop %v2734
    %v2736 = vmul.f32 %v2660, 1.442695
    %v2737 = vpow.pop %v2736
    %v2738 = vmul.f32 %v2661, 1.442695
    %v2739 = vpow.pop %v2738
    %v2740 = vmul.f32 %v2662, 1.442695
    %v2741 = vpow.pop %v2740
    %v2742 = vmul.f32 %v2663, 1.442695
    %v2743 = vpow.pop %v2742
    %v2744 = vmul.f32 %v2664, 1.442695
    %v2745 = vpow.pop %v2744
    %v2746 = vmul.f32 %v2665, 1.442695
    %v2747 = vpow.pop %v2746
    %v2748 = vmul.f32 %v2666, 1.442695
    %v2749 = vpow.pop %v2748
    %v2750 = vmul.f32 %v2667, 1.442695
    %v2751 = vpow.pop %v2750
    %v2752 = vmul.f32 %v2668, 1.442695
    %v2753 = vpow.pop %v2752
    %v2754 = vmul.f32 %v2669, 1.442695
    %v2755 = vpow.pop %v2754
    %v2756 = vmul.f32 %v2670, 1.442695
    %v2757 = vpow.pop %v2756
    %v2758 = vmul.f32 %v2671, 1.442695
    %v2759 = vpow.pop %v2758
    %v2760 = vmul.f32 %v2672, 1.442695
    %v2761 = vpow.pop %v2760
    %v2762 = vmul.f32 %v2673, 1.442695
    %v2763 = vpow.pop %v2762
    %v2764 = vmul.f32 %v2674, 1.442695
    %v2765 = vpow.pop %v2764
    %v2766 = vmul.f32 %v2675, 1.442695
    %v2767 = vpow.pop %v2766
    %v2768 = vmul.f32 %v2676, 1.442695
    %v2769 = vpow.pop %v2768
    %v2770 = vmul.f32 %v2677, 1.442695
    %v2771 = vpow.pop %v2770
    %v2772 = vmul.f32 %v2678, 1.442695
    %v2773 = vpow.pop %v2772
    %v2774 = vmul.f32 %v2679, 1.442695
    %v2775 = vpow.pop %v2774
    %v2776 = vmul.f32 %v2680, 1.442695
    %v2777 = vpow.pop %v2776
    %v2778 = vmul.f32 %v2681, 1.442695
    %v2779 = vpow.pop %v2778
    %v2780 = vmul.f32 %v2682, 1.442695
    %v2781 = vpow.pop %v2780
    %v2782 = vmul.f32 %v2683, 1.442695
    %v2783 = vpow.pop %v2782
    %v2784 = vmul.f32 %v2684, 1.442695
    %v2785 = vpow.pop %v2784
    %v2786 = vmul.f32 %v2685, 1.442695
    %v2787 = vpow.pop %v2786
    %v2788 = vmul.f32 %v2686, 1.442695
    %v2789 = vpow.pop %v2788
    %v2790 = vmul.f32 %v2687, 1.442695
    %v2791 = vpow.pop %v2790
    %v2792 = vmul.f32 %v2688, 1.442695
    %v2793 = vpow.pop %v2792
    %v2794 = vmul.f32 %v2689, 1.442695
    %v2795 = vpow.pop %v2794
    %v2796 = vmul.f32 %v2690, 1.442695
    %v2797 = vpow.pop %v2796
    %v2798 = vmul.f32 %v2691, 1.442695
    %v2799 = vpow.pop %v2798
    %v2800 = vmul.f32 %v2692, 1.442695
    %v2801 = vpow.pop %v2800
    %v2802 = vmul.f32 %v2693, 1.442695
    %v2803 = vpow.pop %v2802
    %v2804 = vmul.f32 %v2694, 1.442695
    %v2805 = vpow.pop %v2804
    %v2806 = vmul.f32 %v2695, 1.442695
    %v2807 = vpow.pop %v2806
    %v2808 = vmul.f32 %v2696, 1.442695
    %v2809 = vpow.pop %v2808
    %v2810 = vmul.f32 %v2697, 1.442695
    %v2811 = vpow.pop %v2810
    %v2812 = vmul.f32 %v2698, 1.442695
    %v2813 = vpow.pop %v2812
    %v2814 = vmul.f32 %v2699, 1.442695
    %v2815 = vpow.pop %v2814
    %v2816 = vmul.f32 %v2700, 1.442695
    %v2817 = vpow.pop %v2816
    %v2818 = vmul.f32 %v2701, 1.442695
    %v2819 = vpow.pop %v2818
    %v2820 = vmul.f32 %v2702, 1.442695
    %v2821 = vpow.pop %v2820
    %v2822 = vmul.f32 %v2703, 1.442695
    %v2823 = vpow.pop %v2822
    %v2824 = vmul.f32 %v2704, 1.442695
    %v2825 = vpow.pop %v2824
    %v2826 = vmul.f32 %v2705, 1.442695
    %v2827 = vpow.pop %v2826
    %v2828 = vmul.f32 %v2706, 1.442695
    %v2829 = vpow.pop %v2828
    %v2830 = vmul.f32 %v2707, 1.442695
    %v2831 = vpow.pop %v2830
    %v2832 = vmul.f32 %v2708, 1.442695
    %v2833 = vpow.pop %v2832
    %v2834 = vmul.f32 %v2709, 1.442695
    %v2835 = vpow.pop %v2834
    %v2836 = vmul.f32 %v2710, 1.442695
    %v2837 = vpow.pop %v2836
    %v2838 = vmul.f32 %v2711, 1.442695
    %v2839 = vpow.pop %v2838
    %v2840 = vadd.f32 %v2713, %v2715
    %2841 = vadd.xlane.f32.xlu0 %v2840
    %v2842 = vpop.xlane.xlu0 %2841
    %v2843 = vadd.f32 %v2717, %v2719
    %2844 = vadd.xlane.f32.xlu0 %v2843
    %v2845 = vpop.xlane.xlu0 %2844
    %v2846 = vadd.f32 %v2721, %v2723
    %2847 = vadd.xlane.f32.xlu0 %v2846
    %v2848 = vpop.xlane.xlu0 %2847
    %v2849 = vadd.f32 %v2725, %v2727
    %2850 = vadd.xlane.f32.xlu0 %v2849
    %v2851 = vpop.xlane.xlu0 %2850
    %v2852 = vadd.f32 %v2729, %v2731
    %2853 = vadd.xlane.f32.xlu0 %v2852
    %v2854 = vpop.xlane.xlu0 %2853
    %v2855 = vadd.f32 %v2733, %v2735
    %2856 = vadd.xlane.f32.xlu0 %v2855
    %v2857 = vpop.xlane.xlu0 %2856
    %v2858 = vadd.f32 %v2737, %v2739
    %2859 = vadd.xlane.f32.xlu0 %v2858
    %v2860 = vpop.xlane.xlu0 %2859
    %v2861 = vadd.f32 %v2741, %v2743
    %2862 = vadd.xlane.f32.xlu0 %v2861
    %v2863 = vpop.xlane.xlu0 %2862
    %v2864 = vadd.f32 %v2745, %v2747
    %2865 = vadd.xlane.f32.xlu0 %v2864
    %v2866 = vpop.xlane.xlu0 %2865
    %v2867 = vadd.f32 %v2749, %v2751
    %2868 = vadd.xlane.f32.xlu0 %v2867
    %v2869 = vpop.xlane.xlu0 %2868
    %v2870 = vadd.f32 %v2753, %v2755
    %2871 = vadd.xlane.f32.xlu0 %v2870
    %v2872 = vpop.xlane.xlu0 %2871
    %v2873 = vadd.f32 %v2757, %v2759
    %2874 = vadd.xlane.f32.xlu0 %v2873
    %v2875 = vpop.xlane.xlu0 %2874
    %v2876 = vadd.f32 %v2761, %v2763
    %2877 = vadd.xlane.f32.xlu0 %v2876
    %v2878 = vpop.xlane.xlu0 %2877
    %v2879 = vadd.f32 %v2765, %v2767
    %2880 = vadd.xlane.f32.xlu0 %v2879
    %v2881 = vpop.xlane.xlu0 %2880
    %v2882 = vadd.f32 %v2769, %v2771
    %2883 = vadd.xlane.f32.xlu0 %v2882
    %v2884 = vpop.xlane.xlu0 %2883
    %v2885 = vadd.f32 %v2773, %v2775
    %2886 = vadd.xlane.f32.xlu0 %v2885
    %v2887 = vpop.xlane.xlu0 %2886
    %v2888 = vadd.f32 %v2777, %v2779
    %2889 = vadd.xlane.f32.xlu0 %v2888
    %v2890 = vpop.xlane.xlu0 %2889
    %v2891 = vadd.f32 %v2781, %v2783
    %2892 = vadd.xlane.f32.xlu0 %v2891
    %v2893 = vpop.xlane.xlu0 %2892
    %v2894 = vadd.f32 %v2785, %v2787
    %2895 = vadd.xlane.f32.xlu0 %v2894
    %v2896 = vpop.xlane.xlu0 %2895
    %v2897 = vadd.f32 %v2789, %v2791
    %2898 = vadd.xlane.f32.xlu0 %v2897
    %v2899 = vpop.xlane.xlu0 %2898
    %v2900 = vadd.f32 %v2793, %v2795
    %2901 = vadd.xlane.f32.xlu0 %v2900
    %v2902 = vpop.xlane.xlu0 %2901
    %v2903 = vadd.f32 %v2797, %v2799
    %2904 = vadd.xlane.f32.xlu0 %v2903
    %v2905 = vpop.xlane.xlu0 %2904
    %v2906 = vadd.f32 %v2801, %v2803
    %2907 = vadd.xlane.f32.xlu0 %v2906
    %v2908 = vpop.xlane.xlu0 %2907
    %v2909 = vadd.f32 %v2805, %v2807
    %2910 = vadd.xlane.f32.xlu0 %v2909
    %v2911 = vpop.xlane.xlu0 %2910
    %v2912 = vadd.f32 %v2809, %v2811
    %2913 = vadd.xlane.f32.xlu0 %v2912
    %v2914 = vpop.xlane.xlu0 %2913
    %v2915 = vadd.f32 %v2813, %v2815
    %2916 = vadd.xlane.f32.xlu0 %v2915
    %v2917 = vpop.xlane.xlu0 %2916
    %v2918 = vadd.f32 %v2817, %v2819
    %2919 = vadd.xlane.f32.xlu0 %v2918
    %v2920 = vpop.xlane.xlu0 %2919
    %v2921 = vadd.f32 %v2821, %v2823
    %2922 = vadd.xlane.f32.xlu0 %v2921
    %v2923 = vpop.xlane.xlu0 %2922
    %v2924 = vadd.f32 %v2825, %v2827
    %2925 = vadd.xlane.f32.xlu0 %v2924
    %v2926 = vpop.xlane.xlu0 %2925
    %v2927 = vadd.f32 %v2829, %v2831
    %2928 = vadd.xlane.f32.xlu0 %v2927
    %v2929 = vpop.xlane.xlu0 %2928
    %v2930 = vadd.f32 %v2833, %v2835
    %2931 = vadd.xlane.f32.xlu0 %v2930
    %v2932 = vpop.xlane.xlu0 %2931
    %v2933 = vadd.f32 %v2837, %v2839
    %2934 = vadd.xlane.f32.xlu0 %v2933
    %v2935 = vpop.xlane.xlu0 %2934
    %v2936 = vadd.f32 %v2456, %v2842
    %v2937 = vadd.f32 %v2457, %v2845
    %v2938 = vadd.f32 %v2458, %v2848
    %v2939 = vadd.f32 %v2459, %v2851
    %v2940 = vadd.f32 %v2460, %v2854
    %v2941 = vadd.f32 %v2461, %v2857
    %v2942 = vadd.f32 %v2462, %v2860
    %v2943 = vadd.f32 %v2463, %v2863
    %v2944 = vadd.f32 %v2464, %v2866
    %v2945 = vadd.f32 %v2465, %v2869
    %v2946 = vadd.f32 %v2466, %v2872
    %v2947 = vadd.f32 %v2467, %v2875
    %v2948 = vadd.f32 %v2468, %v2878
    %v2949 = vadd.f32 %v2469, %v2881
    %v2950 = vadd.f32 %v2470, %v2884
    %v2951 = vadd.f32 %v2471, %v2887
    %v2952 = vadd.f32 %v2472, %v2890
    %v2953 = vadd.f32 %v2473, %v2893
    %v2954 = vadd.f32 %v2474, %v2896
    %v2955 = vadd.f32 %v2475, %v2899
    %v2956 = vadd.f32 %v2476, %v2902
    %v2957 = vadd.f32 %v2477, %v2905
    %v2958 = vadd.f32 %v2478, %v2908
    %v2959 = vadd.f32 %v2479, %v2911
    %v2960 = vadd.f32 %v2480, %v2914
    %v2961 = vadd.f32 %v2481, %v2917
    %v2962 = vadd.f32 %v2482, %v2920
    %v2963 = vadd.f32 %v2483, %v2923
    %v2964 = vadd.f32 %v2484, %v2926
    %v2965 = vadd.f32 %v2485, %v2929
    %v2966 = vadd.f32 %v2486, %v2932
    %v2967 = vadd.f32 %v2487, %v2935
    %vm2968 = vcmask 7168
    %2969 = vst.msk [vmem:[#allocation3] sm:$0xff] %vm2968, %v2936
    %2970 = vst.msk [vmem:[#allocation3 + $0x8] sm:$0xff] %vm2968, %v2937
    %2971 = vst.msk [vmem:[#allocation3 + $0x10] sm:$0xff] %vm2968, %v2938
    %2972 = vst.msk [vmem:[#allocation3 + $0x18] sm:$0xff] %vm2968, %v2939
    %2973 = vst.msk [vmem:[#allocation3 + $0x20] sm:$0xff] %vm2968, %v2940
    %2974 = vst.msk [vmem:[#allocation3 + $0x28] sm:$0xff] %vm2968, %v2941
    %2975 = vst.msk [vmem:[#allocation3 + $0x30] sm:$0xff] %vm2968, %v2942
    %2976 = vst.msk [vmem:[#allocation3 + $0x38] sm:$0xff] %vm2968, %v2943
    %2977 = vst.msk [vmem:[#allocation3 + $0x40] sm:$0xff] %vm2968, %v2944
    %2978 = vst.msk [vmem:[#allocation3 + $0x48] sm:$0xff] %vm2968, %v2945
    %2979 = vst.msk [vmem:[#allocation3 + $0x50] sm:$0xff] %vm2968, %v2946
    %2980 = vst.msk [vmem:[#allocation3 + $0x58] sm:$0xff] %vm2968, %v2947
    %2981 = vst.msk [vmem:[#allocation3 + $0x60] sm:$0xff] %vm2968, %v2948
    %2982 = vst.msk [vmem:[#allocation3 + $0x68] sm:$0xff] %vm2968, %v2949
    %2983 = vst.msk [vmem:[#allocation3 + $0x70] sm:$0xff] %vm2968, %v2950
    %2984 = vst.msk [vmem:[#allocation3 + $0x78] sm:$0xff] %vm2968, %v2951
    %2985 = vst.msk [vmem:[#allocation3 + $0x80] sm:$0xff] %vm2968, %v2952
    %2986 = vst.msk [vmem:[#allocation3 + $0x88] sm:$0xff] %vm2968, %v2953
    %2987 = vst.msk [vmem:[#allocation3 + $0x90] sm:$0xff] %vm2968, %v2954
    %2988 = vst.msk [vmem:[#allocation3 + $0x98] sm:$0xff] %vm2968, %v2955
    %2989 = vst.msk [vmem:[#allocation3 + $0xa0] sm:$0xff] %vm2968, %v2956
    %2990 = vst.msk [vmem:[#allocation3 + $0xa8] sm:$0xff] %vm2968, %v2957
    %2991 = vst.msk [vmem:[#allocation3 + $0xb0] sm:$0xff] %vm2968, %v2958
    %2992 = vst.msk [vmem:[#allocation3 + $0xb8] sm:$0xff] %vm2968, %v2959
    %2993 = vst.msk [vmem:[#allocation3 + $0xc0] sm:$0xff] %vm2968, %v2960
    %2994 = vst.msk [vmem:[#allocation3 + $0xc8] sm:$0xff] %vm2968, %v2961
    %2995 = vst.msk [vmem:[#allocation3 + $0xd0] sm:$0xff] %vm2968, %v2962
    %2996 = vst.msk [vmem:[#allocation3 + $0xd8] sm:$0xff] %vm2968, %v2963
    %2997 = vst.msk [vmem:[#allocation3 + $0xe0] sm:$0xff] %vm2968, %v2964
    %2998 = vst.msk [vmem:[#allocation3 + $0xe8] sm:$0xff] %vm2968, %v2965
    %2999 = vst.msk [vmem:[#allocation3 + $0xf0] sm:$0xff] %vm2968, %v2966
    %3000 = vst.msk [vmem:[#allocation3 + $0xf8] sm:$0xff] %vm2968, %v2967
    %3001 = vst.msk [vmem:[#allocation2] sm:$0xff] %vm2968, %v2296
    %3002 = vst.msk [vmem:[#allocation2 + $0x8] sm:$0xff] %vm2968, %v2297
    %3003 = vst.msk [vmem:[#allocation2 + $0x10] sm:$0xff] %vm2968, %v2298
    %3004 = vst.msk [vmem:[#allocation2 + $0x18] sm:$0xff] %vm2968, %v2299
    %3005 = vst.msk [vmem:[#allocation2 + $0x20] sm:$0xff] %vm2968, %v2300
    %3006 = vst.msk [vmem:[#allocation2 + $0x28] sm:$0xff] %vm2968, %v2301
    %3007 = vst.msk [vmem:[#allocation2 + $0x30] sm:$0xff] %vm2968, %v2302
    %3008 = vst.msk [vmem:[#allocation2 + $0x38] sm:$0xff] %vm2968, %v2303
    %3009 = vst.msk [vmem:[#allocation2 + $0x40] sm:$0xff] %vm2968, %v2304
    %3010 = vst.msk [vmem:[#allocation2 + $0x48] sm:$0xff] %vm2968, %v2305
    %3011 = vst.msk [vmem:[#allocation2 + $0x50] sm:$0xff] %vm2968, %v2306
    %3012 = vst.msk [vmem:[#allocation2 + $0x58] sm:$0xff] %vm2968, %v2307
    %3013 = vst.msk [vmem:[#allocation2 + $0x60] sm:$0xff] %vm2968, %v2308
    %3014 = vst.msk [vmem:[#allocation2 + $0x68] sm:$0xff] %vm2968, %v2309
    %3015 = vst.msk [vmem:[#allocation2 + $0x70] sm:$0xff] %vm2968, %v2310
    %3016 = vst.msk [vmem:[#allocation2 + $0x78] sm:$0xff] %vm2968, %v2311
    %3017 = vst.msk [vmem:[#allocation2 + $0x80] sm:$0xff] %vm2968, %v2312
    %3018 = vst.msk [vmem:[#allocation2 + $0x88] sm:$0xff] %vm2968, %v2313
    %3019 = vst.msk [vmem:[#allocation2 + $0x90] sm:$0xff] %vm2968, %v2314
    %3020 = vst.msk [vmem:[#allocation2 + $0x98] sm:$0xff] %vm2968, %v2315
    %3021 = vst.msk [vmem:[#allocation2 + $0xa0] sm:$0xff] %vm2968, %v2316
    %3022 = vst.msk [vmem:[#allocation2 + $0xa8] sm:$0xff] %vm2968, %v2317
    %3023 = vst.msk [vmem:[#allocation2 + $0xb0] sm:$0xff] %vm2968, %v2318
    %3024 = vst.msk [vmem:[#allocation2 + $0xb8] sm:$0xff] %vm2968, %v2319
    %3025 = vst.msk [vmem:[#allocation2 + $0xc0] sm:$0xff] %vm2968, %v2320
    %3026 = vst.msk [vmem:[#allocation2 + $0xc8] sm:$0xff] %vm2968, %v2321
    %3027 = vst.msk [vmem:[#allocation2 + $0xd0] sm:$0xff] %vm2968, %v2322
    %3028 = vst.msk [vmem:[#allocation2 + $0xd8] sm:$0xff] %vm2968, %v2323
    %3029 = vst.msk [vmem:[#allocation2 + $0xe0] sm:$0xff] %vm2968, %v2324
    %3030 = vst.msk [vmem:[#allocation2 + $0xe8] sm:$0xff] %vm2968, %v2325
    %3031 = vst.msk [vmem:[#allocation2 + $0xf0] sm:$0xff] %vm2968, %v2326
    %3032 = vst.msk [vmem:[#allocation2 + $0xf8] sm:$0xff] %vm2968, %v2327
    %v3033 = vld [vmem:[#allocation4] sm:$0xff]
    %v3034 = vld [vmem:[#allocation4 + $0x8] sm:$0xff]
    %v3035 = vld [vmem:[#allocation4 + $0x10] sm:$0xff]
    %v3036 = vld [vmem:[#allocation4 + $0x18] sm:$0xff]
    %v3037 = vld [vmem:[#allocation4 + $0x20] sm:$0xff]
    %v3038 = vld [vmem:[#allocation4 + $0x28] sm:$0xff]
    %v3039 = vld [vmem:[#allocation4 + $0x30] sm:$0xff]
    %v3040 = vld [vmem:[#allocation4 + $0x38] sm:$0xff]
    %v3041 = vld [vmem:[#allocation4 + $0x40] sm:$0xff]
    %v3042 = vld [vmem:[#allocation4 + $0x48] sm:$0xff]
    %v3043 = vld [vmem:[#allocation4 + $0x50] sm:$0xff]
    %v3044 = vld [vmem:[#allocation4 + $0x58] sm:$0xff]
    %v3045 = vld [vmem:[#allocation4 + $0x60] sm:$0xff]
    %v3046 = vld [vmem:[#allocation4 + $0x68] sm:$0xff]
    %v3047 = vld [vmem:[#allocation4 + $0x70] sm:$0xff]
    %v3048 = vld [vmem:[#allocation4 + $0x78] sm:$0xff]
    %v3049 = vld [vmem:[#allocation4 + $0x80] sm:$0xff]
    %v3050 = vld [vmem:[#allocation4 + $0x88] sm:$0xff]
    %v3051 = vld [vmem:[#allocation4 + $0x90] sm:$0xff]
    %v3052 = vld [vmem:[#allocation4 + $0x98] sm:$0xff]
    %v3053 = vld [vmem:[#allocation4 + $0xa0] sm:$0xff]
    %v3054 = vld [vmem:[#allocation4 + $0xa8] sm:$0xff]
    %v3055 = vld [vmem:[#allocation4 + $0xb0] sm:$0xff]
    %v3056 = vld [vmem:[#allocation4 + $0xb8] sm:$0xff]
    %v3057 = vld [vmem:[#allocation4 + $0xc0] sm:$0xff]
    %v3058 = vld [vmem:[#allocation4 + $0xc8] sm:$0xff]
    %v3059 = vld [vmem:[#allocation4 + $0xd0] sm:$0xff]
    %v3060 = vld [vmem:[#allocation4 + $0xd8] sm:$0xff]
    %v3061 = vld [vmem:[#allocation4 + $0xe0] sm:$0xff]
    %v3062 = vld [vmem:[#allocation4 + $0xe8] sm:$0xff]
    %v3063 = vld [vmem:[#allocation4 + $0xf0] sm:$0xff]
    %v3064 = vld [vmem:[#allocation4 + $0xf8] sm:$0xff]
    %v3065 = vadd.f32 %v2104, %v2105
    %3066 = vadd.xlane.f32.xlu0 %v3065
    %v3067 = vpop.xlane.xlu0 %3066
    %v3068 = vadd.f32 %v2106, %v2107
    %3069 = vadd.xlane.f32.xlu0 %v3068
    %v3070 = vpop.xlane.xlu0 %3069
    %v3071 = vadd.f32 %v2108, %v2109
    %3072 = vadd.xlane.f32.xlu0 %v3071
    %v3073 = vpop.xlane.xlu0 %3072
    %v3074 = vadd.f32 %v2110, %v2111
    %3075 = vadd.xlane.f32.xlu0 %v3074
    %v3076 = vpop.xlane.xlu0 %3075
    %v3077 = vadd.f32 %v2112, %v2113
    %3078 = vadd.xlane.f32.xlu0 %v3077
    %v3079 = vpop.xlane.xlu0 %3078
    %v3080 = vadd.f32 %v2114, %v2115
    %3081 = vadd.xlane.f32.xlu0 %v3080
    %v3082 = vpop.xlane.xlu0 %3081
    %v3083 = vadd.f32 %v2116, %v2117
    %3084 = vadd.xlane.f32.xlu0 %v3083
    %v3085 = vpop.xlane.xlu0 %3084
    %v3086 = vadd.f32 %v2118, %v2119
    %3087 = vadd.xlane.f32.xlu0 %v3086
    %v3088 = vpop.xlane.xlu0 %3087
    %v3089 = vadd.f32 %v2120, %v2121
    %3090 = vadd.xlane.f32.xlu0 %v3089
    %v3091 = vpop.xlane.xlu0 %3090
    %v3092 = vadd.f32 %v2122, %v2123
    %3093 = vadd.xlane.f32.xlu0 %v3092
    %v3094 = vpop.xlane.xlu0 %3093
    %v3095 = vadd.f32 %v2124, %v2125
    %3096 = vadd.xlane.f32.xlu0 %v3095
    %v3097 = vpop.xlane.xlu0 %3096
    %v3098 = vadd.f32 %v2126, %v2127
    %3099 = vadd.xlane.f32.xlu0 %v3098
    %v3100 = vpop.xlane.xlu0 %3099
    %v3101 = vadd.f32 %v2128, %v2129
    %3102 = vadd.xlane.f32.xlu0 %v3101
    %v3103 = vpop.xlane.xlu0 %3102
    %v3104 = vadd.f32 %v2130, %v2131
    %3105 = vadd.xlane.f32.xlu0 %v3104
    %v3106 = vpop.xlane.xlu0 %3105
    %v3107 = vadd.f32 %v2132, %v2133
    %3108 = vadd.xlane.f32.xlu0 %v3107
    %v3109 = vpop.xlane.xlu0 %3108
    %v3110 = vadd.f32 %v2134, %v2135
    %3111 = vadd.xlane.f32.xlu0 %v3110
    %v3112 = vpop.xlane.xlu0 %3111
    %v3113 = vadd.f32 %v2136, %v2137
    %3114 = vadd.xlane.f32.xlu0 %v3113
    %v3115 = vpop.xlane.xlu0 %3114
    %v3116 = vadd.f32 %v2138, %v2139
    %3117 = vadd.xlane.f32.xlu0 %v3116
    %v3118 = vpop.xlane.xlu0 %3117
    %v3119 = vadd.f32 %v2140, %v2141
    %3120 = vadd.xlane.f32.xlu0 %v3119
    %v3121 = vpop.xlane.xlu0 %3120
    %v3122 = vadd.f32 %v2142, %v2143
    %3123 = vadd.xlane.f32.xlu0 %v3122
    %v3124 = vpop.xlane.xlu0 %3123
    %v3125 = vadd.f32 %v2144, %v2145
    %3126 = vadd.xlane.f32.xlu0 %v3125
    %v3127 = vpop.xlane.xlu0 %3126
    %v3128 = vadd.f32 %v2146, %v2147
    %3129 = vadd.xlane.f32.xlu0 %v3128
    %v3130 = vpop.xlane.xlu0 %3129
    %v3131 = vadd.f32 %v2148, %v2149
    %3132 = vadd.xlane.f32.xlu0 %v3131
    %v3133 = vpop.xlane.xlu0 %3132
    %v3134 = vadd.f32 %v2150, %v2151
    %3135 = vadd.xlane.f32.xlu0 %v3134
    %v3136 = vpop.xlane.xlu0 %3135
    %v3137 = vadd.f32 %v2152, %v2153
    %3138 = vadd.xlane.f32.xlu0 %v3137
    %v3139 = vpop.xlane.xlu0 %3138
    %v3140 = vadd.f32 %v2154, %v2155
    %3141 = vadd.xlane.f32.xlu0 %v3140
    %v3142 = vpop.xlane.xlu0 %3141
    %v3143 = vadd.f32 %v2156, %v2157
    %3144 = vadd.xlane.f32.xlu0 %v3143
    %v3145 = vpop.xlane.xlu0 %3144
    %v3146 = vadd.f32 %v2158, %v2159
    %3147 = vadd.xlane.f32.xlu0 %v3146
    %v3148 = vpop.xlane.xlu0 %3147
    %v3149 = vadd.f32 %v2160, %v2161
    %3150 = vadd.xlane.f32.xlu0 %v3149
    %v3151 = vpop.xlane.xlu0 %3150
    %v3152 = vadd.f32 %v2162, %v2163
    %3153 = vadd.xlane.f32.xlu0 %v3152
    %v3154 = vpop.xlane.xlu0 %3153
    %v3155 = vadd.f32 %v2164, %v2165
    %3156 = vadd.xlane.f32.xlu0 %v3155
    %v3157 = vpop.xlane.xlu0 %3156
    %v3158 = vadd.f32 %v2166, %v2167
    %3159 = vadd.xlane.f32.xlu0 %v3158
    %v3160 = vpop.xlane.xlu0 %3159
    %v3161 = vadd.f32 %v3033, %v3067
    %v3162 = vadd.f32 %v3034, %v3070
    %v3163 = vadd.f32 %v3035, %v3073
    %v3164 = vadd.f32 %v3036, %v3076
    %v3165 = vadd.f32 %v3037, %v3079
    %v3166 = vadd.f32 %v3038, %v3082
    %v3167 = vadd.f32 %v3039, %v3085
    %v3168 = vadd.f32 %v3040, %v3088
    %v3169 = vadd.f32 %v3041, %v3091
    %v3170 = vadd.f32 %v3042, %v3094
    %v3171 = vadd.f32 %v3043, %v3097
    %v3172 = vadd.f32 %v3044, %v3100
    %v3173 = vadd.f32 %v3045, %v3103
    %v3174 = vadd.f32 %v3046, %v3106
    %v3175 = vadd.f32 %v3047, %v3109
    %v3176 = vadd.f32 %v3048, %v3112
    %v3177 = vadd.f32 %v3049, %v3115
    %v3178 = vadd.f32 %v3050, %v3118
    %v3179 = vadd.f32 %v3051, %v3121
    %v3180 = vadd.f32 %v3052, %v3124
    %v3181 = vadd.f32 %v3053, %v3127
    %v3182 = vadd.f32 %v3054, %v3130
    %v3183 = vadd.f32 %v3055, %v3133
    %v3184 = vadd.f32 %v3056, %v3136
    %v3185 = vadd.f32 %v3057, %v3139
    %v3186 = vadd.f32 %v3058, %v3142
    %v3187 = vadd.f32 %v3059, %v3145
    %v3188 = vadd.f32 %v3060, %v3148
    %v3189 = vadd.f32 %v3061, %v3151
    %v3190 = vadd.f32 %v3062, %v3154
    %v3191 = vadd.f32 %v3063, %v3157
    %v3192 = vadd.f32 %v3064, %v3160
    %3193 = vst.msk [vmem:[#allocation4] sm:$0xff] %vm2968, %v3161
    %3194 = vst.msk [vmem:[#allocation4 + $0x8] sm:$0xff] %vm2968, %v3162
    %3195 = vst.msk [vmem:[#allocation4 + $0x10] sm:$0xff] %vm2968, %v3163
    %3196 = vst.msk [vmem:[#allocation4 + $0x18] sm:$0xff] %vm2968, %v3164
    %3197 = vst.msk [vmem:[#allocation4 + $0x20] sm:$0xff] %vm2968, %v3165
    %3198 = vst.msk [vmem:[#allocation4 + $0x28] sm:$0xff] %vm2968, %v3166
    %3199 = vst.msk [vmem:[#allocation4 + $0x30] sm:$0xff] %vm2968, %v3167
    %3200 = vst.msk [vmem:[#allocation4 + $0x38] sm:$0xff] %vm2968, %v3168
    %3201 = vst.msk [vmem:[#allocation4 + $0x40] sm:$0xff] %vm2968, %v3169
    %3202 = vst.msk [vmem:[#allocation4 + $0x48] sm:$0xff] %vm2968, %v3170
    %3203 = vst.msk [vmem:[#allocation4 + $0x50] sm:$0xff] %vm2968, %v3171
    %3204 = vst.msk [vmem:[#allocation4 + $0x58] sm:$0xff] %vm2968, %v3172
    %3205 = vst.msk [vmem:[#allocation4 + $0x60] sm:$0xff] %vm2968, %v3173
    %3206 = vst.msk [vmem:[#allocation4 + $0x68] sm:$0xff] %vm2968, %v3174
    %3207 = vst.msk [vmem:[#allocation4 + $0x70] sm:$0xff] %vm2968, %v3175
    %3208 = vst.msk [vmem:[#allocation4 + $0x78] sm:$0xff] %vm2968, %v3176
    %3209 = vst.msk [vmem:[#allocation4 + $0x80] sm:$0xff] %vm2968, %v3177
    %3210 = vst.msk [vmem:[#allocation4 + $0x88] sm:$0xff] %vm2968, %v3178
    %3211 = vst.msk [vmem:[#allocation4 + $0x90] sm:$0xff] %vm2968, %v3179
    %3212 = vst.msk [vmem:[#allocation4 + $0x98] sm:$0xff] %vm2968, %v3180
    %3213 = vst.msk [vmem:[#allocation4 + $0xa0] sm:$0xff] %vm2968, %v3181
    %3214 = vst.msk [vmem:[#allocation4 + $0xa8] sm:$0xff] %vm2968, %v3182
    %3215 = vst.msk [vmem:[#allocation4 + $0xb0] sm:$0xff] %vm2968, %v3183
    %3216 = vst.msk [vmem:[#allocation4 + $0xb8] sm:$0xff] %vm2968, %v3184
    %3217 = vst.msk [vmem:[#allocation4 + $0xc0] sm:$0xff] %vm2968, %v3185
    %3218 = vst.msk [vmem:[#allocation4 + $0xc8] sm:$0xff] %vm2968, %v3186
    %3219 = vst.msk [vmem:[#allocation4 + $0xd0] sm:$0xff] %vm2968, %v3187
    %3220 = vst.msk [vmem:[#allocation4 + $0xd8] sm:$0xff] %vm2968, %v3188
    %3221 = vst.msk [vmem:[#allocation4 + $0xe0] sm:$0xff] %vm2968, %v3189
    %3222 = vst.msk [vmem:[#allocation4 + $0xe8] sm:$0xff] %vm2968, %v3190
    %3223 = vst.msk [vmem:[#allocation4 + $0xf0] sm:$0xff] %vm2968, %v3191
    %3224 = vst.msk [vmem:[#allocation4 + $0xf8] sm:$0xff] %vm2968, %v3192
  $region33: #{tpu_custom_call.1} parent=0 // pred_fallthru
    _
  // Predicated region
  $region34: #{tpu_custom_call.1} parent=0 // pred_check
    %p3225 = pneg %p20
  $region35: #{tpu_custom_call.1} parent=0 // pred_check_branch
    %3227 = sbr.rel (%p3225) target = $region37
  $region36: #{tpu_custom_call.1} parent=0 // pred_region
    %v3228 = vld [vmem:[#allocation2] sm:$0xff]
    %v3229 = vld [vmem:[#allocation2 + $0x8] sm:$0xff]
    %v3230 = vld [vmem:[#allocation2 + $0x10] sm:$0xff]
    %v3231 = vld [vmem:[#allocation2 + $0x18] sm:$0xff]
    %v3232 = vld [vmem:[#allocation2 + $0x20] sm:$0xff]
    %v3233 = vld [vmem:[#allocation2 + $0x28] sm:$0xff]
    %v3234 = vld [vmem:[#allocation2 + $0x30] sm:$0xff]
    %v3235 = vld [vmem:[#allocation2 + $0x38] sm:$0xff]
    %v3236 = vld [vmem:[#allocation2 + $0x40] sm:$0xff]
    %v3237 = vld [vmem:[#allocation2 + $0x48] sm:$0xff]
    %v3238 = vld [vmem:[#allocation2 + $0x50] sm:$0xff]
    %v3239 = vld [vmem:[#allocation2 + $0x58] sm:$0xff]
    %v3240 = vld [vmem:[#allocation2 + $0x60] sm:$0xff]
    %v3241 = vld [vmem:[#allocation2 + $0x68] sm:$0xff]
    %v3242 = vld [vmem:[#allocation2 + $0x70] sm:$0xff]
    %v3243 = vld [vmem:[#allocation2 + $0x78] sm:$0xff]
    %v3244 = vld [vmem:[#allocation2 + $0x80] sm:$0xff]
    %v3245 = vld [vmem:[#allocation2 + $0x88] sm:$0xff]
    %v3246 = vld [vmem:[#allocation2 + $0x90] sm:$0xff]
    %v3247 = vld [vmem:[#allocation2 + $0x98] sm:$0xff]
    %v3248 = vld [vmem:[#allocation2 + $0xa0] sm:$0xff]
    %v3249 = vld [vmem:[#allocation2 + $0xa8] sm:$0xff]
    %v3250 = vld [vmem:[#allocation2 + $0xb0] sm:$0xff]
    %v3251 = vld [vmem:[#allocation2 + $0xb8] sm:$0xff]
    %v3252 = vld [vmem:[#allocation2 + $0xc0] sm:$0xff]
    %v3253 = vld [vmem:[#allocation2 + $0xc8] sm:$0xff]
    %v3254 = vld [vmem:[#allocation2 + $0xd0] sm:$0xff]
    %v3255 = vld [vmem:[#allocation2 + $0xd8] sm:$0xff]
    %v3256 = vld [vmem:[#allocation2 + $0xe0] sm:$0xff]
    %v3257 = vld [vmem:[#allocation2 + $0xe8] sm:$0xff]
    %v3258 = vld [vmem:[#allocation2 + $0xf0] sm:$0xff]
    %v3259 = vld [vmem:[#allocation2 + $0xf8] sm:$0xff]
    %v3260 = vld [vmem:[#allocation3] sm:$0xff]
    %v3261 = vld [vmem:[#allocation3 + $0x8] sm:$0xff]
    %v3262 = vld [vmem:[#allocation3 + $0x10] sm:$0xff]
    %v3263 = vld [vmem:[#allocation3 + $0x18] sm:$0xff]
    %v3264 = vld [vmem:[#allocation3 + $0x20] sm:$0xff]
    %v3265 = vld [vmem:[#allocation3 + $0x28] sm:$0xff]
    %v3266 = vld [vmem:[#allocation3 + $0x30] sm:$0xff]
    %v3267 = vld [vmem:[#allocation3 + $0x38] sm:$0xff]
    %v3268 = vld [vmem:[#allocation3 + $0x40] sm:$0xff]
    %v3269 = vld [vmem:[#allocation3 + $0x48] sm:$0xff]
    %v3270 = vld [vmem:[#allocation3 + $0x50] sm:$0xff]
    %v3271 = vld [vmem:[#allocation3 + $0x58] sm:$0xff]
    %v3272 = vld [vmem:[#allocation3 + $0x60] sm:$0xff]
    %v3273 = vld [vmem:[#allocation3 + $0x68] sm:$0xff]
    %v3274 = vld [vmem:[#allocation3 + $0x70] sm:$0xff]
    %v3275 = vld [vmem:[#allocation3 + $0x78] sm:$0xff]
    %v3276 = vld [vmem:[#allocation3 + $0x80] sm:$0xff]
    %v3277 = vld [vmem:[#allocation3 + $0x88] sm:$0xff]
    %v3278 = vld [vmem:[#allocation3 + $0x90] sm:$0xff]
    %v3279 = vld [vmem:[#allocation3 + $0x98] sm:$0xff]
    %v3280 = vld [vmem:[#allocation3 + $0xa0] sm:$0xff]
    %v3281 = vld [vmem:[#allocation3 + $0xa8] sm:$0xff]
    %v3282 = vld [vmem:[#allocation3 + $0xb0] sm:$0xff]
    %v3283 = vld [vmem:[#allocation3 + $0xb8] sm:$0xff]
    %v3284 = vld [vmem:[#allocation3 + $0xc0] sm:$0xff]
    %v3285 = vld [vmem:[#allocation3 + $0xc8] sm:$0xff]
    %v3286 = vld [vmem:[#allocation3 + $0xd0] sm:$0xff]
    %v3287 = vld [vmem:[#allocation3 + $0xd8] sm:$0xff]
    %v3288 = vld [vmem:[#allocation3 + $0xe0] sm:$0xff]
    %v3289 = vld [vmem:[#allocation3 + $0xe8] sm:$0xff]
    %v3290 = vld [vmem:[#allocation3 + $0xf0] sm:$0xff]
    %v3291 = vld [vmem:[#allocation3 + $0xf8] sm:$0xff]
    %v3292 = vlog2.pop %v3260
    %v3293 = vmul.f32 %v3292, 0.6931472
    %v3294 = vlog2.pop %v3261
    %v3295 = vmul.f32 %v3294, 0.6931472
    %v3296 = vlog2.pop %v3262
    %v3297 = vmul.f32 %v3296, 0.6931472
    %v3298 = vlog2.pop %v3263
    %v3299 = vmul.f32 %v3298, 0.6931472
    %v3300 = vlog2.pop %v3264
    %v3301 = vmul.f32 %v3300, 0.6931472
    %v3302 = vlog2.pop %v3265
    %v3303 = vmul.f32 %v3302, 0.6931472
    %v3304 = vlog2.pop %v3266
    %v3305 = vmul.f32 %v3304, 0.6931472
    %v3306 = vlog2.pop %v3267
    %v3307 = vmul.f32 %v3306, 0.6931472
    %v3308 = vlog2.pop %v3268
    %v3309 = vmul.f32 %v3308, 0.6931472
    %v3310 = vlog2.pop %v3269
    %v3311 = vmul.f32 %v3310, 0.6931472
    %v3312 = vlog2.pop %v3270
    %v3313 = vmul.f32 %v3312, 0.6931472
    %v3314 = vlog2.pop %v3271
    %v3315 = vmul.f32 %v3314, 0.6931472
    %v3316 = vlog2.pop %v3272
    %v3317 = vmul.f32 %v3316, 0.6931472
    %v3318 = vlog2.pop %v3273
    %v3319 = vmul.f32 %v3318, 0.6931472
    %v3320 = vlog2.pop %v3274
    %v3321 = vmul.f32 %v3320, 0.6931472
    %v3322 = vlog2.pop %v3275
    %v3323 = vmul.f32 %v3322, 0.6931472
    %v3324 = vlog2.pop %v3276
    %v3325 = vmul.f32 %v3324, 0.6931472
    %v3326 = vlog2.pop %v3277
    %v3327 = vmul.f32 %v3326, 0.6931472
    %v3328 = vlog2.pop %v3278
    %v3329 = vmul.f32 %v3328, 0.6931472
    %v3330 = vlog2.pop %v3279
    %v3331 = vmul.f32 %v3330, 0.6931472
    %v3332 = vlog2.pop %v3280
    %v3333 = vmul.f32 %v3332, 0.6931472
    %v3334 = vlog2.pop %v3281
    %v3335 = vmul.f32 %v3334, 0.6931472
    %v3336 = vlog2.pop %v3282
    %v3337 = vmul.f32 %v3336, 0.6931472
    %v3338 = vlog2.pop %v3283
    %v3339 = vmul.f32 %v3338, 0.6931472
    %v3340 = vlog2.pop %v3284
    %v3341 = vmul.f32 %v3340, 0.6931472
    %v3342 = vlog2.pop %v3285
    %v3343 = vmul.f32 %v3342, 0.6931472
    %v3344 = vlog2.pop %v3286
    %v3345 = vmul.f32 %v3344, 0.6931472
    %v3346 = vlog2.pop %v3287
    %v3347 = vmul.f32 %v3346, 0.6931472
    %v3348 = vlog2.pop %v3288
    %v3349 = vmul.f32 %v3348, 0.6931472
    %v3350 = vlog2.pop %v3289
    %v3351 = vmul.f32 %v3350, 0.6931472
    %v3352 = vlog2.pop %v3290
    %v3353 = vmul.f32 %v3352, 0.6931472
    %v3354 = vlog2.pop %v3291
    %v3355 = vmul.f32 %v3354, 0.6931472
    %v3356 = vadd.f32 %v3228, %v3293
    %v3357 = vadd.f32 %v3229, %v3295
    %v3358 = vadd.f32 %v3230, %v3297
    %v3359 = vadd.f32 %v3231, %v3299
    %v3360 = vadd.f32 %v3232, %v3301
    %v3361 = vadd.f32 %v3233, %v3303
    %v3362 = vadd.f32 %v3234, %v3305
    %v3363 = vadd.f32 %v3235, %v3307
    %v3364 = vadd.f32 %v3236, %v3309
    %v3365 = vadd.f32 %v3237, %v3311
    %v3366 = vadd.f32 %v3238, %v3313
    %v3367 = vadd.f32 %v3239, %v3315
    %v3368 = vadd.f32 %v3240, %v3317
    %v3369 = vadd.f32 %v3241, %v3319
    %v3370 = vadd.f32 %v3242, %v3321
    %v3371 = vadd.f32 %v3243, %v3323
    %v3372 = vadd.f32 %v3244, %v3325
    %v3373 = vadd.f32 %v3245, %v3327
    %v3374 = vadd.f32 %v3246, %v3329
    %v3375 = vadd.f32 %v3247, %v3331
    %v3376 = vadd.f32 %v3248, %v3333
    %v3377 = vadd.f32 %v3249, %v3335
    %v3378 = vadd.f32 %v3250, %v3337
    %v3379 = vadd.f32 %v3251, %v3339
    %v3380 = vadd.f32 %v3252, %v3341
    %v3381 = vadd.f32 %v3253, %v3343
    %v3382 = vadd.f32 %v3254, %v3345
    %v3383 = vadd.f32 %v3255, %v3347
    %v3384 = vadd.f32 %v3256, %v3349
    %v3385 = vadd.f32 %v3257, %v3351
    %v3386 = vadd.f32 %v3258, %v3353
    %v3387 = vadd.f32 %v3259, %v3355
    %v3388 = vld [vmem:[#allocation4] sm:$0xff]
    %v3389 = vld [vmem:[#allocation4 + $0x8] sm:$0xff]
    %v3390 = vld [vmem:[#allocation4 + $0x10] sm:$0xff]
    %v3391 = vld [vmem:[#allocation4 + $0x18] sm:$0xff]
    %v3392 = vld [vmem:[#allocation4 + $0x20] sm:$0xff]
    %v3393 = vld [vmem:[#allocation4 + $0x28] sm:$0xff]
    %v3394 = vld [vmem:[#allocation4 + $0x30] sm:$0xff]
    %v3395 = vld [vmem:[#allocation4 + $0x38] sm:$0xff]
    %v3396 = vld [vmem:[#allocation4 + $0x40] sm:$0xff]
    %v3397 = vld [vmem:[#allocation4 + $0x48] sm:$0xff]
    %v3398 = vld [vmem:[#allocation4 + $0x50] sm:$0xff]
    %v3399 = vld [vmem:[#allocation4 + $0x58] sm:$0xff]
    %v3400 = vld [vmem:[#allocation4 + $0x60] sm:$0xff]
    %v3401 = vld [vmem:[#allocation4 + $0x68] sm:$0xff]
    %v3402 = vld [vmem:[#allocation4 + $0x70] sm:$0xff]
    %v3403 = vld [vmem:[#allocation4 + $0x78] sm:$0xff]
    %v3404 = vld [vmem:[#allocation4 + $0x80] sm:$0xff]
    %v3405 = vld [vmem:[#allocation4 + $0x88] sm:$0xff]
    %v3406 = vld [vmem:[#allocation4 + $0x90] sm:$0xff]
    %v3407 = vld [vmem:[#allocation4 + $0x98] sm:$0xff]
    %v3408 = vld [vmem:[#allocation4 + $0xa0] sm:$0xff]
    %v3409 = vld [vmem:[#allocation4 + $0xa8] sm:$0xff]
    %v3410 = vld [vmem:[#allocation4 + $0xb0] sm:$0xff]
    %v3411 = vld [vmem:[#allocation4 + $0xb8] sm:$0xff]
    %v3412 = vld [vmem:[#allocation4 + $0xc0] sm:$0xff]
    %v3413 = vld [vmem:[#allocation4 + $0xc8] sm:$0xff]
    %v3414 = vld [vmem:[#allocation4 + $0xd0] sm:$0xff]
    %v3415 = vld [vmem:[#allocation4 + $0xd8] sm:$0xff]
    %v3416 = vld [vmem:[#allocation4 + $0xe0] sm:$0xff]
    %v3417 = vld [vmem:[#allocation4 + $0xe8] sm:$0xff]
    %v3418 = vld [vmem:[#allocation4 + $0xf0] sm:$0xff]
    %v3419 = vld [vmem:[#allocation4 + $0xf8] sm:$0xff]
    %v3420 = vld [vmem:[%s4] sm:$0xff]
    %v3421 = vld [vmem:[%s4 + $0x8] sm:$0xff]
    %v3422 = vld [vmem:[%s4 + $0x10] sm:$0xff]
    %v3423 = vld [vmem:[%s4 + $0x18] sm:$0xff]
    %v3424 = vld [vmem:[%s4 + $0x20] sm:$0xff]
    %v3425 = vld [vmem:[%s4 + $0x28] sm:$0xff]
    %v3426 = vld [vmem:[%s4 + $0x30] sm:$0xff]
    %v3427 = vld [vmem:[%s4 + $0x38] sm:$0xff]
    %v3428 = vld [vmem:[%s4 + $0x40] sm:$0xff]
    %v3429 = vld [vmem:[%s4 + $0x48] sm:$0xff]
    %v3430 = vld [vmem:[%s4 + $0x50] sm:$0xff]
    %v3431 = vld [vmem:[%s4 + $0x58] sm:$0xff]
    %v3432 = vld [vmem:[%s4 + $0x60] sm:$0xff]
    %v3433 = vld [vmem:[%s4 + $0x68] sm:$0xff]
    %v3434 = vld [vmem:[%s4 + $0x70] sm:$0xff]
    %v3435 = vld [vmem:[%s4 + $0x78] sm:$0xff]
    %v3436 = vld [vmem:[%s4 + $0x80] sm:$0xff]
    %v3437 = vld [vmem:[%s4 + $0x88] sm:$0xff]
    %v3438 = vld [vmem:[%s4 + $0x90] sm:$0xff]
    %v3439 = vld [vmem:[%s4 + $0x98] sm:$0xff]
    %v3440 = vld [vmem:[%s4 + $0xa0] sm:$0xff]
    %v3441 = vld [vmem:[%s4 + $0xa8] sm:$0xff]
    %v3442 = vld [vmem:[%s4 + $0xb0] sm:$0xff]
    %v3443 = vld [vmem:[%s4 + $0xb8] sm:$0xff]
    %v3444 = vld [vmem:[%s4 + $0xc0] sm:$0xff]
    %v3445 = vld [vmem:[%s4 + $0xc8] sm:$0xff]
    %v3446 = vld [vmem:[%s4 + $0xd0] sm:$0xff]
    %v3447 = vld [vmem:[%s4 + $0xd8] sm:$0xff]
    %v3448 = vld [vmem:[%s4 + $0xe0] sm:$0xff]
    %v3449 = vld [vmem:[%s4 + $0xe8] sm:$0xff]
    %v3450 = vld [vmem:[%s4 + $0xf0] sm:$0xff]
    %v3451 = vld [vmem:[%s4 + $0xf8] sm:$0xff]
    %v3452 = vrcp.pop %v3420
    %v3453 = vmul.f32 %v3388, %v3452
    %v3454 = vrcp.pop %v3421
    %v3455 = vmul.f32 %v3389, %v3454
    %v3456 = vrcp.pop %v3422
    %v3457 = vmul.f32 %v3390, %v3456
    %v3458 = vrcp.pop %v3423
    %v3459 = vmul.f32 %v3391, %v3458
    %v3460 = vrcp.pop %v3424
    %v3461 = vmul.f32 %v3392, %v3460
    %v3462 = vrcp.pop %v3425
    %v3463 = vmul.f32 %v3393, %v3462
    %v3464 = vrcp.pop %v3426
    %v3465 = vmul.f32 %v3394, %v3464
    %v3466 = vrcp.pop %v3427
    %v3467 = vmul.f32 %v3395, %v3466
    %v3468 = vrcp.pop %v3428
    %v3469 = vmul.f32 %v3396, %v3468
    %v3470 = vrcp.pop %v3429
    %v3471 = vmul.f32 %v3397, %v3470
    %v3472 = vrcp.pop %v3430
    %v3473 = vmul.f32 %v3398, %v3472
    %v3474 = vrcp.pop %v3431
    %v3475 = vmul.f32 %v3399, %v3474
    %v3476 = vrcp.pop %v3432
    %v3477 = vmul.f32 %v3400, %v3476
    %v3478 = vrcp.pop %v3433
    %v3479 = vmul.f32 %v3401, %v3478
    %v3480 = vrcp.pop %v3434
    %v3481 = vmul.f32 %v3402, %v3480
    %v3482 = vrcp.pop %v3435
    %v3483 = vmul.f32 %v3403, %v3482
    %v3484 = vrcp.pop %v3436
    %v3485 = vmul.f32 %v3404, %v3484
    %v3486 = vrcp.pop %v3437
    %v3487 = vmul.f32 %v3405, %v3486
    %v3488 = vrcp.pop %v3438
    %v3489 = vmul.f32 %v3406, %v3488
    %v3490 = vrcp.pop %v3439
    %v3491 = vmul.f32 %v3407, %v3490
    %v3492 = vrcp.pop %v3440
    %v3493 = vmul.f32 %v3408, %v3492
    %v3494 = vrcp.pop %v3441
    %v3495 = vmul.f32 %v3409, %v3494
    %v3496 = vrcp.pop %v3442
    %v3497 = vmul.f32 %v3410, %v3496
    %v3498 = vrcp.pop %v3443
    %v3499 = vmul.f32 %v3411, %v3498
    %v3500 = vrcp.pop %v3444
    %v3501 = vmul.f32 %v3412, %v3500
    %v3502 = vrcp.pop %v3445
    %v3503 = vmul.f32 %v3413, %v3502
    %v3504 = vrcp.pop %v3446
    %v3505 = vmul.f32 %v3414, %v3504
    %v3506 = vrcp.pop %v3447
    %v3507 = vmul.f32 %v3415, %v3506
    %v3508 = vrcp.pop %v3448
    %v3509 = vmul.f32 %v3416, %v3508
    %v3510 = vrcp.pop %v3449
    %v3511 = vmul.f32 %v3417, %v3510
    %v3512 = vrcp.pop %v3450
    %v3513 = vmul.f32 %v3418, %v3512
    %v3514 = vrcp.pop %v3451
    %v3515 = vmul.f32 %v3419, %v3514
    %v3516 = vsub.f32 %v3453, %v3356
    %v3517 = vsub.f32 %v3455, %v3357
    %v3518 = vsub.f32 %v3457, %v3358
    %v3519 = vsub.f32 %v3459, %v3359
    %v3520 = vsub.f32 %v3461, %v3360
    %v3521 = vsub.f32 %v3463, %v3361
    %v3522 = vsub.f32 %v3465, %v3362
    %v3523 = vsub.f32 %v3467, %v3363
    %v3524 = vsub.f32 %v3469, %v3364
    %v3525 = vsub.f32 %v3471, %v3365
    %v3526 = vsub.f32 %v3473, %v3366
    %v3527 = vsub.f32 %v3475, %v3367
    %v3528 = vsub.f32 %v3477, %v3368
    %v3529 = vsub.f32 %v3479, %v3369
    %v3530 = vsub.f32 %v3481, %v3370
    %v3531 = vsub.f32 %v3483, %v3371
    %v3532 = vsub.f32 %v3485, %v3372
    %v3533 = vsub.f32 %v3487, %v3373
    %v3534 = vsub.f32 %v3489, %v3374
    %v3535 = vsub.f32 %v3491, %v3375
    %v3536 = vsub.f32 %v3493, %v3376
    %v3537 = vsub.f32 %v3495, %v3377
    %v3538 = vsub.f32 %v3497, %v3378
    %v3539 = vsub.f32 %v3499, %v3379
    %v3540 = vsub.f32 %v3501, %v3380
    %v3541 = vsub.f32 %v3503, %v3381
    %v3542 = vsub.f32 %v3505, %v3382
    %v3543 = vsub.f32 %v3507, %v3383
    %v3544 = vsub.f32 %v3509, %v3384
    %v3545 = vsub.f32 %v3511, %v3385
    %v3546 = vsub.f32 %v3513, %v3386
    %v3547 = vsub.f32 %v3515, %v3387
    %s3548 = smul.u32 0, 256
    %v3549 = vlaneseq
    %v3550 = vshrl.u32 %v3549, 7
    %v3551 = vadd.s32 %v3550, 8
    %v3552 = vadd.s32 %v3550, 16
    %v3553 = vadd.s32 %v3550, 24
    %v3554 = vadd.s32 %v3550, 32
    %v3555 = vadd.s32 %v3550, 40
    %v3556 = vadd.s32 %v3550, 48
    %v3557 = vadd.s32 %v3550, 56
    %v3558 = vadd.s32 %v3550, 64
    %v3559 = vadd.s32 %v3550, 72
    %v3560 = vadd.s32 %v3550, 80
    %v3561 = vadd.s32 %v3550, 88
    %v3562 = vadd.s32 %v3550, 96
    %v3563 = vadd.s32 %v3550, 104
    %v3564 = vadd.s32 %v3550, 112
    %v3565 = vadd.s32 %v3550, 120
    %v3566 = vadd.s32 %v3550, 128
    %v3567 = vadd.s32 %v3550, 136
    %v3568 = vadd.s32 %v3550, 144
    %v3569 = vadd.s32 %v3550, 152
    %v3570 = vadd.s32 %v3550, 160
    %v3571 = vadd.s32 %v3550, 168
    %v3572 = vadd.s32 %v3550, 176
    %v3573 = vadd.s32 %v3550, 184
    %v3574 = vadd.s32 %v3550, 192
    %v3575 = vadd.s32 %v3550, 200
    %v3576 = vadd.s32 %v3550, 208
    %v3577 = vadd.s32 %v3550, 216
    %v3578 = vadd.s32 %v3550, 224
    %v3579 = vadd.s32 %v3550, 232
    %v3580 = vadd.s32 %v3550, 240
    %v3581 = vadd.s32 %v3550, 248
    %v3582 = vstv %s3548
    %v3583 = vadd.s32 %v3582, %v3550
    %v3584 = vadd.s32 %v3582, %v3551
    %v3585 = vadd.s32 %v3582, %v3552
    %v3586 = vadd.s32 %v3582, %v3553
    %v3587 = vadd.s32 %v3582, %v3554
    %v3588 = vadd.s32 %v3582, %v3555
    %v3589 = vadd.s32 %v3582, %v3556
    %v3590 = vadd.s32 %v3582, %v3557
    %v3591 = vadd.s32 %v3582, %v3558
    %v3592 = vadd.s32 %v3582, %v3559
    %v3593 = vadd.s32 %v3582, %v3560
    %v3594 = vadd.s32 %v3582, %v3561
    %v3595 = vadd.s32 %v3582, %v3562
    %v3596 = vadd.s32 %v3582, %v3563
    %v3597 = vadd.s32 %v3582, %v3564
    %v3598 = vadd.s32 %v3582, %v3565
    %v3599 = vadd.s32 %v3582, %v3566
    %v3600 = vadd.s32 %v3582, %v3567
    %v3601 = vadd.s32 %v3582, %v3568
    %v3602 = vadd.s32 %v3582, %v3569
    %v3603 = vadd.s32 %v3582, %v3570
    %v3604 = vadd.s32 %v3582, %v3571
    %v3605 = vadd.s32 %v3582, %v3572
    %v3606 = vadd.s32 %v3582, %v3573
    %v3607 = vadd.s32 %v3582, %v3574
    %v3608 = vadd.s32 %v3582, %v3575
    %v3609 = vadd.s32 %v3582, %v3576
    %v3610 = vadd.s32 %v3582, %v3577
    %v3611 = vadd.s32 %v3582, %v3578
    %v3612 = vadd.s32 %v3582, %v3579
    %v3613 = vadd.s32 %v3582, %v3580
    %v3614 = vadd.s32 %v3582, %v3581
    %vm3615 = vcmp.lt.s32.totalorder %v3583, 16
    %vm3616 = vcmp.lt.s32.totalorder %v3584, 16
    %vm3617 = vcmp.lt.s32.totalorder %v3585, 16
    %vm3618 = vcmp.lt.s32.totalorder %v3586, 16
    %vm3619 = vcmp.lt.s32.totalorder %v3587, 16
    %vm3620 = vcmp.lt.s32.totalorder %v3588, 16
    %vm3621 = vcmp.lt.s32.totalorder %v3589, 16
    %vm3622 = vcmp.lt.s32.totalorder %v3590, 16
    %vm3623 = vcmp.lt.s32.totalorder %v3591, 16
    %vm3624 = vcmp.lt.s32.totalorder %v3592, 16
    %vm3625 = vcmp.lt.s32.totalorder %v3593, 16
    %vm3626 = vcmp.lt.s32.totalorder %v3594, 16
    %vm3627 = vcmp.lt.s32.totalorder %v3595, 16
    %vm3628 = vcmp.lt.s32.totalorder %v3596, 16
    %vm3629 = vcmp.lt.s32.totalorder %v3597, 16
    %vm3630 = vcmp.lt.s32.totalorder %v3598, 16
    %vm3631 = vcmp.lt.s32.totalorder %v3599, 16
    %vm3632 = vcmp.lt.s32.totalorder %v3600, 16
    %vm3633 = vcmp.lt.s32.totalorder %v3601, 16
    %vm3634 = vcmp.lt.s32.totalorder %v3602, 16
    %vm3635 = vcmp.lt.s32.totalorder %v3603, 16
    %vm3636 = vcmp.lt.s32.totalorder %v3604, 16
    %vm3637 = vcmp.lt.s32.totalorder %v3605, 16
    %vm3638 = vcmp.lt.s32.totalorder %v3606, 16
    %vm3639 = vcmp.lt.s32.totalorder %v3607, 16
    %vm3640 = vcmp.lt.s32.totalorder %v3608, 16
    %vm3641 = vcmp.lt.s32.totalorder %v3609, 16
    %vm3642 = vcmp.lt.s32.totalorder %v3610, 16
    %vm3643 = vcmp.lt.s32.totalorder %v3611, 16
    %vm3644 = vcmp.lt.s32.totalorder %v3612, 16
    %vm3645 = vcmp.lt.s32.totalorder %v3613, 16
    %vm3646 = vcmp.lt.s32.totalorder %v3614, 16
    %v3647 = vsel %vm3615, 1, 0
    %v3648 = vsel %vm3616, 1, 0
    %v3649 = vsel %vm3617, 1, 0
    %v3650 = vsel %vm3618, 1, 0
    %v3651 = vsel %vm3619, 1, 0
    %v3652 = vsel %vm3620, 1, 0
    %v3653 = vsel %vm3621, 1, 0
    %v3654 = vsel %vm3622, 1, 0
    %v3655 = vsel %vm3623, 1, 0
    %v3656 = vsel %vm3624, 1, 0
    %v3657 = vsel %vm3625, 1, 0
    %v3658 = vsel %vm3626, 1, 0
    %v3659 = vsel %vm3627, 1, 0
    %v3660 = vsel %vm3628, 1, 0
    %v3661 = vsel %vm3629, 1, 0
    %v3662 = vsel %vm3630, 1, 0
    %v3663 = vsel %vm3631, 1, 0
    %v3664 = vsel %vm3632, 1, 0
    %v3665 = vsel %vm3633, 1, 0
    %v3666 = vsel %vm3634, 1, 0
    %v3667 = vsel %vm3635, 1, 0
    %v3668 = vsel %vm3636, 1, 0
    %v3669 = vsel %vm3637, 1, 0
    %v3670 = vsel %vm3638, 1, 0
    %v3671 = vsel %vm3639, 1, 0
    %v3672 = vsel %vm3640, 1, 0
    %v3673 = vsel %vm3641, 1, 0
    %v3674 = vsel %vm3642, 1, 0
    %v3675 = vsel %vm3643, 1, 0
    %v3676 = vsel %vm3644, 1, 0
    %v3677 = vsel %vm3645, 1, 0
    %v3678 = vsel %vm3646, 1, 0
    %v3679 = vcvt.s32.f32 %v3647
    %v3680 = vcvt.s32.f32 %v3648
    %v3681 = vcvt.s32.f32 %v3649
    %v3682 = vcvt.s32.f32 %v3650
    %v3683 = vcvt.s32.f32 %v3651
    %v3684 = vcvt.s32.f32 %v3652
    %v3685 = vcvt.s32.f32 %v3653
    %v3686 = vcvt.s32.f32 %v3654
    %v3687 = vcvt.s32.f32 %v3655
    %v3688 = vcvt.s32.f32 %v3656
    %v3689 = vcvt.s32.f32 %v3657
    %v3690 = vcvt.s32.f32 %v3658
    %v3691 = vcvt.s32.f32 %v3659
    %v3692 = vcvt.s32.f32 %v3660
    %v3693 = vcvt.s32.f32 %v3661
    %v3694 = vcvt.s32.f32 %v3662
    %v3695 = vcvt.s32.f32 %v3663
    %v3696 = vcvt.s32.f32 %v3664
    %v3697 = vcvt.s32.f32 %v3665
    %v3698 = vcvt.s32.f32 %v3666
    %v3699 = vcvt.s32.f32 %v3667
    %v3700 = vcvt.s32.f32 %v3668
    %v3701 = vcvt.s32.f32 %v3669
    %v3702 = vcvt.s32.f32 %v3670
    %v3703 = vcvt.s32.f32 %v3671
    %v3704 = vcvt.s32.f32 %v3672
    %v3705 = vcvt.s32.f32 %v3673
    %v3706 = vcvt.s32.f32 %v3674
    %v3707 = vcvt.s32.f32 %v3675
    %v3708 = vcvt.s32.f32 %v3676
    %v3709 = vcvt.s32.f32 %v3677
    %v3710 = vcvt.s32.f32 %v3678
    %v3711 = vmul.f32 %v3679, %v3516
    %v3712 = vmul.f32 %v3680, %v3517
    %v3713 = vmul.f32 %v3681, %v3518
    %v3714 = vmul.f32 %v3682, %v3519
    %v3715 = vmul.f32 %v3683, %v3520
    %v3716 = vmul.f32 %v3684, %v3521
    %v3717 = vmul.f32 %v3685, %v3522
    %v3718 = vmul.f32 %v3686, %v3523
    %v3719 = vmul.f32 %v3687, %v3524
    %v3720 = vmul.f32 %v3688, %v3525
    %v3721 = vmul.f32 %v3689, %v3526
    %v3722 = vmul.f32 %v3690, %v3527
    %v3723 = vmul.f32 %v3691, %v3528
    %v3724 = vmul.f32 %v3692, %v3529
    %v3725 = vmul.f32 %v3693, %v3530
    %v3726 = vmul.f32 %v3694, %v3531
    %v3727 = vmul.f32 %v3695, %v3532
    %v3728 = vmul.f32 %v3696, %v3533
    %v3729 = vmul.f32 %v3697, %v3534
    %v3730 = vmul.f32 %v3698, %v3535
    %v3731 = vmul.f32 %v3699, %v3536
    %v3732 = vmul.f32 %v3700, %v3537
    %v3733 = vmul.f32 %v3701, %v3538
    %v3734 = vmul.f32 %v3702, %v3539
    %v3735 = vmul.f32 %v3703, %v3540
    %v3736 = vmul.f32 %v3704, %v3541
    %v3737 = vmul.f32 %v3705, %v3542
    %v3738 = vmul.f32 %v3706, %v3543
    %v3739 = vmul.f32 %v3707, %v3544
    %v3740 = vmul.f32 %v3708, %v3545
    %v3741 = vmul.f32 %v3709, %v3546
    %v3742 = vmul.f32 %v3710, %v3547
    %v3743 = vsub.f32 0.0, %v3711
    %v3744 = vsub.f32 0.0, %v3712
    %v3745 = vsub.f32 0.0, %v3713
    %v3746 = vsub.f32 0.0, %v3714
    %v3747 = vsub.f32 0.0, %v3715
    %v3748 = vsub.f32 0.0, %v3716
    %v3749 = vsub.f32 0.0, %v3717
    %v3750 = vsub.f32 0.0, %v3718
    %v3751 = vsub.f32 0.0, %v3719
    %v3752 = vsub.f32 0.0, %v3720
    %v3753 = vsub.f32 0.0, %v3721
    %v3754 = vsub.f32 0.0, %v3722
    %v3755 = vsub.f32 0.0, %v3723
    %v3756 = vsub.f32 0.0, %v3724
    %v3757 = vsub.f32 0.0, %v3725
    %v3758 = vsub.f32 0.0, %v3726
    %v3759 = vsub.f32 0.0, %v3727
    %v3760 = vsub.f32 0.0, %v3728
    %v3761 = vsub.f32 0.0, %v3729
    %v3762 = vsub.f32 0.0, %v3730
    %v3763 = vsub.f32 0.0, %v3731
    %v3764 = vsub.f32 0.0, %v3732
    %v3765 = vsub.f32 0.0, %v3733
    %v3766 = vsub.f32 0.0, %v3734
    %v3767 = vsub.f32 0.0, %v3735
    %v3768 = vsub.f32 0.0, %v3736
    %v3769 = vsub.f32 0.0, %v3737
    %v3770 = vsub.f32 0.0, %v3738
    %v3771 = vsub.f32 0.0, %v3739
    %v3772 = vsub.f32 0.0, %v3740
    %v3773 = vsub.f32 0.0, %v3741
    %v3774 = vsub.f32 0.0, %v3742
    %vm3775 = vcmask 7168
    %3776 = vst.msk [vmem:[%s5] sm:$0xff] %vm3775, %v3743
    %3777 = vst.msk [vmem:[%s5 + $0x8] sm:$0xff] %vm3775, %v3744
    %3778 = vst.msk [vmem:[%s5 + $0x10] sm:$0xff] %vm3775, %v3745
    %3779 = vst.msk [vmem:[%s5 + $0x18] sm:$0xff] %vm3775, %v3746
    %3780 = vst.msk [vmem:[%s5 + $0x20] sm:$0xff] %vm3775, %v3747
    %3781 = vst.msk [vmem:[%s5 + $0x28] sm:$0xff] %vm3775, %v3748
    %3782 = vst.msk [vmem:[%s5 + $0x30] sm:$0xff] %vm3775, %v3749
    %3783 = vst.msk [vmem:[%s5 + $0x38] sm:$0xff] %vm3775, %v3750
    %3784 = vst.msk [vmem:[%s5 + $0x40] sm:$0xff] %vm3775, %v3751
    %3785 = vst.msk [vmem:[%s5 + $0x48] sm:$0xff] %vm3775, %v3752
    %3786 = vst.msk [vmem:[%s5 + $0x50] sm:$0xff] %vm3775, %v3753
    %3787 = vst.msk [vmem:[%s5 + $0x58] sm:$0xff] %vm3775, %v3754
    %3788 = vst.msk [vmem:[%s5 + $0x60] sm:$0xff] %vm3775, %v3755
    %3789 = vst.msk [vmem:[%s5 + $0x68] sm:$0xff] %vm3775, %v3756
    %3790 = vst.msk [vmem:[%s5 + $0x70] sm:$0xff] %vm3775, %v3757
    %3791 = vst.msk [vmem:[%s5 + $0x78] sm:$0xff] %vm3775, %v3758
    %3792 = vst.msk [vmem:[%s5 + $0x80] sm:$0xff] %vm3775, %v3759
    %3793 = vst.msk [vmem:[%s5 + $0x88] sm:$0xff] %vm3775, %v3760
    %3794 = vst.msk [vmem:[%s5 + $0x90] sm:$0xff] %vm3775, %v3761
    %3795 = vst.msk [vmem:[%s5 + $0x98] sm:$0xff] %vm3775, %v3762
    %3796 = vst.msk [vmem:[%s5 + $0xa0] sm:$0xff] %vm3775, %v3763
    %3797 = vst.msk [vmem:[%s5 + $0xa8] sm:$0xff] %vm3775, %v3764
    %3798 = vst.msk [vmem:[%s5 + $0xb0] sm:$0xff] %vm3775, %v3765
    %3799 = vst.msk [vmem:[%s5 + $0xb8] sm:$0xff] %vm3775, %v3766
    %3800 = vst.msk [vmem:[%s5 + $0xc0] sm:$0xff] %vm3775, %v3767
    %3801 = vst.msk [vmem:[%s5 + $0xc8] sm:$0xff] %vm3775, %v3768
    %3802 = vst.msk [vmem:[%s5 + $0xd0] sm:$0xff] %vm3775, %v3769
    %3803 = vst.msk [vmem:[%s5 + $0xd8] sm:$0xff] %vm3775, %v3770
    %3804 = vst.msk [vmem:[%s5 + $0xe0] sm:$0xff] %vm3775, %v3771
    %3805 = vst.msk [vmem:[%s5 + $0xe8] sm:$0xff] %vm3775, %v3772
    %3806 = vst.msk [vmem:[%s5 + $0xf0] sm:$0xff] %vm3775, %v3773
    %3807 = vst.msk [vmem:[%s5 + $0xf8] sm:$0xff] %vm3775, %v3774
  $region37: #{tpu_custom_call.1} parent=0 // pred_fallthru
    _
  // Predicated region
  $region38: #{tpu_custom_call.1} parent=0 // pred_check
    _
  $region39: #{tpu_custom_call.1} parent=0 // pred_check_branch
    %3809 = sbr.rel (0) target = $region41
  $region40: #{tpu_custom_call.1} parent=0 // pred_region
    _
  $region41: #{tpu_custom_call.1} parent=0 // pred_fallthru
    _
  // Predicated region
  $region42: #{tpu_custom_call.1} parent=0 // pred_check
    _
  $region43: #{tpu_custom_call.1} parent=0 // pred_check_branch
    %3811 = sbr.rel (0) target = $region45
  $region44: #{tpu_custom_call.1} parent=0 // pred_region
    _
  $region45: #{tpu_custom_call.1} parent=0 // pred_fallthru
    _

</llo_original>
